<compile_context>
chip_gen: v7x
topology: tpu7x:2x2x1
jax: 0.10.0
libtpu: 0.0.40
codegen_flags: <defaults>
</compile_context>

<pallas_src>
import functools
import math

import jax
import jax.numpy as jnp
from jax import lax
from jax.experimental import pallas as pl
from jax.experimental.pallas import tpu as pltpu

VMEM_LIMIT = 32 * 1024 * 1024   # explicit scoped-VMEM budget (safe on v5e/v6e/v7x)


def _pick_tile(dim, preferred, quantum):
    """Largest tile <= preferred that divides dim (falls back to the full dim)."""
    if dim <= preferred:
        return dim
    t = preferred
    while t >= quantum:
        if dim % t == 0:
            return t
        t //= 2
    return dim   # ragged dim: full extent is always a legal block


# --------------------------- tiled linear kernels ---------------------------

def _linear_kernel(x_ref, w_ref, o_ref, acc_ref):
    @pl.when(pl.program_id(2) == 0)
    def _():
        acc_ref[...] = jnp.zeros_like(acc_ref)
    acc_ref[...] += jnp.dot(x_ref[...], w_ref[...],
                            preferred_element_type=jnp.float32)

    @pl.when(pl.program_id(2) == pl.num_programs(2) - 1)
    def _():
        o_ref[...] = acc_ref[...].astype(o_ref.dtype)


def _linear_bias_kernel(x_ref, w_ref, b_ref, o_ref, acc_ref):
    @pl.when(pl.program_id(2) == 0)
    def _():
        acc_ref[...] = jnp.zeros_like(acc_ref)
    acc_ref[...] += jnp.dot(x_ref[...], w_ref[...],
                            preferred_element_type=jnp.float32)

    @pl.when(pl.program_id(2) == pl.num_programs(2) - 1)
    def _():
        o_ref[...] = (acc_ref[...] + b_ref[...].astype(jnp.float32)
                      ).astype(o_ref.dtype)


def linear(x, w, b=None, *, block_m=256, block_n=256, block_k=512):
    """y = x @ w (+ b).  x: (M, K), w: (K, N), b: (N,) or None."""
    M, K = x.shape
    _, N = w.shape
    tm = _pick_tile(M, block_m, 8)
    tn = _pick_tile(N, block_n, 128)
    tk = _pick_tile(K, block_k, 128)
    grid = (M // tm, N // tn, K // tk)

    in_specs = [pl.BlockSpec((tm, tk), lambda i, j, k: (i, k)),
                pl.BlockSpec((tk, tn), lambda i, j, k: (k, j))]
    args = [x, w]
    if b is None:
        kernel = _linear_kernel
    else:
        kernel = _linear_bias_kernel
        in_specs.append(pl.BlockSpec((1, tn), lambda i, j, k: (0, j)))
        args.append(b.reshape(1, N))

    return pl.pallas_call(
        kernel,
        out_shape=jax.ShapeDtypeStruct((M, N), x.dtype),
        grid=grid,
        in_specs=in_specs,
        out_specs=pl.BlockSpec((tm, tn), lambda i, j, k: (i, j)),
        scratch_shapes=[pltpu.VMEM((tm, tn), jnp.float32)],
        compiler_params=pltpu.CompilerParams(
            dimension_semantics=("parallel", "parallel", "arbitrary"),
            vmem_limit_bytes=VMEM_LIMIT),
    )(*args)


def _linear_bias_rmsnorm_kernel(x_ref, w_ref, b_ref, g_ref, o_ref, acc_ref, *, eps):
    @pl.when(pl.program_id(1) == 0)
    def _():
        acc_ref[...] = jnp.zeros_like(acc_ref)
    acc_ref[...] += jnp.dot(x_ref[...], w_ref[...],
                            preferred_element_type=jnp.float32)

    @pl.when(pl.program_id(1) == pl.num_programs(1) - 1)
    def _():
        y = acc_ref[...] + b_ref[...].astype(jnp.float32)
        ms = jnp.mean(y * y, axis=-1, keepdims=True)
        o_ref[...] = (y * lax.rsqrt(ms + eps)
                      * g_ref[...].astype(jnp.float32)).astype(o_ref.dtype)


def linear_rmsnorm(x, w, b, gamma, *, eps, block_m=256, block_k=512):
    """RMSNorm(x @ w + b) * gamma, with the norm fused into the matmul epilogue.
    N (the small latent rank) is kept untiled so each row-norm is block-local."""
    M, K = x.shape
    _, N = w.shape
    tm = _pick_tile(M, block_m, 8)
    tk = _pick_tile(K, block_k, 128)
    grid = (M // tm, K // tk)
    return pl.pallas_call(
        functools.partial(_linear_bias_rmsnorm_kernel, eps=eps),
        out_shape=jax.ShapeDtypeStruct((M, N), x.dtype),
        grid=grid,
        in_specs=[pl.BlockSpec((tm, tk), lambda i, k: (i, k)),
                  pl.BlockSpec((tk, N), lambda i, k: (k, 0)),
                  pl.BlockSpec((1, N), lambda i, k: (0, 0)),
                  pl.BlockSpec((1, N), lambda i, k: (0, 0))],
        out_specs=pl.BlockSpec((tm, N), lambda i, k: (i, 0)),
        scratch_shapes=[pltpu.VMEM((tm, N), jnp.float32)],
        compiler_params=pltpu.CompilerParams(
            dimension_semantics=("parallel", "arbitrary"),
            vmem_limit_bytes=VMEM_LIMIT),
    )(x, w, b.reshape(1, N), gamma.reshape(1, N))


# ---------------------- flash attention with fused RoPE ----------------------

def rope_tables(seq_len, head_dim, base=10000.0, dtype=jnp.float32):
    """Lane-dense full-width tables: rope(x) = x*cos_full + rotate_half(x)*sin_signed."""
    half = head_dim // 2
    inv_freq = 1.0 / (base ** (jnp.arange(half, dtype=jnp.float32) / half))
    ang = jnp.arange(seq_len, dtype=jnp.float32)[:, None] * inv_freq[None, :]
    cos, sin = jnp.cos(ang), jnp.sin(ang)
    cos_full = jnp.concatenate([cos, cos], axis=-1)        # (S, Dh)
    sin_signed = jnp.concatenate([-sin, sin], axis=-1)     # (S, Dh)
    return cos_full.astype(dtype), sin_signed.astype(dtype)


def _flash_mla_kernel(cos_q_ref, sin_q_ref, cos_k_ref, sin_k_ref,
                      q_ref, k_ref, v_ref, o_ref,
                      qrot_sc, m_sc, l_sc, acc_sc):
    qi = pl.program_id(1)
    ki = pl.program_id(2)
    tq, H, Dh = q_ref.shape
    tk = k_ref.shape[0]

    def rotate_half(x):                       # [x1, x2] -> [x2, x1]
        if Dh % 128 == 0:                     # lane-aligned: free XLU roll slot
            return pltpu.roll(x, shift=Dh // 2, axis=-1)
        return jnp.concatenate([x[:, Dh // 2:], x[:, :Dh // 2]], axis=-1)

    @pl.when(ki == 0)                         # new q tile: reset state, rope q once
    def _():
        m_sc[...] = jnp.full_like(m_sc, -jnp.inf)
        l_sc[...] = jnp.zeros_like(l_sc)
        acc_sc[...] = jnp.zeros_like(acc_sc)
        cos_q = cos_q_ref[...]                # softmax scale folded into these tables
        sin_q = sin_q_ref[...]
        for h in range(H):
            qh = q_ref[:, h, :]
            qrot_sc[h] = qh * cos_q + rotate_half(qh) * sin_q

    @pl.when(ki * tk < (qi + 1) * tq)         # causal: skip blocks above the diagonal
    def _():
        cos_k = cos_k_ref[...]
        sin_k = sin_k_ref[...]
        row = qi * tq + lax.broadcasted_iota(jnp.int32, (tq, tk), 0)
        col = ki * tk + lax.broadcasted_iota(jnp.int32, (tq, tk), 1)
        causal = col <= row
        for h in range(H):                    # static unroll: 2-D MXU matmuls per head
            kh = k_ref[:, h, :]
            kh = kh * cos_k + rotate_half(kh) * sin_k
            s = lax.dot_general(qrot_sc[h], kh, (((1,), (1,)), ((), ())),
                                preferred_element_type=jnp.float32)   # (tq, tk)
            s = jnp.where(causal, s, -jnp.inf)
            m_prev = m_sc[h]
            m_new = jnp.maximum(m_prev, jnp.max(s, axis=-1, keepdims=True))
            alpha = jnp.exp(m_prev - m_new)
            p = jnp.exp(s - m_new)
            l_sc[h] = alpha * l_sc[h] + jnp.sum(p, axis=-1, keepdims=True)
            acc_sc[h] = alpha * acc_sc[h] + jnp.dot(
                p.astype(v_ref.dtype), v_ref[:, h, :],
                preferred_element_type=jnp.float32)
            m_sc[h] = m_new

    @pl.when(ki == pl.num_programs(2) - 1)    # epilogue: deferred normalization
    def _():
        for h in range(H):
            inv_l = pl.reciprocal(l_sc[h], approx=True)
            o_ref[:, h, :] = (acc_sc[h] * inv_l).astype(o_ref.dtype)


def flash_mla_attention(q, kv, *, block_q=256, block_k=256):
    """q: (B, S, H, Dh); kv: (B, S, 2, H, Dh) with kv[:,:,0]=K, kv[:,:,1]=V.
    Applies RoPE to q/k then causal flash attention.  Returns (B, S, H, Dh)."""
    B, S, H, Dh = q.shape
    scale = 1.0 / math.sqrt(Dh)
    tq = _pick_tile(S, block_q, 8)
    tk = _pick_tile(S, block_k, 8)
    nq, nk = S // tq, S // tk

    cos, sin = rope_tables(S, Dh, dtype=q.dtype)
    cos_q, sin_q = cos * scale, sin * scale     # fold softmax scale into q's RoPE
    cos_k, sin_k = cos, sin

    return pl.pallas_call(
        _flash_mla_kernel,
        out_shape=jax.ShapeDtypeStruct((B, S, H, Dh), q.dtype),
        grid=(B, nq, nk),
        in_specs=[
            pl.BlockSpec((tq, Dh), lambda b, i, j: (i, 0)),                        # cos_q
            pl.BlockSpec((tq, Dh), lambda b, i, j: (i, 0)),                        # sin_q
            pl.BlockSpec((tk, Dh), lambda b, i, j: (j, 0)),                        # cos_k
            pl.BlockSpec((tk, Dh), lambda b, i, j: (j, 0)),                        # sin_k
            pl.BlockSpec((None, tq, H, Dh), lambda b, i, j: (b, i, 0, 0)),         # q
            pl.BlockSpec((None, tk, None, H, Dh), lambda b, i, j: (b, j, 0, 0, 0)),  # k
            pl.BlockSpec((None, tk, None, H, Dh), lambda b, i, j: (b, j, 1, 0, 0)),  # v
        ],
        out_specs=pl.BlockSpec((None, tq, H, Dh), lambda b, i, j: (b, i, 0, 0)),
        scratch_shapes=[
            pltpu.VMEM((H, tq, Dh), q.dtype),      # rope'd + pre-scaled q
            pltpu.VMEM((H, tq, 1), jnp.float32),   # running max
            pltpu.VMEM((H, tq, 1), jnp.float32),   # running denominator
            pltpu.VMEM((H, tq, Dh), jnp.float32),  # un-normalized output accumulator
        ],
        compiler_params=pltpu.CompilerParams(
            dimension_semantics=("parallel", "parallel", "arbitrary"),
            vmem_limit_bytes=VMEM_LIMIT),
    )(cos_q, sin_q, cos_k, sin_k, q, kv, kv)


# ------------------------------- MLA forward ---------------------------------

def mla_forward(h, params, *, num_heads, rms_norm_eps):
    """Multi-head latent attention forward. h: (B, S, E) -> (B, S, E)."""
    # TODO(synk): attention_dropout > 0 (stochastic SDPA dropout) is not implemented.
    B, S, E = h.shape
    H = num_heads
    Dh = E // H
    x = h.reshape(B * S, E)

    # latent KV path: W_dkv + bias + RMSNorm fused; fused [W_uk|W_uv] projection.
    c_kv = linear_rmsnorm(x, params["w_dkv"], params["b_dkv"],
                          params["norm_c_w"], eps=rms_norm_eps)      # (BS, r_kv)
    kv = linear(c_kv, params["w_ukv"])                               # (BS, 2*H*Dh)
    kv = kv.reshape(B, S, 2, H, Dh)                                  # free reshape

    # latent Q path
    c_q = linear(x, params["w_dq"], params["b_dq"])                  # (BS, r_q)
    q = linear(c_q, params["w_uq"]).reshape(B, S, H, Dh)             # free reshape

    # RoPE + causal flash attention, output already in (B, S, H, Dh) layout so
    # W_o consumes it with a free reshape (no HBM transposes anywhere).
    attn = flash_mla_attention(q, kv)                                # (B, S, H, Dh)
    out = linear(attn.reshape(B * S, H * Dh), params["w_o"], params["b_o"])
    return out.reshape(B, S, E)


# --------------------------------- driver ------------------------------------

def init_params(key, embed_dim, num_heads, kv_lora_rank, q_lora_rank):
    Dh = embed_dim // num_heads
    hd = num_heads * Dh
    ks = jax.random.split(key, 8)
    scale = 0.02

    def w(k, shape):
        return scale * jax.random.normal(k, shape, dtype=jnp.float32)

    w_uk = w(ks[2], (kv_lora_rank, hd))
    w_uv = w(ks[3], (kv_lora_rank, hd))
    return {
        "w_dkv": w(ks[0], (embed_dim, kv_lora_rank)),
        "b_dkv": w(ks[1], (kv_lora_rank,)),
        "w_ukv": jnp.concatenate([w_uk, w_uv], axis=1),       # fused [W_uk | W_uv], bias-free
        "w_dq": w(ks[4], (embed_dim, q_lora_rank)),
        "b_dq": w(ks[5], (q_lora_rank,)),
        "w_uq": w(ks[6], (q_lora_rank, hd)),                  # bias-free
        "w_o": w(ks[7], (hd, embed_dim)),
        "b_o": jnp.zeros((embed_dim,), jnp.float32),
        "norm_c_w": jnp.ones((kv_lora_rank,), jnp.float32),   # torch RMSNorm default
    }


if __name__ == "__main__":
    # config: embed_dim=32, num_attention_heads=4, kv_lora_rank=16,
    #         q_lora_rank=16, rms_norm_eps=1e-6, attention_dropout=0.0
    B, S, E = 2, 8, 32
    num_heads = 4
    kv_lora_rank = 16
    q_lora_rank = 16
    rms_norm_eps = 1e-6

    key = jax.random.PRNGKey(0)
    k_h, k_p = jax.random.split(key)
    h = jax.random.normal(k_h, (B, S, E), dtype=jnp.float32)
    params = init_params(k_p, E, num_heads, kv_lora_rank, q_lora_rank)

    fwd = jax.jit(functools.partial(mla_forward, num_heads=num_heads,
                                    rms_norm_eps=rms_norm_eps))
    out = fwd(h, params)
    jax.block_until_ready(out)
    assert out.shape == (B, S, E) and out.dtype == jnp.float32
    print("KERNEL_OK")
</pallas_src>

<mosaic_0001>
module attributes {stable_mosaic.version = 11 : i64} {
  func.func @_linear_bias_rmsnorm_kernel(%arg0: i32, %arg1: i32, %arg2: memref<16x32xf32, #tpu.memory_space<vmem>>, %arg3: memref<32x16xf32, #tpu.memory_space<vmem>>, %arg4: memref<1x16xf32, #tpu.memory_space<vmem>>, %arg5: memref<1x16xf32, #tpu.memory_space<vmem>>, %arg6: memref<16x16xf32, #tpu.memory_space<vmem>>, %arg7: memref<16x16xf32, #tpu.memory_space<vmem>>) attributes {dimension_semantics = [#tpu.dimension_semantics<parallel>, #tpu.dimension_semantics<arbitrary>], iteration_bounds = array<i64: 1, 1>, scalar_prefetch = 0 : i64, scratch_operands = 1 : i64, tpu.core_type = #tpu.core_type<tc>, window_params = [{transform_indices = @transform_0, window_bounds = array<i64: 16, 32>}, {transform_indices = @transform_1, window_bounds = array<i64: 32, 16>}, {pipeline_mode = #tpu.pipeline_mode<synchronous>, transform_indices = @transform_2, window_bounds = array<i64: 1, 16>}, {pipeline_mode = #tpu.pipeline_mode<synchronous>, transform_indices = @transform_3, window_bounds = array<i64: 1, 16>}, {transform_indices = @transform_4, window_bounds = array<i64: 16, 16>}]} {
    %c0_i32 = arith.constant 0 : i32
    %0 = arith.cmpi eq, %arg1, %c0_i32 : i32
    %1 = arith.extui %0 : i1 to i32
    %c0_i32_0 = arith.constant 0 : i32
    %2 = arith.cmpi ne, %1, %c0_i32_0 : i32
    scf.if %2 {
      %cst_10 = arith.constant 0.000000e+00 : f32
      %12 = vector.broadcast %cst_10 : f32 to vector<16x16xf32>
      %c0_11 = arith.constant 0 : index
      %c0_12 = arith.constant 0 : index
      %13 = vector.load %arg7[%c0_11, %c0_12] : memref<16x16xf32, #tpu.memory_space<vmem>>, vector<16x16xf32>
      tpu.vector_store %arg7[%c0_11, %c0_12], %12 {strides = array<i32>} : memref<16x16xf32, #tpu.memory_space<vmem>>, vector<16x16xf32>,
    } else {
    }
    %c0 = arith.constant 0 : index
    %c0_1 = arith.constant 0 : index
    %3 = vector.load %arg7[%c0, %c0_1] : memref<16x16xf32, #tpu.memory_space<vmem>>, vector<16x16xf32>
    %c0_2 = arith.constant 0 : index
    %c0_3 = arith.constant 0 : index
    %4 = vector.load %arg2[%c0_2, %c0_3] : memref<16x32xf32, #tpu.memory_space<vmem>>, vector<16x32xf32>
    %c0_4 = arith.constant 0 : index
    %c0_5 = arith.constant 0 : index
    %5 = vector.load %arg3[%c0_4, %c0_5] : memref<32x16xf32, #tpu.memory_space<vmem>>, vector<32x16xf32>
    %cst = arith.constant dense<0.000000e+00> : vector<16x16xf32>
    %6 = tpu.matmul %4, %5, %cst {dimension_numbers = #tpu.dot_dimension_numbers<[1], [0], [0], [1], [0, 0, 1, 1], [], []>} : vector<16x32xf32>, vector<32x16xf32>, vector<16x16xf32> -> vector<16x16xf32>
    %7 = arith.addf %3, %6 : vector<16x16xf32>
    %c0_6 = arith.constant 0 : index
    %c0_7 = arith.constant 0 : index
    %8 = vector.load %arg7[%c0_6, %c0_7] : memref<16x16xf32, #tpu.memory_space<vmem>>, vector<16x16xf32>
    tpu.vector_store %arg7[%c0_6, %c0_7], %7 {strides = array<i32>} : memref<16x16xf32, #tpu.memory_space<vmem>>, vector<16x16xf32>,
    %c0_i32_8 = arith.constant 0 : i32
    %9 = arith.cmpi eq, %arg1, %c0_i32_8 : i32
    %10 = arith.extui %9 : i1 to i32
    %c0_i32_9 = arith.constant 0 : i32
    %11 = arith.cmpi ne, %10, %c0_i32_9 : i32
    scf.if %11 {
      %c0_10 = arith.constant 0 : index
      %c0_11 = arith.constant 0 : index
      %12 = vector.load %arg7[%c0_10, %c0_11] : memref<16x16xf32, #tpu.memory_space<vmem>>, vector<16x16xf32>
      %c0_12 = arith.constant 0 : index
      %c0_13 = arith.constant 0 : index
      %13 = vector.load %arg4[%c0_12, %c0_13] : memref<1x16xf32, #tpu.memory_space<vmem>>, vector<1x16xf32>
      %14 = vector.broadcast %13 : vector<1x16xf32> to vector<16x16xf32>
      %15 = arith.addf %12, %14 : vector<16x16xf32>
      %16 = arith.mulf %15, %15 : vector<16x16xf32>
      %cst_14 = arith.constant dense<0.000000e+00> : vector<16xf32>
      %17 = vector.multi_reduction <add>, %16, %cst_14 [1] : vector<16x16xf32> to vector<16xf32>
      %18 = vector.shape_cast %17 : vector<16xf32> to vector<16x1xf32>
      %cst_15 = arith.constant 1.600000e+01 : f32
      %19 = vector.broadcast %cst_15 : f32 to vector<16x1xf32>
      %20 = arith.divf %18, %19 : vector<16x1xf32>
      %cst_16 = arith.constant 9.99999997E-7 : f32
      %21 = vector.broadcast %cst_16 : f32 to vector<16x1xf32>
      %22 = arith.addf %20, %21 : vector<16x1xf32>
      %23 = math.rsqrt %22 : vector<16x1xf32>
      %24 = vector.broadcast %23 : vector<16x1xf32> to vector<16x16xf32>
      %25 = arith.mulf %15, %24 : vector<16x16xf32>
      %c0_17 = arith.constant 0 : index
      %c0_18 = arith.constant 0 : index
      %26 = vector.load %arg5[%c0_17, %c0_18] : memref<1x16xf32, #tpu.memory_space<vmem>>, vector<1x16xf32>
      %27 = vector.broadcast %26 : vector<1x16xf32> to vector<16x16xf32>
      %28 = arith.mulf %25, %27 : vector<16x16xf32>
      %c0_19 = arith.constant 0 : index
      %c0_20 = arith.constant 0 : index
      %29 = vector.load %arg6[%c0_19, %c0_20] : memref<16x16xf32, #tpu.memory_space<vmem>>, vector<16x16xf32>
      tpu.vector_store %arg6[%c0_19, %c0_20], %28 {strides = array<i32>} : memref<16x16xf32, #tpu.memory_space<vmem>>, vector<16x16xf32>,
    } else {
    }
    return
  }
  func.func @transform_0(%arg0: i32, %arg1: i32) -> (i32, i32) {
    %c0_i32 = arith.constant 0 : i32
    return %arg0, %arg1 : i32, i32
  }
  func.func @transform_1(%arg0: i32, %arg1: i32) -> (i32, i32) {
    %c0_i32 = arith.constant 0 : i32
    %c0_i32_0 = arith.constant 0 : i32
    return %arg1, %c0_i32 : i32, i32
  }
  func.func @transform_2(%arg0: i32, %arg1: i32) -> (i32, i32) {
    %c0_i32 = arith.constant 0 : i32
    %c0_i32_0 = arith.constant 0 : i32
    %c0_i32_1 = arith.constant 0 : i32
    return %c0_i32, %c0_i32_0 : i32, i32
  }
  func.func @transform_3(%arg0: i32, %arg1: i32) -> (i32, i32) {
    %c0_i32 = arith.constant 0 : i32
    %c0_i32_0 = arith.constant 0 : i32
    %c0_i32_1 = arith.constant 0 : i32
    return %c0_i32, %c0_i32_0 : i32, i32
  }
  func.func @transform_4(%arg0: i32, %arg1: i32) -> (i32, i32) {
    %c0_i32 = arith.constant 0 : i32
    %c0_i32_0 = arith.constant 0 : i32
    return %arg0, %c0_i32 : i32, i32
  }
}

module attributes {stable_mosaic.version = 11 : i64} {
  func.func @_linear_kernel(%arg0: i32, %arg1: i32, %arg2: i32, %arg3: memref<16x16xf32, #tpu.memory_space<vmem>>, %arg4: memref<16x64xf32, #tpu.memory_space<vmem>>, %arg5: memref<16x64xf32, #tpu.memory_space<vmem>>, %arg6: memref<16x64xf32, #tpu.memory_space<vmem>>) attributes {dimension_semantics = [#tpu.dimension_semantics<parallel>, #tpu.dimension_semantics<parallel>, #tpu.dimension_semantics<arbitrary>], iteration_bounds = array<i64: 1, 1, 1>, scalar_prefetch = 0 : i64, scratch_operands = 1 : i64, tpu.core_type = #tpu.core_type<tc>, window_params = [{transform_indices = @transform_0, window_bounds = array<i64: 16, 16>}, {transform_indices = @transform_1, window_bounds = array<i64: 16, 64>}, {transform_indices = @transform_2, window_bounds = array<i64: 16, 64>}]} {
    %c0_i32 = arith.constant 0 : i32
    %0 = arith.cmpi eq, %arg2, %c0_i32 : i32
    %1 = arith.extui %0 : i1 to i32
    %c0_i32_0 = arith.constant 0 : i32
    %2 = arith.cmpi ne, %1, %c0_i32_0 : i32
    scf.if %2 {
      %cst_10 = arith.constant 0.000000e+00 : f32
      %12 = vector.broadcast %cst_10 : f32 to vector<16x64xf32>
      %c0_11 = arith.constant 0 : index
      %c0_12 = arith.constant 0 : index
      %13 = vector.load %arg6[%c0_11, %c0_12] : memref<16x64xf32, #tpu.memory_space<vmem>>, vector<16x64xf32>
      tpu.vector_store %arg6[%c0_11, %c0_12], %12 {strides = array<i32>} : memref<16x64xf32, #tpu.memory_space<vmem>>, vector<16x64xf32>,
    } else {
    }
    %c0 = arith.constant 0 : index
    %c0_1 = arith.constant 0 : index
    %3 = vector.load %arg6[%c0, %c0_1] : memref<16x64xf32, #tpu.memory_space<vmem>>, vector<16x64xf32>
    %c0_2 = arith.constant 0 : index
    %c0_3 = arith.constant 0 : index
    %4 = vector.load %arg3[%c0_2, %c0_3] : memref<16x16xf32, #tpu.memory_space<vmem>>, vector<16x16xf32>
    %c0_4 = arith.constant 0 : index
    %c0_5 = arith.constant 0 : index
    %5 = vector.load %arg4[%c0_4, %c0_5] : memref<16x64xf32, #tpu.memory_space<vmem>>, vector<16x64xf32>
    %cst = arith.constant dense<0.000000e+00> : vector<16x64xf32>
    %6 = tpu.matmul %4, %5, %cst {dimension_numbers = #tpu.dot_dimension_numbers<[1], [0], [0], [1], [0, 0, 1, 1], [], []>} : vector<16x16xf32>, vector<16x64xf32>, vector<16x64xf32> -> vector<16x64xf32>
    %7 = arith.addf %3, %6 : vector<16x64xf32>
    %c0_6 = arith.constant 0 : index
    %c0_7 = arith.constant 0 : index
    %8 = vector.load %arg6[%c0_6, %c0_7] : memref<16x64xf32, #tpu.memory_space<vmem>>, vector<16x64xf32>
    tpu.vector_store %arg6[%c0_6, %c0_7], %7 {strides = array<i32>} : memref<16x64xf32, #tpu.memory_space<vmem>>, vector<16x64xf32>,
    %c0_i32_8 = arith.constant 0 : i32
    %9 = arith.cmpi eq, %arg2, %c0_i32_8 : i32
    %10 = arith.extui %9 : i1 to i32
    %c0_i32_9 = arith.constant 0 : i32
    %11 = arith.cmpi ne, %10, %c0_i32_9 : i32
    scf.if %11 {
      %c0_10 = arith.constant 0 : index
      %c0_11 = arith.constant 0 : index
      %12 = vector.load %arg6[%c0_10, %c0_11] : memref<16x64xf32, #tpu.memory_space<vmem>>, vector<16x64xf32>
      %c0_12 = arith.constant 0 : index
      %c0_13 = arith.constant 0 : index
      %13 = vector.load %arg5[%c0_12, %c0_13] : memref<16x64xf32, #tpu.memory_space<vmem>>, vector<16x64xf32>
      tpu.vector_store %arg5[%c0_12, %c0_13], %12 {strides = array<i32>} : memref<16x64xf32, #tpu.memory_space<vmem>>, vector<16x64xf32>,
    } else {
    }
    return
  }
  func.func @transform_0(%arg0: i32, %arg1: i32, %arg2: i32) -> (i32, i32) {
    %c0_i32 = arith.constant 0 : i32
    return %arg0, %arg2 : i32, i32
  }
  func.func @transform_1(%arg0: i32, %arg1: i32, %arg2: i32) -> (i32, i32) {
    %c0_i32 = arith.constant 0 : i32
    return %arg2, %arg1 : i32, i32
  }
  func.func @transform_2(%arg0: i32, %arg1: i32, %arg2: i32) -> (i32, i32) {
    %c0_i32 = arith.constant 0 : i32
    return %arg0, %arg1 : i32, i32
  }
}

module attributes {stable_mosaic.version = 11 : i64} {
  func.func @_linear_bias_kernel(%arg0: i32, %arg1: i32, %arg2: i32, %arg3: memref<16x32xf32, #tpu.memory_space<vmem>>, %arg4: memref<32x16xf32, #tpu.memory_space<vmem>>, %arg5: memref<1x16xf32, #tpu.memory_space<vmem>>, %arg6: memref<16x16xf32, #tpu.memory_space<vmem>>, %arg7: memref<16x16xf32, #tpu.memory_space<vmem>>) attributes {dimension_semantics = [#tpu.dimension_semantics<parallel>, #tpu.dimension_semantics<parallel>, #tpu.dimension_semantics<arbitrary>], iteration_bounds = array<i64: 1, 1, 1>, scalar_prefetch = 0 : i64, scratch_operands = 1 : i64, tpu.core_type = #tpu.core_type<tc>, window_params = [{transform_indices = @transform_0, window_bounds = array<i64: 16, 32>}, {transform_indices = @transform_1, window_bounds = array<i64: 32, 16>}, {transform_indices = @transform_2, window_bounds = array<i64: 1, 16>}, {transform_indices = @transform_3, window_bounds = array<i64: 16, 16>}]} {
    %c0_i32 = arith.constant 0 : i32
    %0 = arith.cmpi eq, %arg2, %c0_i32 : i32
    %1 = arith.extui %0 : i1 to i32
    %c0_i32_0 = arith.constant 0 : i32
    %2 = arith.cmpi ne, %1, %c0_i32_0 : i32
    scf.if %2 {
      %cst_10 = arith.constant 0.000000e+00 : f32
      %12 = vector.broadcast %cst_10 : f32 to vector<16x16xf32>
      %c0_11 = arith.constant 0 : index
      %c0_12 = arith.constant 0 : index
      %13 = vector.load %arg7[%c0_11, %c0_12] : memref<16x16xf32, #tpu.memory_space<vmem>>, vector<16x16xf32>
      tpu.vector_store %arg7[%c0_11, %c0_12], %12 {strides = array<i32>} : memref<16x16xf32, #tpu.memory_space<vmem>>, vector<16x16xf32>,
    } else {
    }
    %c0 = arith.constant 0 : index
    %c0_1 = arith.constant 0 : index
    %3 = vector.load %arg7[%c0, %c0_1] : memref<16x16xf32, #tpu.memory_space<vmem>>, vector<16x16xf32>
    %c0_2 = arith.constant 0 : index
    %c0_3 = arith.constant 0 : index
    %4 = vector.load %arg3[%c0_2, %c0_3] : memref<16x32xf32, #tpu.memory_space<vmem>>, vector<16x32xf32>
    %c0_4 = arith.constant 0 : index
    %c0_5 = arith.constant 0 : index
    %5 = vector.load %arg4[%c0_4, %c0_5] : memref<32x16xf32, #tpu.memory_space<vmem>>, vector<32x16xf32>
    %cst = arith.constant dense<0.000000e+00> : vector<16x16xf32>
    %6 = tpu.matmul %4, %5, %cst {dimension_numbers = #tpu.dot_dimension_numbers<[1], [0], [0], [1], [0, 0, 1, 1], [], []>} : vector<16x32xf32>, vector<32x16xf32>, vector<16x16xf32> -> vector<16x16xf32>
    %7 = arith.addf %3, %6 : vector<16x16xf32>
    %c0_6 = arith.constant 0 : index
    %c0_7 = arith.constant 0 : index
    %8 = vector.load %arg7[%c0_6, %c0_7] : memref<16x16xf32, #tpu.memory_space<vmem>>, vector<16x16xf32>
    tpu.vector_store %arg7[%c0_6, %c0_7], %7 {strides = array<i32>} : memref<16x16xf32, #tpu.memory_space<vmem>>, vector<16x16xf32>,
    %c0_i32_8 = arith.constant 0 : i32
    %9 = arith.cmpi eq, %arg2, %c0_i32_8 : i32
    %10 = arith.extui %9 : i1 to i32
    %c0_i32_9 = arith.constant 0 : i32
    %11 = arith.cmpi ne, %10, %c0_i32_9 : i32
    scf.if %11 {
      %c0_10 = arith.constant 0 : index
      %c0_11 = arith.constant 0 : index
      %12 = vector.load %arg7[%c0_10, %c0_11] : memref<16x16xf32, #tpu.memory_space<vmem>>, vector<16x16xf32>
      %c0_12 = arith.constant 0 : index
      %c0_13 = arith.constant 0 : index
      %13 = vector.load %arg5[%c0_12, %c0_13] : memref<1x16xf32, #tpu.memory_space<vmem>>, vector<1x16xf32>
      %14 = vector.broadcast %13 : vector<1x16xf32> to vector<16x16xf32>
      %15 = arith.addf %12, %14 : vector<16x16xf32>
      %c0_14 = arith.constant 0 : index
      %c0_15 = arith.constant 0 : index
      %16 = vector.load %arg6[%c0_14, %c0_15] : memref<16x16xf32, #tpu.memory_space<vmem>>, vector<16x16xf32>
      tpu.vector_store %arg6[%c0_14, %c0_15], %15 {strides = array<i32>} : memref<16x16xf32, #tpu.memory_space<vmem>>, vector<16x16xf32>,
    } else {
    }
    return
  }
  func.func @transform_0(%arg0: i32, %arg1: i32, %arg2: i32) -> (i32, i32) {
    %c0_i32 = arith.constant 0 : i32
    return %arg0, %arg2 : i32, i32
  }
  func.func @transform_1(%arg0: i32, %arg1: i32, %arg2: i32) -> (i32, i32) {
    %c0_i32 = arith.constant 0 : i32
    return %arg2, %arg1 : i32, i32
  }
  func.func @transform_2(%arg0: i32, %arg1: i32, %arg2: i32) -> (i32, i32) {
    %c0_i32 = arith.constant 0 : i32
    %c0_i32_0 = arith.constant 0 : i32
    return %c0_i32, %arg1 : i32, i32
  }
  func.func @transform_3(%arg0: i32, %arg1: i32, %arg2: i32) -> (i32, i32) {
    %c0_i32 = arith.constant 0 : i32
    return %arg0, %arg1 : i32, i32
  }
}

module attributes {stable_mosaic.version = 11 : i64} {
  func.func @_linear_kernel(%arg0: i32, %arg1: i32, %arg2: i32, %arg3: memref<16x16xf32, #tpu.memory_space<vmem>>, %arg4: memref<16x32xf32, #tpu.memory_space<vmem>>, %arg5: memref<16x32xf32, #tpu.memory_space<vmem>>, %arg6: memref<16x32xf32, #tpu.memory_space<vmem>>) attributes {dimension_semantics = [#tpu.dimension_semantics<parallel>, #tpu.dimension_semantics<parallel>, #tpu.dimension_semantics<arbitrary>], iteration_bounds = array<i64: 1, 1, 1>, scalar_prefetch = 0 : i64, scratch_operands = 1 : i64, tpu.core_type = #tpu.core_type<tc>, window_params = [{transform_indices = @transform_0, window_bounds = array<i64: 16, 16>}, {transform_indices = @transform_1, window_bounds = array<i64: 16, 32>}, {transform_indices = @transform_2, window_bounds = array<i64: 16, 32>}]} {
    %c0_i32 = arith.constant 0 : i32
    %0 = arith.cmpi eq, %arg2, %c0_i32 : i32
    %1 = arith.extui %0 : i1 to i32
    %c0_i32_0 = arith.constant 0 : i32
    %2 = arith.cmpi ne, %1, %c0_i32_0 : i32
    scf.if %2 {
      %cst_10 = arith.constant 0.000000e+00 : f32
      %12 = vector.broadcast %cst_10 : f32 to vector<16x32xf32>
      %c0_11 = arith.constant 0 : index
      %c0_12 = arith.constant 0 : index
      %13 = vector.load %arg6[%c0_11, %c0_12] : memref<16x32xf32, #tpu.memory_space<vmem>>, vector<16x32xf32>
      tpu.vector_store %arg6[%c0_11, %c0_12], %12 {strides = array<i32>} : memref<16x32xf32, #tpu.memory_space<vmem>>, vector<16x32xf32>,
    } else {
    }
    %c0 = arith.constant 0 : index
    %c0_1 = arith.constant 0 : index
    %3 = vector.load %arg6[%c0, %c0_1] : memref<16x32xf32, #tpu.memory_space<vmem>>, vector<16x32xf32>
    %c0_2 = arith.constant 0 : index
    %c0_3 = arith.constant 0 : index
    %4 = vector.load %arg3[%c0_2, %c0_3] : memref<16x16xf32, #tpu.memory_space<vmem>>, vector<16x16xf32>
    %c0_4 = arith.constant 0 : index
    %c0_5 = arith.constant 0 : index
    %5 = vector.load %arg4[%c0_4, %c0_5] : memref<16x32xf32, #tpu.memory_space<vmem>>, vector<16x32xf32>
    %cst = arith.constant dense<0.000000e+00> : vector<16x32xf32>
    %6 = tpu.matmul %4, %5, %cst {dimension_numbers = #tpu.dot_dimension_numbers<[1], [0], [0], [1], [0, 0, 1, 1], [], []>} : vector<16x16xf32>, vector<16x32xf32>, vector<16x32xf32> -> vector<16x32xf32>
    %7 = arith.addf %3, %6 : vector<16x32xf32>
    %c0_6 = arith.constant 0 : index
    %c0_7 = arith.constant 0 : index
    %8 = vector.load %arg6[%c0_6, %c0_7] : memref<16x32xf32, #tpu.memory_space<vmem>>, vector<16x32xf32>
    tpu.vector_store %arg6[%c0_6, %c0_7], %7 {strides = array<i32>} : memref<16x32xf32, #tpu.memory_space<vmem>>, vector<16x32xf32>,
    %c0_i32_8 = arith.constant 0 : i32
    %9 = arith.cmpi eq, %arg2, %c0_i32_8 : i32
    %10 = arith.extui %9 : i1 to i32
    %c0_i32_9 = arith.constant 0 : i32
    %11 = arith.cmpi ne, %10, %c0_i32_9 : i32
    scf.if %11 {
      %c0_10 = arith.constant 0 : index
      %c0_11 = arith.constant 0 : index
      %12 = vector.load %arg6[%c0_10, %c0_11] : memref<16x32xf32, #tpu.memory_space<vmem>>, vector<16x32xf32>
      %c0_12 = arith.constant 0 : index
      %c0_13 = arith.constant 0 : index
      %13 = vector.load %arg5[%c0_12, %c0_13] : memref<16x32xf32, #tpu.memory_space<vmem>>, vector<16x32xf32>
      tpu.vector_store %arg5[%c0_12, %c0_13], %12 {strides = array<i32>} : memref<16x32xf32, #tpu.memory_space<vmem>>, vector<16x32xf32>,
    } else {
    }
    return
  }
  func.func @transform_0(%arg0: i32, %arg1: i32, %arg2: i32) -> (i32, i32) {
    %c0_i32 = arith.constant 0 : i32
    return %arg0, %arg2 : i32, i32
  }
  func.func @transform_1(%arg0: i32, %arg1: i32, %arg2: i32) -> (i32, i32) {
    %c0_i32 = arith.constant 0 : i32
    return %arg2, %arg1 : i32, i32
  }
  func.func @transform_2(%arg0: i32, %arg1: i32, %arg2: i32) -> (i32, i32) {
    %c0_i32 = arith.constant 0 : i32
    return %arg0, %arg1 : i32, i32
  }
}

module attributes {stable_mosaic.version = 11 : i64} {
  func.func @_linear_bias_kernel(%arg0: i32, %arg1: i32, %arg2: i32, %arg3: memref<16x32xf32, #tpu.memory_space<vmem>>, %arg4: memref<32x32xf32, #tpu.memory_space<vmem>>, %arg5: memref<1x32xf32, #tpu.memory_space<vmem>>, %arg6: memref<16x32xf32, #tpu.memory_space<vmem>>, %arg7: memref<16x32xf32, #tpu.memory_space<vmem>>) attributes {dimension_semantics = [#tpu.dimension_semantics<parallel>, #tpu.dimension_semantics<parallel>, #tpu.dimension_semantics<arbitrary>], iteration_bounds = array<i64: 1, 1, 1>, scalar_prefetch = 0 : i64, scratch_operands = 1 : i64, tpu.core_type = #tpu.core_type<tc>, window_params = [{transform_indices = @transform_0, window_bounds = array<i64: 16, 32>}, {transform_indices = @transform_1, window_bounds = array<i64: 32, 32>}, {transform_indices = @transform_2, window_bounds = array<i64: 1, 32>}, {transform_indices = @transform_3, window_bounds = array<i64: 16, 32>}]} {
    %c0_i32 = arith.constant 0 : i32
    %0 = arith.cmpi eq, %arg2, %c0_i32 : i32
    %1 = arith.extui %0 : i1 to i32
    %c0_i32_0 = arith.constant 0 : i32
    %2 = arith.cmpi ne, %1, %c0_i32_0 : i32
    scf.if %2 {
      %cst_10 = arith.constant 0.000000e+00 : f32
      %12 = vector.broadcast %cst_10 : f32 to vector<16x32xf32>
      %c0_11 = arith.constant 0 : index
      %c0_12 = arith.constant 0 : index
      %13 = vector.load %arg7[%c0_11, %c0_12] : memref<16x32xf32, #tpu.memory_space<vmem>>, vector<16x32xf32>
      tpu.vector_store %arg7[%c0_11, %c0_12], %12 {strides = array<i32>} : memref<16x32xf32, #tpu.memory_space<vmem>>, vector<16x32xf32>,
    } else {
    }
    %c0 = arith.constant 0 : index
    %c0_1 = arith.constant 0 : index
    %3 = vector.load %arg7[%c0, %c0_1] : memref<16x32xf32, #tpu.memory_space<vmem>>, vector<16x32xf32>
    %c0_2 = arith.constant 0 : index
    %c0_3 = arith.constant 0 : index
    %4 = vector.load %arg3[%c0_2, %c0_3] : memref<16x32xf32, #tpu.memory_space<vmem>>, vector<16x32xf32>
    %c0_4 = arith.constant 0 : index
    %c0_5 = arith.constant 0 : index
    %5 = vector.load %arg4[%c0_4, %c0_5] : memref<32x32xf32, #tpu.memory_space<vmem>>, vector<32x32xf32>
    %cst = arith.constant dense<0.000000e+00> : vector<16x32xf32>
    %6 = tpu.matmul %4, %5, %cst {dimension_numbers = #tpu.dot_dimension_numbers<[1], [0], [0], [1], [0, 0, 1, 1], [], []>} : vector<16x32xf32>, vector<32x32xf32>, vector<16x32xf32> -> vector<16x32xf32>
    %7 = arith.addf %3, %6 : vector<16x32xf32>
    %c0_6 = arith.constant 0 : index
    %c0_7 = arith.constant 0 : index
    %8 = vector.load %arg7[%c0_6, %c0_7] : memref<16x32xf32, #tpu.memory_space<vmem>>, vector<16x32xf32>
    tpu.vector_store %arg7[%c0_6, %c0_7], %7 {strides = array<i32>} : memref<16x32xf32, #tpu.memory_space<vmem>>, vector<16x32xf32>,
    %c0_i32_8 = arith.constant 0 : i32
    %9 = arith.cmpi eq, %arg2, %c0_i32_8 : i32
    %10 = arith.extui %9 : i1 to i32
    %c0_i32_9 = arith.constant 0 : i32
    %11 = arith.cmpi ne, %10, %c0_i32_9 : i32
    scf.if %11 {
      %c0_10 = arith.constant 0 : index
      %c0_11 = arith.constant 0 : index
      %12 = vector.load %arg7[%c0_10, %c0_11] : memref<16x32xf32, #tpu.memory_space<vmem>>, vector<16x32xf32>
      %c0_12 = arith.constant 0 : index
      %c0_13 = arith.constant 0 : index
      %13 = vector.load %arg5[%c0_12, %c0_13] : memref<1x32xf32, #tpu.memory_space<vmem>>, vector<1x32xf32>
      %14 = vector.broadcast %13 : vector<1x32xf32> to vector<16x32xf32>
      %15 = arith.addf %12, %14 : vector<16x32xf32>
      %c0_14 = arith.constant 0 : index
      %c0_15 = arith.constant 0 : index
      %16 = vector.load %arg6[%c0_14, %c0_15] : memref<16x32xf32, #tpu.memory_space<vmem>>, vector<16x32xf32>
      tpu.vector_store %arg6[%c0_14, %c0_15], %15 {strides = array<i32>} : memref<16x32xf32, #tpu.memory_space<vmem>>, vector<16x32xf32>,
    } else {
    }
    return
  }
  func.func @transform_0(%arg0: i32, %arg1: i32, %arg2: i32) -> (i32, i32) {
    %c0_i32 = arith.constant 0 : i32
    return %arg0, %arg2 : i32, i32
  }
  func.func @transform_1(%arg0: i32, %arg1: i32, %arg2: i32) -> (i32, i32) {
    %c0_i32 = arith.constant 0 : i32
    return %arg2, %arg1 : i32, i32
  }
  func.func @transform_2(%arg0: i32, %arg1: i32, %arg2: i32) -> (i32, i32) {
    %c0_i32 = arith.constant 0 : i32
    %c0_i32_0 = arith.constant 0 : i32
    return %c0_i32, %arg1 : i32, i32
  }
  func.func @transform_3(%arg0: i32, %arg1: i32, %arg2: i32) -> (i32, i32) {
    %c0_i32 = arith.constant 0 : i32
    return %arg0, %arg1 : i32, i32
  }
}

module attributes {stable_mosaic.version = 11 : i64} {
  func.func @_flash_mla_kernel(%arg0: i32, %arg1: i32, %arg2: i32, %arg3: memref<8x8xf32, #tpu.memory_space<vmem>>, %arg4: memref<8x8xf32, #tpu.memory_space<vmem>>, %arg5: memref<8x8xf32, #tpu.memory_space<vmem>>, %arg6: memref<8x8xf32, #tpu.memory_space<vmem>>, %arg7: memref<1x8x4x8xf32, #tpu.memory_space<vmem>>, %arg8: memref<1x8x1x4x8xf32, #tpu.memory_space<vmem>>, %arg9: memref<1x8x1x4x8xf32, #tpu.memory_space<vmem>>, %arg10: memref<1x8x4x8xf32, #tpu.memory_space<vmem>>, %arg11: memref<4x8x8xf32, #tpu.memory_space<vmem>>, %arg12: memref<4x8x1xf32, #tpu.memory_space<vmem>>, %arg13: memref<4x8x1xf32, #tpu.memory_space<vmem>>, %arg14: memref<4x8x8xf32, #tpu.memory_space<vmem>>) attributes {dimension_semantics = [#tpu.dimension_semantics<parallel>, #tpu.dimension_semantics<parallel>, #tpu.dimension_semantics<arbitrary>], iteration_bounds = array<i64: 2, 1, 1>, scalar_prefetch = 0 : i64, scratch_operands = 4 : i64, tpu.core_type = #tpu.core_type<tc>, window_params = [{transform_indices = @transform_0, window_bounds = array<i64: 8, 8>}, {transform_indices = @transform_1, window_bounds = array<i64: 8, 8>}, {transform_indices = @transform_2, window_bounds = array<i64: 8, 8>}, {transform_indices = @transform_3, window_bounds = array<i64: 8, 8>}, {transform_indices = @transform_4, window_bounds = array<i64: 1, 8, 4, 8>}, {transform_indices = @transform_5, window_bounds = array<i64: 1, 8, 1, 4, 8>}, {transform_indices = @transform_6, window_bounds = array<i64: 1, 8, 1, 4, 8>}, {transform_indices = @transform_7, window_bounds = array<i64: 1, 8, 4, 8>}]} {
    %c0_i32 = arith.constant 0 : i32
    %0 = arith.cmpi eq, %arg2, %c0_i32 : i32
    %1 = arith.extui %0 : i1 to i32
    %c0_i32_0 = arith.constant 0 : i32
    %2 = arith.cmpi ne, %1, %c0_i32_0 : i32
    scf.if %2 {
      %cst = arith.constant 0xFF800000 : f32
      %12 = vector.broadcast %cst : f32 to vector<4x8x1xf32>
      %c0 = arith.constant 0 : index
      %c0_5 = arith.constant 0 : index
      %c0_6 = arith.constant 0 : index
      %13 = vector.load %arg12[%c0, %c0_5, %c0_6] : memref<4x8x1xf32, #tpu.memory_space<vmem>>, vector<4x8x1xf32>
      tpu.vector_store %arg12[%c0, %c0_5, %c0_6], %12 {strides = array<i32>} : memref<4x8x1xf32, #tpu.memory_space<vmem>>, vector<4x8x1xf32>,
      %cst_7 = arith.constant 0.000000e+00 : f32
      %14 = vector.broadcast %cst_7 : f32 to vector<4x8x1xf32>
      %c0_8 = arith.constant 0 : index
      %c0_9 = arith.constant 0 : index
      %c0_10 = arith.constant 0 : index
      %15 = vector.load %arg13[%c0_8, %c0_9, %c0_10] : memref<4x8x1xf32, #tpu.memory_space<vmem>>, vector<4x8x1xf32>
      tpu.vector_store %arg13[%c0_8, %c0_9, %c0_10], %14 {strides = array<i32>} : memref<4x8x1xf32, #tpu.memory_space<vmem>>, vector<4x8x1xf32>,
      %cst_11 = arith.constant 0.000000e+00 : f32
      %16 = vector.broadcast %cst_11 : f32 to vector<4x8x8xf32>
      %c0_12 = arith.constant 0 : index
      %c0_13 = arith.constant 0 : index
      %c0_14 = arith.constant 0 : index
      %17 = vector.load %arg14[%c0_12, %c0_13, %c0_14] : memref<4x8x8xf32, #tpu.memory_space<vmem>>, vector<4x8x8xf32>
      tpu.vector_store %arg14[%c0_12, %c0_13, %c0_14], %16 {strides = array<i32>} : memref<4x8x8xf32, #tpu.memory_space<vmem>>, vector<4x8x8xf32>,
      %c0_15 = arith.constant 0 : index
      %c0_16 = arith.constant 0 : index
      %18 = vector.load %arg3[%c0_15, %c0_16] : memref<8x8xf32, #tpu.memory_space<vmem>>, vector<8x8xf32>
      %c0_17 = arith.constant 0 : index
      %c0_18 = arith.constant 0 : index
      %19 = vector.load %arg4[%c0_17, %c0_18] : memref<8x8xf32, #tpu.memory_space<vmem>>, vector<8x8xf32>
      %c0_19 = arith.constant 0 : index
      %c0_20 = arith.constant 0 : index
      %c0_21 = arith.constant 0 : index
      %c0_22 = arith.constant 0 : index
      %20 = vector.load %arg7[%c0_19, %c0_20, %c0_21, %c0_22] : memref<1x8x4x8xf32, #tpu.memory_space<vmem>>, vector<1x8x1x8xf32>
      %21 = vector.shape_cast %20 : vector<1x8x1x8xf32> to vector<8x8xf32>
      %22 = arith.mulf %21, %18 : vector<8x8xf32>
      %23 = vector.extract_strided_slice %21 {offsets = [0, 4], sizes = [8, 4], strides = [1, 1]} : vector<8x8xf32> to vector<8x4xf32>
      %24 = vector.extract_strided_slice %21 {offsets = [0, 0], sizes = [8, 4], strides = [1, 1]} : vector<8x8xf32> to vector<8x4xf32>
      %25 = tpu.concatenate %23, %24 in 1 : vector<8x4xf32>, vector<8x4xf32> -> vector<8x8xf32>
      %26 = arith.mulf %25, %19 : vector<8x8xf32>
      %27 = arith.addf %22, %26 : vector<8x8xf32>
      %c0_23 = arith.constant 0 : index
      %c0_24 = arith.constant 0 : index
      %c0_25 = arith.constant 0 : index
      %28 = vector.load %arg11[%c0_23, %c0_24, %c0_25] : memref<4x8x8xf32, #tpu.memory_space<vmem>>, vector<1x8x8xf32>
      %29 = vector.shape_cast %28 : vector<1x8x8xf32> to vector<8x8xf32>
      %30 = vector.shape_cast %27 : vector<8x8xf32> to vector<1x8x8xf32>
      tpu.vector_store %arg11[%c0_23, %c0_24, %c0_25], %30 {strides = array<i32>} : memref<4x8x8xf32, #tpu.memory_space<vmem>>, vector<1x8x8xf32>,
      %c0_26 = arith.constant 0 : index
      %c0_27 = arith.constant 0 : index
      %c1 = arith.constant 1 : index
      %c0_28 = arith.constant 0 : index
      %31 = vector.load %arg7[%c0_26, %c0_27, %c1, %c0_28] : memref<1x8x4x8xf32, #tpu.memory_space<vmem>>, vector<1x8x1x8xf32>
      %32 = vector.shape_cast %31 : vector<1x8x1x8xf32> to vector<8x8xf32>
      %33 = arith.mulf %32, %18 : vector<8x8xf32>
      %34 = vector.extract_strided_slice %32 {offsets = [0, 4], sizes = [8, 4], strides = [1, 1]} : vector<8x8xf32> to vector<8x4xf32>
      %35 = vector.extract_strided_slice %32 {offsets = [0, 0], sizes = [8, 4], strides = [1, 1]} : vector<8x8xf32> to vector<8x4xf32>
      %36 = tpu.concatenate %34, %35 in 1 : vector<8x4xf32>, vector<8x4xf32> -> vector<8x8xf32>
      %37 = arith.mulf %36, %19 : vector<8x8xf32>
      %38 = arith.addf %33, %37 : vector<8x8xf32>
      %c1_29 = arith.constant 1 : index
      %c0_30 = arith.constant 0 : index
      %c0_31 = arith.constant 0 : index
      %39 = vector.load %arg11[%c1_29, %c0_30, %c0_31] : memref<4x8x8xf32, #tpu.memory_space<vmem>>, vector<1x8x8xf32>
      %40 = vector.shape_cast %39 : vector<1x8x8xf32> to vector<8x8xf32>
      %41 = vector.shape_cast %38 : vector<8x8xf32> to vector<1x8x8xf32>
      tpu.vector_store %arg11[%c1_29, %c0_30, %c0_31], %41 {strides = array<i32>} : memref<4x8x8xf32, #tpu.memory_space<vmem>>, vector<1x8x8xf32>,
      %c0_32 = arith.constant 0 : index
      %c0_33 = arith.constant 0 : index
      %c2 = arith.constant 2 : index
      %c0_34 = arith.constant 0 : index
      %42 = vector.load %arg7[%c0_32, %c0_33, %c2, %c0_34] : memref<1x8x4x8xf32, #tpu.memory_space<vmem>>, vector<1x8x1x8xf32>
      %43 = vector.shape_cast %42 : vector<1x8x1x8xf32> to vector<8x8xf32>
      %44 = arith.mulf %43, %18 : vector<8x8xf32>
      %45 = vector.extract_strided_slice %43 {offsets = [0, 4], sizes = [8, 4], strides = [1, 1]} : vector<8x8xf32> to vector<8x4xf32>
      %46 = vector.extract_strided_slice %43 {offsets = [0, 0], sizes = [8, 4], strides = [1, 1]} : vector<8x8xf32> to vector<8x4xf32>
      %47 = tpu.concatenate %45, %46 in 1 : vector<8x4xf32>, vector<8x4xf32> -> vector<8x8xf32>
      %48 = arith.mulf %47, %19 : vector<8x8xf32>
      %49 = arith.addf %44, %48 : vector<8x8xf32>
      %c2_35 = arith.constant 2 : index
      %c0_36 = arith.constant 0 : index
      %c0_37 = arith.constant 0 : index
      %50 = vector.load %arg11[%c2_35, %c0_36, %c0_37] : memref<4x8x8xf32, #tpu.memory_space<vmem>>, vector<1x8x8xf32>
      %51 = vector.shape_cast %50 : vector<1x8x8xf32> to vector<8x8xf32>
      %52 = vector.shape_cast %49 : vector<8x8xf32> to vector<1x8x8xf32>
      tpu.vector_store %arg11[%c2_35, %c0_36, %c0_37], %52 {strides = array<i32>} : memref<4x8x8xf32, #tpu.memory_space<vmem>>, vector<1x8x8xf32>,
      %c0_38 = arith.constant 0 : index
      %c0_39 = arith.constant 0 : index
      %c3 = arith.constant 3 : index
      %c0_40 = arith.constant 0 : index
      %53 = vector.load %arg7[%c0_38, %c0_39, %c3, %c0_40] : memref<1x8x4x8xf32, #tpu.memory_space<vmem>>, vector<1x8x1x8xf32>
      %54 = vector.shape_cast %53 : vector<1x8x1x8xf32> to vector<8x8xf32>
      %55 = arith.mulf %54, %18 : vector<8x8xf32>
      %56 = vector.extract_strided_slice %54 {offsets = [0, 4], sizes = [8, 4], strides = [1, 1]} : vector<8x8xf32> to vector<8x4xf32>
      %57 = vector.extract_strided_slice %54 {offsets = [0, 0], sizes = [8, 4], strides = [1, 1]} : vector<8x8xf32> to vector<8x4xf32>
      %58 = tpu.concatenate %56, %57 in 1 : vector<8x4xf32>, vector<8x4xf32> -> vector<8x8xf32>
      %59 = arith.mulf %58, %19 : vector<8x8xf32>
      %60 = arith.addf %55, %59 : vector<8x8xf32>
      %c3_41 = arith.constant 3 : index
      %c0_42 = arith.constant 0 : index
      %c0_43 = arith.constant 0 : index
      %61 = vector.load %arg11[%c3_41, %c0_42, %c0_43] : memref<4x8x8xf32, #tpu.memory_space<vmem>>, vector<1x8x8xf32>
      %62 = vector.shape_cast %61 : vector<1x8x8xf32> to vector<8x8xf32>
      %63 = vector.shape_cast %60 : vector<8x8xf32> to vector<1x8x8xf32>
      tpu.vector_store %arg11[%c3_41, %c0_42, %c0_43], %63 {strides = array<i32>} : memref<4x8x8xf32, #tpu.memory_space<vmem>>, vector<1x8x8xf32>,
    } else {
    }
    %c8_i32 = arith.constant 8 : i32
    %3 = arith.muli %arg2, %c8_i32 : i32
    %c1_i32 = arith.constant 1 : i32
    %4 = arith.addi %arg1, %c1_i32 : i32
    %c8_i32_1 = arith.constant 8 : i32
    %5 = arith.muli %4, %c8_i32_1 : i32
    %6 = arith.cmpi slt, %3, %5 : i32
    %7 = arith.extui %6 : i1 to i32
    %c0_i32_2 = arith.constant 0 : i32
    %8 = arith.cmpi ne, %7, %c0_i32_2 : i32
    scf.if %8 {
      %c0 = arith.constant 0 : index
      %c0_5 = arith.constant 0 : index
      %12 = vector.load %arg5[%c0, %c0_5] : memref<8x8xf32, #tpu.memory_space<vmem>>, vector<8x8xf32>
      %c0_6 = arith.constant 0 : index
      %c0_7 = arith.constant 0 : index
      %13 = vector.load %arg6[%c0_6, %c0_7] : memref<8x8xf32, #tpu.memory_space<vmem>>, vector<8x8xf32>
      %c8_i32_8 = arith.constant 8 : i32
      %14 = arith.muli %arg1, %c8_i32_8 : i32
      %15 = tpu.iota {dimensions = array<i32: 0>} : vector<8x8xi32>
      %16 = vector.broadcast %14 : i32 to vector<8x8xi32>
      %17 = arith.addi %16, %15 : vector<8x8xi32>
      %c8_i32_9 = arith.constant 8 : i32
      %18 = arith.muli %arg2, %c8_i32_9 : i32
      %19 = tpu.iota {dimensions = array<i32: 1>} : vector<8x8xi32>
      %20 = vector.broadcast %18 : i32 to vector<8x8xi32>
      %21 = arith.addi %20, %19 : vector<8x8xi32>
      %22 = arith.cmpi sle, %21, %17 : vector<8x8xi32>
      %c0_10 = arith.constant 0 : index
      %c0_11 = arith.constant 0 : index
      %c0_12 = arith.constant 0 : index
      %c0_13 = arith.constant 0 : index
      %c0_14 = arith.constant 0 : index
      %23 = vector.load %arg8[%c0_10, %c0_11, %c0_12, %c0_13, %c0_14] : memref<1x8x1x4x8xf32, #tpu.memory_space<vmem>>, vector<1x8x1x1x8xf32>
      %24 = vector.shape_cast %23 : vector<1x8x1x1x8xf32> to vector<8x8xf32>
      %25 = arith.mulf %24, %12 : vector<8x8xf32>
      %26 = vector.extract_strided_slice %24 {offsets = [0, 4], sizes = [8, 4], strides = [1, 1]} : vector<8x8xf32> to vector<8x4xf32>
      %27 = vector.extract_strided_slice %24 {offsets = [0, 0], sizes = [8, 4], strides = [1, 1]} : vector<8x8xf32> to vector<8x4xf32>
      %28 = tpu.concatenate %26, %27 in 1 : vector<8x4xf32>, vector<8x4xf32> -> vector<8x8xf32>
      %29 = arith.mulf %28, %13 : vector<8x8xf32>
      %30 = arith.addf %25, %29 : vector<8x8xf32>
      %c0_15 = arith.constant 0 : index
      %c0_16 = arith.constant 0 : index
      %c0_17 = arith.constant 0 : index
      %31 = vector.load %arg11[%c0_15, %c0_16, %c0_17] : memref<4x8x8xf32, #tpu.memory_space<vmem>>, vector<1x8x8xf32>
      %32 = vector.shape_cast %31 : vector<1x8x8xf32> to vector<8x8xf32>
      %cst = arith.constant dense<0.000000e+00> : vector<8x8xf32>
      %33 = tpu.matmul %32, %30, %cst {dimension_numbers = #tpu.dot_dimension_numbers<[1], [1], [0], [0], [0, 0, 1, 0], [], []>} : vector<8x8xf32>, vector<8x8xf32>, vector<8x8xf32> -> vector<8x8xf32>
      %cst_18 = arith.constant 0xFF800000 : f32
      %34 = vector.broadcast %cst_18 : f32 to vector<8x8xf32>
      %35 = arith.select %22, %33, %34 : vector<8x8xi1>, vector<8x8xf32>
      %c0_19 = arith.constant 0 : index
      %c0_20 = arith.constant 0 : index
      %c0_21 = arith.constant 0 : index
      %36 = vector.load %arg12[%c0_19, %c0_20, %c0_21] : memref<4x8x1xf32, #tpu.memory_space<vmem>>, vector<1x8x1xf32>
      %37 = vector.shape_cast %36 : vector<1x8x1xf32> to vector<8x1xf32>
      %cst_22 = arith.constant dense<0xFF800000> : vector<8xf32>
      %38 = vector.multi_reduction <maximumf>, %35, %cst_22 [1] : vector<8x8xf32> to vector<8xf32>
      %39 = vector.shape_cast %38 : vector<8xf32> to vector<8x1xf32>
      %40 = arith.maximumf %37, %39 : vector<8x1xf32>
      %41 = arith.subf %37, %40 : vector<8x1xf32>
      %42 = math.exp %41 : vector<8x1xf32>
      %43 = vector.broadcast %40 : vector<8x1xf32> to vector<8x8xf32>
      %44 = arith.subf %35, %43 : vector<8x8xf32>
      %45 = math.exp %44 : vector<8x8xf32>
      %c0_23 = arith.constant 0 : index
      %c0_24 = arith.constant 0 : index
      %c0_25 = arith.constant 0 : index
      %46 = vector.load %arg13[%c0_23, %c0_24, %c0_25] : memref<4x8x1xf32, #tpu.memory_space<vmem>>, vector<1x8x1xf32>
      %47 = vector.shape_cast %46 : vector<1x8x1xf32> to vector<8x1xf32>
      %48 = arith.mulf %42, %47 : vector<8x1xf32>
      %cst_26 = arith.constant dense<0.000000e+00> : vector<8xf32>
      %49 = vector.multi_reduction <add>, %45, %cst_26 [1] : vector<8x8xf32> to vector<8xf32>
      %50 = vector.shape_cast %49 : vector<8xf32> to vector<8x1xf32>
      %51 = arith.addf %48, %50 : vector<8x1xf32>
      %c0_27 = arith.constant 0 : index
      %c0_28 = arith.constant 0 : index
      %c0_29 = arith.constant 0 : index
      %52 = vector.load %arg13[%c0_27, %c0_28, %c0_29] : memref<4x8x1xf32, #tpu.memory_space<vmem>>, vector<1x8x1xf32>
      %53 = vector.shape_cast %52 : vector<1x8x1xf32> to vector<8x1xf32>
      %54 = vector.shape_cast %51 : vector<8x1xf32> to vector<1x8x1xf32>
      tpu.vector_store %arg13[%c0_27, %c0_28, %c0_29], %54 {strides = array<i32>} : memref<4x8x1xf32, #tpu.memory_space<vmem>>, vector<1x8x1xf32>,
      %c0_30 = arith.constant 0 : index
      %c0_31 = arith.constant 0 : index
      %c0_32 = arith.constant 0 : index
      %55 = vector.load %arg14[%c0_30, %c0_31, %c0_32] : memref<4x8x8xf32, #tpu.memory_space<vmem>>, vector<1x8x8xf32>
      %56 = vector.shape_cast %55 : vector<1x8x8xf32> to vector<8x8xf32>
      %57 = vector.broadcast %42 : vector<8x1xf32> to vector<8x8xf32>
      %58 = arith.mulf %57, %56 : vector<8x8xf32>
      %c0_33 = arith.constant 0 : index
      %c0_34 = arith.constant 0 : index
      %c0_35 = arith.constant 0 : index
      %c0_36 = arith.constant 0 : index
      %c0_37 = arith.constant 0 : index
      %59 = vector.load %arg9[%c0_33, %c0_34, %c0_35, %c0_36, %c0_37] : memref<1x8x1x4x8xf32, #tpu.memory_space<vmem>>, vector<1x8x1x1x8xf32>
      %60 = vector.shape_cast %59 : vector<1x8x1x1x8xf32> to vector<8x8xf32>
      %cst_38 = arith.constant dense<0.000000e+00> : vector<8x8xf32>
      %61 = tpu.matmul %45, %60, %cst_38 {dimension_numbers = #tpu.dot_dimension_numbers<[1], [0], [0], [1], [0, 0, 1, 1], [], []>} : vector<8x8xf32>, vector<8x8xf32>, vector<8x8xf32> -> vector<8x8xf32>
      %62 = arith.addf %58, %61 : vector<8x8xf32>
      %c0_39 = arith.constant 0 : index
      %c0_40 = arith.constant 0 : index
      %c0_41 = arith.constant 0 : index
      %63 = vector.load %arg14[%c0_39, %c0_40, %c0_41] : memref<4x8x8xf32, #tpu.memory_space<vmem>>, vector<1x8x8xf32>
      %64 = vector.shape_cast %63 : vector<1x8x8xf32> to vector<8x8xf32>
      %65 = vector.shape_cast %62 : vector<8x8xf32> to vector<1x8x8xf32>
      tpu.vector_store %arg14[%c0_39, %c0_40, %c0_41], %65 {strides = array<i32>} : memref<4x8x8xf32, #tpu.memory_space<vmem>>, vector<1x8x8xf32>,
      %c0_42 = arith.constant 0 : index
      %c0_43 = arith.constant 0 : index
      %c0_44 = arith.constant 0 : index
      %66 = vector.load %arg12[%c0_42, %c0_43, %c0_44] : memref<4x8x1xf32, #tpu.memory_space<vmem>>, vector<1x8x1xf32>
      %67 = vector.shape_cast %66 : vector<1x8x1xf32> to vector<8x1xf32>
      %68 = vector.shape_cast %40 : vector<8x1xf32> to vector<1x8x1xf32>
      tpu.vector_store %arg12[%c0_42, %c0_43, %c0_44], %68 {strides = array<i32>} : memref<4x8x1xf32, #tpu.memory_space<vmem>>, vector<1x8x1xf32>,
      %c0_45 = arith.constant 0 : index
      %c0_46 = arith.constant 0 : index
      %c0_47 = arith.constant 0 : index
      %c1 = arith.constant 1 : index
      %c0_48 = arith.constant 0 : index
      %69 = vector.load %arg8[%c0_45, %c0_46, %c0_47, %c1, %c0_48] : memref<1x8x1x4x8xf32, #tpu.memory_space<vmem>>, vector<1x8x1x1x8xf32>
      %70 = vector.shape_cast %69 : vector<1x8x1x1x8xf32> to vector<8x8xf32>
      %71 = arith.mulf %70, %12 : vector<8x8xf32>
      %72 = vector.extract_strided_slice %70 {offsets = [0, 4], sizes = [8, 4], strides = [1, 1]} : vector<8x8xf32> to vector<8x4xf32>
      %73 = vector.extract_strided_slice %70 {offsets = [0, 0], sizes = [8, 4], strides = [1, 1]} : vector<8x8xf32> to vector<8x4xf32>
      %74 = tpu.concatenate %72, %73 in 1 : vector<8x4xf32>, vector<8x4xf32> -> vector<8x8xf32>
      %75 = arith.mulf %74, %13 : vector<8x8xf32>
      %76 = arith.addf %71, %75 : vector<8x8xf32>
      %c1_49 = arith.constant 1 : index
      %c0_50 = arith.constant 0 : index
      %c0_51 = arith.constant 0 : index
      %77 = vector.load %arg11[%c1_49, %c0_50, %c0_51] : memref<4x8x8xf32, #tpu.memory_space<vmem>>, vector<1x8x8xf32>
      %78 = vector.shape_cast %77 : vector<1x8x8xf32> to vector<8x8xf32>
      %cst_52 = arith.constant dense<0.000000e+00> : vector<8x8xf32>
      %79 = tpu.matmul %78, %76, %cst_52 {dimension_numbers = #tpu.dot_dimension_numbers<[1], [1], [0], [0], [0, 0, 1, 0], [], []>} : vector<8x8xf32>, vector<8x8xf32>, vector<8x8xf32> -> vector<8x8xf32>
      %cst_53 = arith.constant 0xFF800000 : f32
      %80 = vector.broadcast %cst_53 : f32 to vector<8x8xf32>
      %81 = arith.select %22, %79, %80 : vector<8x8xi1>, vector<8x8xf32>
      %c1_54 = arith.constant 1 : index
      %c0_55 = arith.constant 0 : index
      %c0_56 = arith.constant 0 : index
      %82 = vector.load %arg12[%c1_54, %c0_55, %c0_56] : memref<4x8x1xf32, #tpu.memory_space<vmem>>, vector<1x8x1xf32>
      %83 = vector.shape_cast %82 : vector<1x8x1xf32> to vector<8x1xf32>
      %cst_57 = arith.constant dense<0xFF800000> : vector<8xf32>
      %84 = vector.multi_reduction <maximumf>, %81, %cst_57 [1] : vector<8x8xf32> to vector<8xf32>
      %85 = vector.shape_cast %84 : vector<8xf32> to vector<8x1xf32>
      %86 = arith.maximumf %83, %85 : vector<8x1xf32>
      %87 = arith.subf %83, %86 : vector<8x1xf32>
      %88 = math.exp %87 : vector<8x1xf32>
      %89 = vector.broadcast %86 : vector<8x1xf32> to vector<8x8xf32>
      %90 = arith.subf %81, %89 : vector<8x8xf32>
      %91 = math.exp %90 : vector<8x8xf32>
      %c1_58 = arith.constant 1 : index
      %c0_59 = arith.constant 0 : index
      %c0_60 = arith.constant 0 : index
      %92 = vector.load %arg13[%c1_58, %c0_59, %c0_60] : memref<4x8x1xf32, #tpu.memory_space<vmem>>, vector<1x8x1xf32>
      %93 = vector.shape_cast %92 : vector<1x8x1xf32> to vector<8x1xf32>
      %94 = arith.mulf %88, %93 : vector<8x1xf32>
      %cst_61 = arith.constant dense<0.000000e+00> : vector<8xf32>
      %95 = vector.multi_reduction <add>, %91, %cst_61 [1] : vector<8x8xf32> to vector<8xf32>
      %96 = vector.shape_cast %95 : vector<8xf32> to vector<8x1xf32>
      %97 = arith.addf %94, %96 : vector<8x1xf32>
      %c1_62 = arith.constant 1 : index
      %c0_63 = arith.constant 0 : index
      %c0_64 = arith.constant 0 : index
      %98 = vector.load %arg13[%c1_62, %c0_63, %c0_64] : memref<4x8x1xf32, #tpu.memory_space<vmem>>, vector<1x8x1xf32>
      %99 = vector.shape_cast %98 : vector<1x8x1xf32> to vector<8x1xf32>
      %100 = vector.shape_cast %97 : vector<8x1xf32> to vector<1x8x1xf32>
      tpu.vector_store %arg13[%c1_62, %c0_63, %c0_64], %100 {strides = array<i32>} : memref<4x8x1xf32, #tpu.memory_space<vmem>>, vector<1x8x1xf32>,
      %c1_65 = arith.constant 1 : index
      %c0_66 = arith.constant 0 : index
      %c0_67 = arith.constant 0 : index
      %101 = vector.load %arg14[%c1_65, %c0_66, %c0_67] : memref<4x8x8xf32, #tpu.memory_space<vmem>>, vector<1x8x8xf32>
      %102 = vector.shape_cast %101 : vector<1x8x8xf32> to vector<8x8xf32>
      %103 = vector.broadcast %88 : vector<8x1xf32> to vector<8x8xf32>
      %104 = arith.mulf %103, %102 : vector<8x8xf32>
      %c0_68 = arith.constant 0 : index
      %c0_69 = arith.constant 0 : index
      %c0_70 = arith.constant 0 : index
      %c1_71 = arith.constant 1 : index
      %c0_72 = arith.constant 0 : index
      %105 = vector.load %arg9[%c0_68, %c0_69, %c0_70, %c1_71, %c0_72] : memref<1x8x1x4x8xf32, #tpu.memory_space<vmem>>, vector<1x8x1x1x8xf32>
      %106 = vector.shape_cast %105 : vector<1x8x1x1x8xf32> to vector<8x8xf32>
      %cst_73 = arith.constant dense<0.000000e+00> : vector<8x8xf32>
      %107 = tpu.matmul %91, %106, %cst_73 {dimension_numbers = #tpu.dot_dimension_numbers<[1], [0], [0], [1], [0, 0, 1, 1], [], []>} : vector<8x8xf32>, vector<8x8xf32>, vector<8x8xf32> -> vector<8x8xf32>
      %108 = arith.addf %104, %107 : vector<8x8xf32>
      %c1_74 = arith.constant 1 : index
      %c0_75 = arith.constant 0 : index
      %c0_76 = arith.constant 0 : index
      %109 = vector.load %arg14[%c1_74, %c0_75, %c0_76] : memref<4x8x8xf32, #tpu.memory_space<vmem>>, vector<1x8x8xf32>
      %110 = vector.shape_cast %109 : vector<1x8x8xf32> to vector<8x8xf32>
      %111 = vector.shape_cast %108 : vector<8x8xf32> to vector<1x8x8xf32>
      tpu.vector_store %arg14[%c1_74, %c0_75, %c0_76], %111 {strides = array<i32>} : memref<4x8x8xf32, #tpu.memory_space<vmem>>, vector<1x8x8xf32>,
      %c1_77 = arith.constant 1 : index
      %c0_78 = arith.constant 0 : index
      %c0_79 = arith.constant 0 : index
      %112 = vector.load %arg12[%c1_77, %c0_78, %c0_79] : memref<4x8x1xf32, #tpu.memory_space<vmem>>, vector<1x8x1xf32>
      %113 = vector.shape_cast %112 : vector<1x8x1xf32> to vector<8x1xf32>
      %114 = vector.shape_cast %86 : vector<8x1xf32> to vector<1x8x1xf32>
      tpu.vector_store %arg12[%c1_77, %c0_78, %c0_79], %114 {strides = array<i32>} : memref<4x8x1xf32, #tpu.memory_space<vmem>>, vector<1x8x1xf32>,
      %c0_80 = arith.constant 0 : index
      %c0_81 = arith.constant 0 : index
      %c0_82 = arith.constant 0 : index
      %c2 = arith.constant 2 : index
      %c0_83 = arith.constant 0 : index
      %115 = vector.load %arg8[%c0_80, %c0_81, %c0_82, %c2, %c0_83] : memref<1x8x1x4x8xf32, #tpu.memory_space<vmem>>, vector<1x8x1x1x8xf32>
      %116 = vector.shape_cast %115 : vector<1x8x1x1x8xf32> to vector<8x8xf32>
      %117 = arith.mulf %116, %12 : vector<8x8xf32>
      %118 = vector.extract_strided_slice %116 {offsets = [0, 4], sizes = [8, 4], strides = [1, 1]} : vector<8x8xf32> to vector<8x4xf32>
      %119 = vector.extract_strided_slice %116 {offsets = [0, 0], sizes = [8, 4], strides = [1, 1]} : vector<8x8xf32> to vector<8x4xf32>
      %120 = tpu.concatenate %118, %119 in 1 : vector<8x4xf32>, vector<8x4xf32> -> vector<8x8xf32>
      %121 = arith.mulf %120, %13 : vector<8x8xf32>
      %122 = arith.addf %117, %121 : vector<8x8xf32>
      %c2_84 = arith.constant 2 : index
      %c0_85 = arith.constant 0 : index
      %c0_86 = arith.constant 0 : index
      %123 = vector.load %arg11[%c2_84, %c0_85, %c0_86] : memref<4x8x8xf32, #tpu.memory_space<vmem>>, vector<1x8x8xf32>
      %124 = vector.shape_cast %123 : vector<1x8x8xf32> to vector<8x8xf32>
      %cst_87 = arith.constant dense<0.000000e+00> : vector<8x8xf32>
      %125 = tpu.matmul %124, %122, %cst_87 {dimension_numbers = #tpu.dot_dimension_numbers<[1], [1], [0], [0], [0, 0, 1, 0], [], []>} : vector<8x8xf32>, vector<8x8xf32>, vector<8x8xf32> -> vector<8x8xf32>
      %cst_88 = arith.constant 0xFF800000 : f32
      %126 = vector.broadcast %cst_88 : f32 to vector<8x8xf32>
      %127 = arith.select %22, %125, %126 : vector<8x8xi1>, vector<8x8xf32>
      %c2_89 = arith.constant 2 : index
      %c0_90 = arith.constant 0 : index
      %c0_91 = arith.constant 0 : index
      %128 = vector.load %arg12[%c2_89, %c0_90, %c0_91] : memref<4x8x1xf32, #tpu.memory_space<vmem>>, vector<1x8x1xf32>
      %129 = vector.shape_cast %128 : vector<1x8x1xf32> to vector<8x1xf32>
      %cst_92 = arith.constant dense<0xFF800000> : vector<8xf32>
      %130 = vector.multi_reduction <maximumf>, %127, %cst_92 [1] : vector<8x8xf32> to vector<8xf32>
      %131 = vector.shape_cast %130 : vector<8xf32> to vector<8x1xf32>
      %132 = arith.maximumf %129, %131 : vector<8x1xf32>
      %133 = arith.subf %129, %132 : vector<8x1xf32>
      %134 = math.exp %133 : vector<8x1xf32>
      %135 = vector.broadcast %132 : vector<8x1xf32> to vector<8x8xf32>
      %136 = arith.subf %127, %135 : vector<8x8xf32>
      %137 = math.exp %136 : vector<8x8xf32>
      %c2_93 = arith.constant 2 : index
      %c0_94 = arith.constant 0 : index
      %c0_95 = arith.constant 0 : index
      %138 = vector.load %arg13[%c2_93, %c0_94, %c0_95] : memref<4x8x1xf32, #tpu.memory_space<vmem>>, vector<1x8x1xf32>
      %139 = vector.shape_cast %138 : vector<1x8x1xf32> to vector<8x1xf32>
      %140 = arith.mulf %134, %139 : vector<8x1xf32>
      %cst_96 = arith.constant dense<0.000000e+00> : vector<8xf32>
      %141 = vector.multi_reduction <add>, %137, %cst_96 [1] : vector<8x8xf32> to vector<8xf32>
      %142 = vector.shape_cast %141 : vector<8xf32> to vector<8x1xf32>
      %143 = arith.addf %140, %142 : vector<8x1xf32>
      %c2_97 = arith.constant 2 : index
      %c0_98 = arith.constant 0 : index
      %c0_99 = arith.constant 0 : index
      %144 = vector.load %arg13[%c2_97, %c0_98, %c0_99] : memref<4x8x1xf32, #tpu.memory_space<vmem>>, vector<1x8x1xf32>
      %145 = vector.shape_cast %144 : vector<1x8x1xf32> to vector<8x1xf32>
      %146 = vector.shape_cast %143 : vector<8x1xf32> to vector<1x8x1xf32>
      tpu.vector_store %arg13[%c2_97, %c0_98, %c0_99], %146 {strides = array<i32>} : memref<4x8x1xf32, #tpu.memory_space<vmem>>, vector<1x8x1xf32>,
      %c2_100 = arith.constant 2 : index
      %c0_101 = arith.constant 0 : index
      %c0_102 = arith.constant 0 : index
      %147 = vector.load %arg14[%c2_100, %c0_101, %c0_102] : memref<4x8x8xf32, #tpu.memory_space<vmem>>, vector<1x8x8xf32>
      %148 = vector.shape_cast %147 : vector<1x8x8xf32> to vector<8x8xf32>
      %149 = vector.broadcast %134 : vector<8x1xf32> to vector<8x8xf32>
      %150 = arith.mulf %149, %148 : vector<8x8xf32>
      %c0_103 = arith.constant 0 : index
      %c0_104 = arith.constant 0 : index
      %c0_105 = arith.constant 0 : index
      %c2_106 = arith.constant 2 : index
      %c0_107 = arith.constant 0 : index
      %151 = vector.load %arg9[%c0_103, %c0_104, %c0_105, %c2_106, %c0_107] : memref<1x8x1x4x8xf32, #tpu.memory_space<vmem>>, vector<1x8x1x1x8xf32>
      %152 = vector.shape_cast %151 : vector<1x8x1x1x8xf32> to vector<8x8xf32>
      %cst_108 = arith.constant dense<0.000000e+00> : vector<8x8xf32>
      %153 = tpu.matmul %137, %152, %cst_108 {dimension_numbers = #tpu.dot_dimension_numbers<[1], [0], [0], [1], [0, 0, 1, 1], [], []>} : vector<8x8xf32>, vector<8x8xf32>, vector<8x8xf32> -> vector<8x8xf32>
      %154 = arith.addf %150, %153 : vector<8x8xf32>
      %c2_109 = arith.constant 2 : index
      %c0_110 = arith.constant 0 : index
      %c0_111 = arith.constant 0 : index
      %155 = vector.load %arg14[%c2_109, %c0_110, %c0_111] : memref<4x8x8xf32, #tpu.memory_space<vmem>>, vector<1x8x8xf32>
      %156 = vector.shape_cast %155 : vector<1x8x8xf32> to vector<8x8xf32>
      %157 = vector.shape_cast %154 : vector<8x8xf32> to vector<1x8x8xf32>
      tpu.vector_store %arg14[%c2_109, %c0_110, %c0_111], %157 {strides = array<i32>} : memref<4x8x8xf32, #tpu.memory_space<vmem>>, vector<1x8x8xf32>,
      %c2_112 = arith.constant 2 : index
      %c0_113 = arith.constant 0 : index
      %c0_114 = arith.constant 0 : index
      %158 = vector.load %arg12[%c2_112, %c0_113, %c0_114] : memref<4x8x1xf32, #tpu.memory_space<vmem>>, vector<1x8x1xf32>
      %159 = vector.shape_cast %158 : vector<1x8x1xf32> to vector<8x1xf32>
      %160 = vector.shape_cast %132 : vector<8x1xf32> to vector<1x8x1xf32>
      tpu.vector_store %arg12[%c2_112, %c0_113, %c0_114], %160 {strides = array<i32>} : memref<4x8x1xf32, #tpu.memory_space<vmem>>, vector<1x8x1xf32>,
      %c0_115 = arith.constant 0 : index
      %c0_116 = arith.constant 0 : index
      %c0_117 = arith.constant 0 : index
      %c3 = arith.constant 3 : index
      %c0_118 = arith.constant 0 : index
      %161 = vector.load %arg8[%c0_115, %c0_116, %c0_117, %c3, %c0_118] : memref<1x8x1x4x8xf32, #tpu.memory_space<vmem>>, vector<1x8x1x1x8xf32>
      %162 = vector.shape_cast %161 : vector<1x8x1x1x8xf32> to vector<8x8xf32>
      %163 = arith.mulf %162, %12 : vector<8x8xf32>
      %164 = vector.extract_strided_slice %162 {offsets = [0, 4], sizes = [8, 4], strides = [1, 1]} : vector<8x8xf32> to vector<8x4xf32>
      %165 = vector.extract_strided_slice %162 {offsets = [0, 0], sizes = [8, 4], strides = [1, 1]} : vector<8x8xf32> to vector<8x4xf32>
      %166 = tpu.concatenate %164, %165 in 1 : vector<8x4xf32>, vector<8x4xf32> -> vector<8x8xf32>
      %167 = arith.mulf %166, %13 : vector<8x8xf32>
      %168 = arith.addf %163, %167 : vector<8x8xf32>
      %c3_119 = arith.constant 3 : index
      %c0_120 = arith.constant 0 : index
      %c0_121 = arith.constant 0 : index
      %169 = vector.load %arg11[%c3_119, %c0_120, %c0_121] : memref<4x8x8xf32, #tpu.memory_space<vmem>>, vector<1x8x8xf32>
      %170 = vector.shape_cast %169 : vector<1x8x8xf32> to vector<8x8xf32>
      %cst_122 = arith.constant dense<0.000000e+00> : vector<8x8xf32>
      %171 = tpu.matmul %170, %168, %cst_122 {dimension_numbers = #tpu.dot_dimension_numbers<[1], [1], [0], [0], [0, 0, 1, 0], [], []>} : vector<8x8xf32>, vector<8x8xf32>, vector<8x8xf32> -> vector<8x8xf32>
      %cst_123 = arith.constant 0xFF800000 : f32
      %172 = vector.broadcast %cst_123 : f32 to vector<8x8xf32>
      %173 = arith.select %22, %171, %172 : vector<8x8xi1>, vector<8x8xf32>
      %c3_124 = arith.constant 3 : index
      %c0_125 = arith.constant 0 : index
      %c0_126 = arith.constant 0 : index
      %174 = vector.load %arg12[%c3_124, %c0_125, %c0_126] : memref<4x8x1xf32, #tpu.memory_space<vmem>>, vector<1x8x1xf32>
      %175 = vector.shape_cast %174 : vector<1x8x1xf32> to vector<8x1xf32>
      %cst_127 = arith.constant dense<0xFF800000> : vector<8xf32>
      %176 = vector.multi_reduction <maximumf>, %173, %cst_127 [1] : vector<8x8xf32> to vector<8xf32>
      %177 = vector.shape_cast %176 : vector<8xf32> to vector<8x1xf32>
      %178 = arith.maximumf %175, %177 : vector<8x1xf32>
      %179 = arith.subf %175, %178 : vector<8x1xf32>
      %180 = math.exp %179 : vector<8x1xf32>
      %181 = vector.broadcast %178 : vector<8x1xf32> to vector<8x8xf32>
      %182 = arith.subf %173, %181 : vector<8x8xf32>
      %183 = math.exp %182 : vector<8x8xf32>
      %c3_128 = arith.constant 3 : index
      %c0_129 = arith.constant 0 : index
      %c0_130 = arith.constant 0 : index
      %184 = vector.load %arg13[%c3_128, %c0_129, %c0_130] : memref<4x8x1xf32, #tpu.memory_space<vmem>>, vector<1x8x1xf32>
      %185 = vector.shape_cast %184 : vector<1x8x1xf32> to vector<8x1xf32>
      %186 = arith.mulf %180, %185 : vector<8x1xf32>
      %cst_131 = arith.constant dense<0.000000e+00> : vector<8xf32>
      %187 = vector.multi_reduction <add>, %183, %cst_131 [1] : vector<8x8xf32> to vector<8xf32>
      %188 = vector.shape_cast %187 : vector<8xf32> to vector<8x1xf32>
      %189 = arith.addf %186, %188 : vector<8x1xf32>
      %c3_132 = arith.constant 3 : index
      %c0_133 = arith.constant 0 : index
      %c0_134 = arith.constant 0 : index
      %190 = vector.load %arg13[%c3_132, %c0_133, %c0_134] : memref<4x8x1xf32, #tpu.memory_space<vmem>>, vector<1x8x1xf32>
      %191 = vector.shape_cast %190 : vector<1x8x1xf32> to vector<8x1xf32>
      %192 = vector.shape_cast %189 : vector<8x1xf32> to vector<1x8x1xf32>
      tpu.vector_store %arg13[%c3_132, %c0_133, %c0_134], %192 {strides = array<i32>} : memref<4x8x1xf32, #tpu.memory_space<vmem>>, vector<1x8x1xf32>,
      %c3_135 = arith.constant 3 : index
      %c0_136 = arith.constant 0 : index
      %c0_137 = arith.constant 0 : index
      %193 = vector.load %arg14[%c3_135, %c0_136, %c0_137] : memref<4x8x8xf32, #tpu.memory_space<vmem>>, vector<1x8x8xf32>
      %194 = vector.shape_cast %193 : vector<1x8x8xf32> to vector<8x8xf32>
      %195 = vector.broadcast %180 : vector<8x1xf32> to vector<8x8xf32>
      %196 = arith.mulf %195, %194 : vector<8x8xf32>
      %c0_138 = arith.constant 0 : index
      %c0_139 = arith.constant 0 : index
      %c0_140 = arith.constant 0 : index
      %c3_141 = arith.constant 3 : index
      %c0_142 = arith.constant 0 : index
      %197 = vector.load %arg9[%c0_138, %c0_139, %c0_140, %c3_141, %c0_142] : memref<1x8x1x4x8xf32, #tpu.memory_space<vmem>>, vector<1x8x1x1x8xf32>
      %198 = vector.shape_cast %197 : vector<1x8x1x1x8xf32> to vector<8x8xf32>
      %cst_143 = arith.constant dense<0.000000e+00> : vector<8x8xf32>
      %199 = tpu.matmul %183, %198, %cst_143 {dimension_numbers = #tpu.dot_dimension_numbers<[1], [0], [0], [1], [0, 0, 1, 1], [], []>} : vector<8x8xf32>, vector<8x8xf32>, vector<8x8xf32> -> vector<8x8xf32>
      %200 = arith.addf %196, %199 : vector<8x8xf32>
      %c3_144 = arith.constant 3 : index
      %c0_145 = arith.constant 0 : index
      %c0_146 = arith.constant 0 : index
      %201 = vector.load %arg14[%c3_144, %c0_145, %c0_146] : memref<4x8x8xf32, #tpu.memory_space<vmem>>, vector<1x8x8xf32>
      %202 = vector.shape_cast %201 : vector<1x8x8xf32> to vector<8x8xf32>
      %203 = vector.shape_cast %200 : vector<8x8xf32> to vector<1x8x8xf32>
      tpu.vector_store %arg14[%c3_144, %c0_145, %c0_146], %203 {strides = array<i32>} : memref<4x8x8xf32, #tpu.memory_space<vmem>>, vector<1x8x8xf32>,
      %c3_147 = arith.constant 3 : index
      %c0_148 = arith.constant 0 : index
      %c0_149 = arith.constant 0 : index
      %204 = vector.load %arg12[%c3_147, %c0_148, %c0_149] : memref<4x8x1xf32, #tpu.memory_space<vmem>>, vector<1x8x1xf32>
      %205 = vector.shape_cast %204 : vector<1x8x1xf32> to vector<8x1xf32>
      %206 = vector.shape_cast %178 : vector<8x1xf32> to vector<1x8x1xf32>
      tpu.vector_store %arg12[%c3_147, %c0_148, %c0_149], %206 {strides = array<i32>} : memref<4x8x1xf32, #tpu.memory_space<vmem>>, vector<1x8x1xf32>,
    } else {
    }
    %c0_i32_3 = arith.constant 0 : i32
    %9 = arith.cmpi eq, %arg2, %c0_i32_3 : i32
    %10 = arith.extui %9 : i1 to i32
    %c0_i32_4 = arith.constant 0 : i32
    %11 = arith.cmpi ne, %10, %c0_i32_4 : i32
    scf.if %11 {
      %c0 = arith.constant 0 : index
      %c0_5 = arith.constant 0 : index
      %c0_6 = arith.constant 0 : index
      %12 = vector.load %arg13[%c0, %c0_5, %c0_6] : memref<4x8x1xf32, #tpu.memory_space<vmem>>, vector<1x8x1xf32>
      %13 = vector.shape_cast %12 : vector<1x8x1xf32> to vector<8x1xf32>
      %14 = tpu.reciprocal %13 {approx = true} : vector<8x1xf32> -> vector<8x1xf32>
      %c0_7 = arith.constant 0 : index
      %c0_8 = arith.constant 0 : index
      %c0_9 = arith.constant 0 : index
      %15 = vector.load %arg14[%c0_7, %c0_8, %c0_9] : memref<4x8x8xf32, #tpu.memory_space<vmem>>, vector<1x8x8xf32>
      %16 = vector.shape_cast %15 : vector<1x8x8xf32> to vector<8x8xf32>
      %17 = vector.broadcast %14 : vector<8x1xf32> to vector<8x8xf32>
      %18 = arith.mulf %16, %17 : vector<8x8xf32>
      %c0_10 = arith.constant 0 : index
      %c0_11 = arith.constant 0 : index
      %c0_12 = arith.constant 0 : index
      %c0_13 = arith.constant 0 : index
      %19 = vector.load %arg10[%c0_10, %c0_11, %c0_12, %c0_13] : memref<1x8x4x8xf32, #tpu.memory_space<vmem>>, vector<1x8x1x8xf32>
      %20 = vector.shape_cast %19 : vector<1x8x1x8xf32> to vector<8x8xf32>
      %21 = vector.shape_cast %18 : vector<8x8xf32> to vector<1x8x1x8xf32>
      tpu.vector_store %arg10[%c0_10, %c0_11, %c0_12, %c0_13], %21 {strides = array<i32>} : memref<1x8x4x8xf32, #tpu.memory_space<vmem>>, vector<1x8x1x8xf32>,
      %c1 = arith.constant 1 : index
      %c0_14 = arith.constant 0 : index
      %c0_15 = arith.constant 0 : index
      %22 = vector.load %arg13[%c1, %c0_14, %c0_15] : memref<4x8x1xf32, #tpu.memory_space<vmem>>, vector<1x8x1xf32>
      %23 = vector.shape_cast %22 : vector<1x8x1xf32> to vector<8x1xf32>
      %24 = tpu.reciprocal %23 {approx = true} : vector<8x1xf32> -> vector<8x1xf32>
      %c1_16 = arith.constant 1 : index
      %c0_17 = arith.constant 0 : index
      %c0_18 = arith.constant 0 : index
      %25 = vector.load %arg14[%c1_16, %c0_17, %c0_18] : memref<4x8x8xf32, #tpu.memory_space<vmem>>, vector<1x8x8xf32>
      %26 = vector.shape_cast %25 : vector<1x8x8xf32> to vector<8x8xf32>
      %27 = vector.broadcast %24 : vector<8x1xf32> to vector<8x8xf32>
      %28 = arith.mulf %26, %27 : vector<8x8xf32>
      %c0_19 = arith.constant 0 : index
      %c0_20 = arith.constant 0 : index
      %c1_21 = arith.constant 1 : index
      %c0_22 = arith.constant 0 : index
      %29 = vector.load %arg10[%c0_19, %c0_20, %c1_21, %c0_22] : memref<1x8x4x8xf32, #tpu.memory_space<vmem>>, vector<1x8x1x8xf32>
      %30 = vector.shape_cast %29 : vector<1x8x1x8xf32> to vector<8x8xf32>
      %31 = vector.shape_cast %28 : vector<8x8xf32> to vector<1x8x1x8xf32>
      tpu.vector_store %arg10[%c0_19, %c0_20, %c1_21, %c0_22], %31 {strides = array<i32>} : memref<1x8x4x8xf32, #tpu.memory_space<vmem>>, vector<1x8x1x8xf32>,
      %c2 = arith.constant 2 : index
      %c0_23 = arith.constant 0 : index
      %c0_24 = arith.constant 0 : index
      %32 = vector.load %arg13[%c2, %c0_23, %c0_24] : memref<4x8x1xf32, #tpu.memory_space<vmem>>, vector<1x8x1xf32>
      %33 = vector.shape_cast %32 : vector<1x8x1xf32> to vector<8x1xf32>
      %34 = tpu.reciprocal %33 {approx = true} : vector<8x1xf32> -> vector<8x1xf32>
      %c2_25 = arith.constant 2 : index
      %c0_26 = arith.constant 0 : index
      %c0_27 = arith.constant 0 : index
      %35 = vector.load %arg14[%c2_25, %c0_26, %c0_27] : memref<4x8x8xf32, #tpu.memory_space<vmem>>, vector<1x8x8xf32>
      %36 = vector.shape_cast %35 : vector<1x8x8xf32> to vector<8x8xf32>
      %37 = vector.broadcast %34 : vector<8x1xf32> to vector<8x8xf32>
      %38 = arith.mulf %36, %37 : vector<8x8xf32>
      %c0_28 = arith.constant 0 : index
      %c0_29 = arith.constant 0 : index
      %c2_30 = arith.constant 2 : index
      %c0_31 = arith.constant 0 : index
      %39 = vector.load %arg10[%c0_28, %c0_29, %c2_30, %c0_31] : memref<1x8x4x8xf32, #tpu.memory_space<vmem>>, vector<1x8x1x8xf32>
      %40 = vector.shape_cast %39 : vector<1x8x1x8xf32> to vector<8x8xf32>
      %41 = vector.shape_cast %38 : vector<8x8xf32> to vector<1x8x1x8xf32>
      tpu.vector_store %arg10[%c0_28, %c0_29, %c2_30, %c0_31], %41 {strides = array<i32>} : memref<1x8x4x8xf32, #tpu.memory_space<vmem>>, vector<1x8x1x8xf32>,
      %c3 = arith.constant 3 : index
      %c0_32 = arith.constant 0 : index
      %c0_33 = arith.constant 0 : index
      %42 = vector.load %arg13[%c3, %c0_32, %c0_33] : memref<4x8x1xf32, #tpu.memory_space<vmem>>, vector<1x8x1xf32>
      %43 = vector.shape_cast %42 : vector<1x8x1xf32> to vector<8x1xf32>
      %44 = tpu.reciprocal %43 {approx = true} : vector<8x1xf32> -> vector<8x1xf32>
      %c3_34 = arith.constant 3 : index
      %c0_35 = arith.constant 0 : index
      %c0_36 = arith.constant 0 : index
      %45 = vector.load %arg14[%c3_34, %c0_35, %c0_36] : memref<4x8x8xf32, #tpu.memory_space<vmem>>, vector<1x8x8xf32>
      %46 = vector.shape_cast %45 : vector<1x8x8xf32> to vector<8x8xf32>
      %47 = vector.broadcast %44 : vector<8x1xf32> to vector<8x8xf32>
      %48 = arith.mulf %46, %47 : vector<8x8xf32>
      %c0_37 = arith.constant 0 : index
      %c0_38 = arith.constant 0 : index
      %c3_39 = arith.constant 3 : index
      %c0_40 = arith.constant 0 : index
      %49 = vector.load %arg10[%c0_37, %c0_38, %c3_39, %c0_40] : memref<1x8x4x8xf32, #tpu.memory_space<vmem>>, vector<1x8x1x8xf32>
      %50 = vector.shape_cast %49 : vector<1x8x1x8xf32> to vector<8x8xf32>
      %51 = vector.shape_cast %48 : vector<8x8xf32> to vector<1x8x1x8xf32>
      tpu.vector_store %arg10[%c0_37, %c0_38, %c3_39, %c0_40], %51 {strides = array<i32>} : memref<1x8x4x8xf32, #tpu.memory_space<vmem>>, vector<1x8x1x8xf32>,
    } else {
    }
    return
  }
  func.func @transform_0(%arg0: i32, %arg1: i32, %arg2: i32) -> (i32, i32) {
    %c0_i32 = arith.constant 0 : i32
    %c0_i32_0 = arith.constant 0 : i32
    return %arg1, %c0_i32 : i32, i32
  }
  func.func @transform_1(%arg0: i32, %arg1: i32, %arg2: i32) -> (i32, i32) {
    %c0_i32 = arith.constant 0 : i32
    %c0_i32_0 = arith.constant 0 : i32
    return %arg1, %c0_i32 : i32, i32
  }
  func.func @transform_2(%arg0: i32, %arg1: i32, %arg2: i32) -> (i32, i32) {
    %c0_i32 = arith.constant 0 : i32
    %c0_i32_0 = arith.constant 0 : i32
    return %arg2, %c0_i32 : i32, i32
  }
  func.func @transform_3(%arg0: i32, %arg1: i32, %arg2: i32) -> (i32, i32) {
    %c0_i32 = arith.constant 0 : i32
    %c0_i32_0 = arith.constant 0 : i32
    return %arg2, %c0_i32 : i32, i32
  }
  func.func @transform_4(%arg0: i32, %arg1: i32, %arg2: i32) -> (i32, i32, i32, i32) {
    %c0_i32 = arith.constant 0 : i32
    %c0_i32_0 = arith.constant 0 : i32
    %c0_i32_1 = arith.constant 0 : i32
    return %arg0, %arg1, %c0_i32, %c0_i32_0 : i32, i32, i32, i32
  }
  func.func @transform_5(%arg0: i32, %arg1: i32, %arg2: i32) -> (i32, i32, i32, i32, i32) {
    %c0_i32 = arith.constant 0 : i32
    %c0_i32_0 = arith.constant 0 : i32
    %c0_i32_1 = arith.constant 0 : i32
    %c0_i32_2 = arith.constant 0 : i32
    return %arg0, %arg2, %c0_i32, %c0_i32_0, %c0_i32_1 : i32, i32, i32, i32, i32
  }
  func.func @transform_6(%arg0: i32, %arg1: i32, %arg2: i32) -> (i32, i32, i32, i32, i32) {
    %c1_i32 = arith.constant 1 : i32
    %c0_i32 = arith.constant 0 : i32
    %c0_i32_0 = arith.constant 0 : i32
    %c0_i32_1 = arith.constant 0 : i32
    return %arg0, %arg2, %c1_i32, %c0_i32, %c0_i32_0 : i32, i32, i32, i32, i32
  }
  func.func @transform_7(%arg0: i32, %arg1: i32, %arg2: i32) -> (i32, i32, i32, i32) {
    %c0_i32 = arith.constant 0 : i32
    %c0_i32_0 = arith.constant 0 : i32
    %c0_i32_1 = arith.constant 0 : i32
    return %arg0, %arg1, %c0_i32, %c0_i32_0 : i32, i32, i32, i32
  }
}

</mosaic_0001>

<llo_original>
// kernel: mla_forward.7
$region0: #{mla_forward.7}
  #allocation0 [shape = 'u32[]', space=smem, size = 0x4, offset = 0x4, fixed_abs, tag = 'smem constant byte address 0x4 - core index']
  #allocation1 [shape = 'u32[144,128]{1,0:T(1,128)}', space=vmem, size = 0x12000, scoped, tag = 'internal scratch']
  #allocation2 [shape = 'f32[16,64]{1,0:T(8,128)}', space=vmem, size = 0x2000, scoped, tag = 'scratch operand']
  %s0 = inlined_call_operand.vmem [shape: f32[16,16], index: 0, kind: input, shape index: {}]
  %s1 = inlined_call_operand.vmem [shape: f32[16,64], index: 1, kind: input, shape index: {}]
  %s2 = inlined_call_operand.vmem [shape: f32[16,64], index: 2, kind: output, shape index: {}]
  %s3 = sld [smem:[#allocation0]]
  $region26: #{mla_forward.7} parent=0
    _
  %s5 = ssub.s32 1, %s3
  %s6 = scalar_select 0, %s5, %s3
  // Predicated region
  $region2: #{mla_forward.7} parent=0 // pred_check
    _
  $region3: #{mla_forward.7} parent=0 // pred_check_branch
    %8 = sbr.rel (0) target = $region5
  $region4: #{mla_forward.7} parent=0 // pred_region
    _
  $region5: #{mla_forward.7} parent=0 // pred_fallthru
    _
  // Predicated region
  $region6: #{mla_forward.7} parent=0 // pred_check
    _
  $region7: #{mla_forward.7} parent=0 // pred_check_branch
    %10 = sbr.rel (0) target = $region9
  $region8: #{mla_forward.7} parent=0 // pred_region
    _
  $region9: #{mla_forward.7} parent=0 // pred_fallthru
    _
  %p11 = scmp.eq.s32.totalorder 0, 0
  // Predicated region
  $region10: #{mla_forward.7} parent=0 // pred_check
    %p12 = pneg %p11
  $region11: #{mla_forward.7} parent=0 // pred_check_branch
    %14 = sbr.rel (%p12) target = $region13
  $region12: #{mla_forward.7} parent=0 // pred_region
    %vm15 = vcmask 523264
    %16 = vst.msk [vmem:[#allocation2] sm:$0xff] %vm15, 0.0
    %17 = vst.msk [vmem:[#allocation2 + $0x8] sm:$0xff] %vm15, 0.0
  $region13: #{mla_forward.7} parent=0 // pred_fallthru
    _
  %v18 = vld [vmem:[#allocation2] sm:$0xff]
  %v19 = vld [vmem:[#allocation2 + $0x8] sm:$0xff]
  %v20 = vld [vmem:[%s0] sm:$0xff]
  %v21 = vld [vmem:[%s0 + $0x8] sm:$0xff]
  %v22 = vld [vmem:[%s1] sm:$0xff]
  %v23 = vld [vmem:[%s1 + $0x8] sm:$0xff]
  %vm24 = vcmask 130048
  %v26 = vsel %vm24, %v20, 0
  %v29 = vsel %vm24, %v21, 0
  %31 = vmatprep.subr.mxu0 0.0
  %32 = vmatpush1.msra.mxu0 %v22
  %33 = vmatprep.subr.mxu0 0.0
  %34 = vmatpush1.msra.mxu0 %v23
  %35 = vmatprep.subr.mxu0 0.0
  %36 = vmatpush1.msra.mxu0 0.0
  %37 = vmatprep.subr.mxu0 0.0
  %38 = vmatpush1.msra.mxu0 0.0
  %39 = vmatprep.subr.mxu0 0.0
  %40 = vmatpush1.msra.mxu0 0.0
  %41 = vmatprep.subr.mxu0 0.0
  %42 = vmatpush1.msra.mxu0 0.0
  %43 = vmatprep.subr.mxu0 0.0
  %44 = vmatpush1.msra.mxu0 0.0
  %45 = vmatprep.subr.mxu0 0.0
  %46 = vmatpush1.msra.mxu0 0.0
  %47 = vmatprep.subr.mxu0 0.0
  %48 = vmatpush1.msra.mxu0 0.0
  %49 = vmatprep.subr.mxu0 0.0
  %50 = vmatpush1.msra.mxu0 0.0
  %51 = vmatprep.subr.mxu0 0.0
  %52 = vmatpush1.msra.mxu0 0.0
  %53 = vmatprep.subr.mxu0 0.0
  %54 = vmatpush1.msra.mxu0 0.0
  %55 = vmatprep.subr.mxu0 0.0
  %56 = vmatpush1.msra.mxu0 0.0
  %57 = vmatprep.subr.mxu0 0.0
  %58 = vmatpush1.msra.mxu0 0.0
  %59 = vmatprep.subr.mxu0 0.0
  %60 = vmatpush1.msra.mxu0 0.0
  %61 = vmatprep.subr.mxu0 0.0
  %62 = vmatpush1.msra.mxu0 0.0
  %63 = vmatprep.subr.mxu0 0.0
  %64 = vmatpush1.msra.mxu0 0.0
  %65 = vmatprep.subr.mxu0 0.0
  %66 = vmatpush1.msra.mxu0 0.0
  %67 = vmatprep.subr.mxu0 0.0
  %68 = vmatpush1.msra.mxu0 0.0
  %69 = vmatprep.subr.mxu0 0.0
  %70 = vmatpush1.msra.mxu0 0.0
  %71 = vmatprep.subr.mxu0 0.0
  %72 = vmatpush1.msra.mxu0 0.0
  %73 = vmatprep.subr.mxu0 0.0
  %74 = vmatpush1.msra.mxu0 0.0
  %75 = vmatprep.subr.mxu0 0.0
  %76 = vmatpush1.msra.mxu0 0.0
  %77 = vmatprep.subr.mxu0 0.0
  %78 = vmatpush1.msra.mxu0 0.0
  %79 = vmatprep.subr.mxu0 0.0
  %80 = vmatpush1.msra.mxu0 0.0
  %81 = vmatprep.subr.mxu0 0.0
  %82 = vmatpush1.msra.mxu0 0.0
  %83 = vmatprep.subr.mxu0 0.0
  %84 = vmatpush1.msra.mxu0 0.0
  %85 = vmatprep.subr.mxu0 0.0
  %86 = vmatpush1.msra.mxu0 0.0
  %87 = vmatprep.subr.mxu0 0.0
  %88 = vmatpush1.msra.mxu0 0.0
  %89 = vmatprep.subr.mxu0 0.0
  %90 = vmatpush1.msra.mxu0 0.0
  %91 = vmatprep.subr.mxu0 0.0
  %92 = vmatpush1.msra.mxu0 0.0
  %93 = vmatprep.subr.mxu0 0.0
  %94 = vmatpush1.msra.mxu0 0.0
  %95 = vmatprep.mubr.f32.mxu0 0.0
  %96 = vmatmul.mubr.f32.gmra.mrb[0].mxu0 %v26
  %v97 = vpop.f32.mrb[0].mxu0
  %v98 = vadd.f32 0.0, %v97
  %v99 = vpop.f32.mrb[0].mxu0
  %100 = vmatprep.mubr.f32.mxu0 0.0
  %101 = vmatmul.mubr.f32.gmra.mrb[0].mxu0 %v29
  %v102 = vpop.f32.mrb[0].mxu0
  %v103 = vadd.f32 0.0, %v102
  %v104 = vpop.f32.mrb[0].mxu0
  %105 = vdwg.mxu0
  %v106 = vadd.f32 %v18, %v98
  %v107 = vadd.f32 %v19, %v103
  %vm108 = vcmask 523264
  %109 = vst.msk [vmem:[#allocation2] sm:$0xff] %vm108, %v106
  %110 = vst.msk [vmem:[#allocation2 + $0x8] sm:$0xff] %vm108, %v107
  // Predicated region
  $region14: #{mla_forward.7} parent=0 // pred_check
    %p111 = pneg %p11
  $region15: #{mla_forward.7} parent=0 // pred_check_branch
    %113 = sbr.rel (%p111) target = $region17
  $region16: #{mla_forward.7} parent=0 // pred_region
    %v114 = vld [vmem:[#allocation2] sm:$0xff]
    %v115 = vld [vmem:[#allocation2 + $0x8] sm:$0xff]
    %116 = vst.msk [vmem:[%s2] sm:$0xff] %vm108, %v114
    %117 = vst.msk [vmem:[%s2 + $0x8] sm:$0xff] %vm108, %v115
  $region17: #{mla_forward.7} parent=0 // pred_fallthru
    _
  // Predicated region
  $region18: #{mla_forward.7} parent=0 // pred_check
    _
  $region19: #{mla_forward.7} parent=0 // pred_check_branch
    %119 = sbr.rel (0) target = $region21
  $region20: #{mla_forward.7} parent=0 // pred_region
    _
  $region21: #{mla_forward.7} parent=0 // pred_fallthru
    _
  // Predicated region
  $region22: #{mla_forward.7} parent=0 // pred_check
    _
  $region23: #{mla_forward.7} parent=0 // pred_check_branch
    %121 = sbr.rel (0) target = $region25
  $region24: #{mla_forward.7} parent=0 // pred_region
    _
  $region25: #{mla_forward.7} parent=0 // pred_fallthru
    _

// kernel: mla_forward.6
$region0: #{mla_forward.6}
  #allocation0 [shape = 'u32[]', space=smem, size = 0x4, offset = 0x4, fixed_abs, tag = 'smem constant byte address 0x4 - core index']
  #allocation1 [shape = 'u32[144,128]{1,0:T(1,128)}', space=vmem, size = 0x12000, scoped, tag = 'internal scratch']
  #allocation2 [shape = 'f32[16,16]{1,0:T(8,128)}', space=vmem, size = 0x2000, scoped, tag = 'scratch operand']
  %s0 = inlined_call_operand.vmem [shape: f32[16,32], index: 0, kind: input, shape index: {}]
  %s1 = inlined_call_operand.vmem [shape: f32[32,16], index: 1, kind: input, shape index: {}]
  %s2 = inlined_call_operand.vmem [shape: f32[1,16], index: 2, kind: input, shape index: {}]
  %s3 = inlined_call_operand.vmem [shape: f32[1,16], index: 3, kind: input, shape index: {}]
  %s4 = inlined_call_operand.vmem [shape: f32[16,16], index: 4, kind: output, shape index: {}]
  %s5 = sld [smem:[#allocation0]]
  $region34: #{mla_forward.6} parent=0
    _
  %s7 = ssub.s32 1, %s5
  %s8 = scalar_select 0, %s7, %s5
  // Predicated region
  $region2: #{mla_forward.6} parent=0 // pred_check
    _
  $region3: #{mla_forward.6} parent=0 // pred_check_branch
    %10 = sbr.rel (0) target = $region5
  $region4: #{mla_forward.6} parent=0 // pred_region
    _
  $region5: #{mla_forward.6} parent=0 // pred_fallthru
    _
  // Predicated region
  $region6: #{mla_forward.6} parent=0 // pred_check
    _
  $region7: #{mla_forward.6} parent=0 // pred_check_branch
    %12 = sbr.rel (0) target = $region9
  $region8: #{mla_forward.6} parent=0 // pred_region
    _
  $region9: #{mla_forward.6} parent=0 // pred_fallthru
    _
  // Predicated region
  $region10: #{mla_forward.6} parent=0 // pred_check
    _
  $region11: #{mla_forward.6} parent=0 // pred_check_branch
    %14 = sbr.rel (0) target = $region13
  $region12: #{mla_forward.6} parent=0 // pred_region
    _
  $region13: #{mla_forward.6} parent=0 // pred_fallthru
    _
  // Predicated region
  $region14: #{mla_forward.6} parent=0 // pred_check
    _
  $region15: #{mla_forward.6} parent=0 // pred_check_branch
    %16 = sbr.rel (0) target = $region17
  $region16: #{mla_forward.6} parent=0 // pred_region
    _
  $region17: #{mla_forward.6} parent=0 // pred_fallthru
    _
  %p17 = scmp.eq.s32.totalorder 0, 0
  // Predicated region
  $region18: #{mla_forward.6} parent=0 // pred_check
    %p18 = pneg %p17
  $region19: #{mla_forward.6} parent=0 // pred_check_branch
    %20 = sbr.rel (%p18) target = $region21
  $region20: #{mla_forward.6} parent=0 // pred_region
    %vm21 = vcmask 130048
    %22 = vst.msk [vmem:[#allocation2] sm:$0xff] %vm21, 0.0
    %23 = vst.msk [vmem:[#allocation2 + $0x8] sm:$0xff] %vm21, 0.0
  $region21: #{mla_forward.6} parent=0 // pred_fallthru
    _
  %v24 = vld [vmem:[#allocation2] sm:$0xff]
  %v25 = vld [vmem:[#allocation2 + $0x8] sm:$0xff]
  %v26 = vld [vmem:[%s0] sm:$0xff]
  %v27 = vld [vmem:[%s0 + $0x8] sm:$0xff]
  %v28 = vld [vmem:[%s1] sm:$0xff]
  %v29 = vld [vmem:[%s1 + $0x8] sm:$0xff]
  %v30 = vld [vmem:[%s1 + $0x10] sm:$0xff]
  %v31 = vld [vmem:[%s1 + $0x18] sm:$0xff]
  %vm32 = vcmask 261120
  %v34 = vsel %vm32, %v26, 0
  %v37 = vsel %vm32, %v27, 0
  %39 = vmatprep.subr.mxu0 0.0
  %40 = vmatpush1.msra.mxu0 %v28
  %41 = vmatprep.subr.mxu0 0.0
  %42 = vmatpush1.msra.mxu0 %v29
  %43 = vmatprep.subr.mxu0 0.0
  %44 = vmatpush1.msra.mxu0 %v30
  %45 = vmatprep.subr.mxu0 0.0
  %46 = vmatpush1.msra.mxu0 %v31
  %47 = vmatprep.subr.mxu0 0.0
  %48 = vmatpush1.msra.mxu0 0.0
  %49 = vmatprep.subr.mxu0 0.0
  %50 = vmatpush1.msra.mxu0 0.0
  %51 = vmatprep.subr.mxu0 0.0
  %52 = vmatpush1.msra.mxu0 0.0
  %53 = vmatprep.subr.mxu0 0.0
  %54 = vmatpush1.msra.mxu0 0.0
  %55 = vmatprep.subr.mxu0 0.0
  %56 = vmatpush1.msra.mxu0 0.0
  %57 = vmatprep.subr.mxu0 0.0
  %58 = vmatpush1.msra.mxu0 0.0
  %59 = vmatprep.subr.mxu0 0.0
  %60 = vmatpush1.msra.mxu0 0.0
  %61 = vmatprep.subr.mxu0 0.0
  %62 = vmatpush1.msra.mxu0 0.0
  %63 = vmatprep.subr.mxu0 0.0
  %64 = vmatpush1.msra.mxu0 0.0
  %65 = vmatprep.subr.mxu0 0.0
  %66 = vmatpush1.msra.mxu0 0.0
  %67 = vmatprep.subr.mxu0 0.0
  %68 = vmatpush1.msra.mxu0 0.0
  %69 = vmatprep.subr.mxu0 0.0
  %70 = vmatpush1.msra.mxu0 0.0
  %71 = vmatprep.subr.mxu0 0.0
  %72 = vmatpush1.msra.mxu0 0.0
  %73 = vmatprep.subr.mxu0 0.0
  %74 = vmatpush1.msra.mxu0 0.0
  %75 = vmatprep.subr.mxu0 0.0
  %76 = vmatpush1.msra.mxu0 0.0
  %77 = vmatprep.subr.mxu0 0.0
  %78 = vmatpush1.msra.mxu0 0.0
  %79 = vmatprep.subr.mxu0 0.0
  %80 = vmatpush1.msra.mxu0 0.0
  %81 = vmatprep.subr.mxu0 0.0
  %82 = vmatpush1.msra.mxu0 0.0
  %83 = vmatprep.subr.mxu0 0.0
  %84 = vmatpush1.msra.mxu0 0.0
  %85 = vmatprep.subr.mxu0 0.0
  %86 = vmatpush1.msra.mxu0 0.0
  %87 = vmatprep.subr.mxu0 0.0
  %88 = vmatpush1.msra.mxu0 0.0
  %89 = vmatprep.subr.mxu0 0.0
  %90 = vmatpush1.msra.mxu0 0.0
  %91 = vmatprep.subr.mxu0 0.0
  %92 = vmatpush1.msra.mxu0 0.0
  %93 = vmatprep.subr.mxu0 0.0
  %94 = vmatpush1.msra.mxu0 0.0
  %95 = vmatprep.subr.mxu0 0.0
  %96 = vmatpush1.msra.mxu0 0.0
  %97 = vmatprep.subr.mxu0 0.0
  %98 = vmatpush1.msra.mxu0 0.0
  %99 = vmatprep.subr.mxu0 0.0
  %100 = vmatpush1.msra.mxu0 0.0
  %101 = vmatprep.subr.mxu0 0.0
  %102 = vmatpush1.msra.mxu0 0.0
  %103 = vmatprep.mubr.f32.mxu0 0.0
  %104 = vmatmul.mubr.f32.gmra.mrb[0].mxu0 %v34
  %v105 = vpop.f32.mrb[0].mxu0
  %v106 = vadd.f32 0.0, %v105
  %v107 = vpop.f32.mrb[0].mxu0
  %108 = vmatprep.mubr.f32.mxu0 0.0
  %109 = vmatmul.mubr.f32.gmra.mrb[0].mxu0 %v37
  %v110 = vpop.f32.mrb[0].mxu0
  %v111 = vadd.f32 0.0, %v110
  %v112 = vpop.f32.mrb[0].mxu0
  %113 = vdwg.mxu0
  %v114 = vadd.f32 %v24, %v106
  %v115 = vadd.f32 %v25, %v111
  %vm116 = vcmask 130048
  %117 = vst.msk [vmem:[#allocation2] sm:$0xff] %vm116, %v114
  %118 = vst.msk [vmem:[#allocation2 + $0x8] sm:$0xff] %vm116, %v115
  // Predicated region
  $region22: #{mla_forward.6} parent=0 // pred_check
    %p119 = pneg %p17
  $region23: #{mla_forward.6} parent=0 // pred_check_branch
    %121 = sbr.rel (%p119) target = $region25
  $region24: #{mla_forward.6} parent=0 // pred_region
    %v122 = vld [vmem:[#allocation2] sm:$0xff]
    %v123 = vld [vmem:[#allocation2 + $0x8] sm:$0xff]
    %v124 = vld [vmem:[%s2] sm:$0x1]
    %v126 = vlaneseq
    %v127 = vshrl.u32 %v126, 7
    %v128 = vsub.s32 0, %v127
    %v129 = vrot.slane %v124, %v128
    %v131 = vadd.f32 %v122, %v129
    %v132 = vadd.f32 %v123, %v129
    %v133 = vmul.f32 %v131, %v131
    %v134 = vmul.f32 %v132, %v132
    %v135 = vsel %vm116, %v133, 0.0
    %136 = vadd.xlane.f32.xlu0 %v135
    %v137 = vpop.xlane.xlu0 %136
    %v138 = vsel %vm116, %v134, 0.0
    %139 = vadd.xlane.f32.xlu0 %v138
    %v140 = vpop.xlane.xlu0 %139
    %v141 = vrcp.pop 16.0
    %v142 = vmul.f32 %v137, %v141
    %v143 = vmul.f32 %v140, %v141
    %v144 = vadd.f32 %v142, 1e-06
    %v145 = vadd.f32 %v143, 1e-06
    %v146 = vrsqrt.pop %v144
    %v147 = vrsqrt.pop %v145
    %v148 = vmul.f32 %v131, %v146
    %v149 = vmul.f32 %v132, %v147
    %v150 = vld [vmem:[%s3] sm:$0x1]
    %v152 = vlaneseq
    %v153 = vshrl.u32 %v152, 7
    %v154 = vsub.s32 0, %v153
    %v155 = vrot.slane %v150, %v154
    %v157 = vmul.f32 %v148, %v155
    %v158 = vmul.f32 %v149, %v155
    %159 = vst.msk [vmem:[%s4] sm:$0xff] %vm116, %v157
    %160 = vst.msk [vmem:[%s4 + $0x8] sm:$0xff] %vm116, %v158
  $region25: #{mla_forward.6} parent=0 // pred_fallthru
    _
  // Predicated region
  $region26: #{mla_forward.6} parent=0 // pred_check
    _
  $region27: #{mla_forward.6} parent=0 // pred_check_branch
    %162 = sbr.rel (0) target = $region29
  $region28: #{mla_forward.6} parent=0 // pred_region
    _
  $region29: #{mla_forward.6} parent=0 // pred_fallthru
    _
  // Predicated region
  $region30: #{mla_forward.6} parent=0 // pred_check
    _
  $region31: #{mla_forward.6} parent=0 // pred_check_branch
    %164 = sbr.rel (0) target = $region33
  $region32: #{mla_forward.6} parent=0 // pred_region
    _
  $region33: #{mla_forward.6} parent=0 // pred_fallthru
    _

// kernel: mla_forward.9
$region0: #{mla_forward.9}
  #allocation0 [shape = 'u32[]', space=smem, size = 0x4, offset = 0x4, fixed_abs, tag = 'smem constant byte address 0x4 - core index']
  #allocation1 [shape = 'u32[144,128]{1,0:T(1,128)}', space=vmem, size = 0x12000, scoped, tag = 'internal scratch']
  #allocation2 [shape = 'f32[16,32]{1,0:T(8,128)}', space=vmem, size = 0x2000, scoped, tag = 'scratch operand']
  %s0 = inlined_call_operand.vmem [shape: f32[16,16], index: 0, kind: input, shape index: {}]
  %s1 = inlined_call_operand.vmem [shape: f32[16,32], index: 1, kind: input, shape index: {}]
  %s2 = inlined_call_operand.vmem [shape: f32[16,32], index: 2, kind: output, shape index: {}]
  %s3 = sld [smem:[#allocation0]]
  $region26: #{mla_forward.9} parent=0
    _
  %s5 = ssub.s32 1, %s3
  %s6 = scalar_select 0, %s5, %s3
  // Predicated region
  $region2: #{mla_forward.9} parent=0 // pred_check
    _
  $region3: #{mla_forward.9} parent=0 // pred_check_branch
    %8 = sbr.rel (0) target = $region5
  $region4: #{mla_forward.9} parent=0 // pred_region
    _
  $region5: #{mla_forward.9} parent=0 // pred_fallthru
    _
  // Predicated region
  $region6: #{mla_forward.9} parent=0 // pred_check
    _
  $region7: #{mla_forward.9} parent=0 // pred_check_branch
    %10 = sbr.rel (0) target = $region9
  $region8: #{mla_forward.9} parent=0 // pred_region
    _
  $region9: #{mla_forward.9} parent=0 // pred_fallthru
    _
  %p11 = scmp.eq.s32.totalorder 0, 0
  // Predicated region
  $region10: #{mla_forward.9} parent=0 // pred_check
    %p12 = pneg %p11
  $region11: #{mla_forward.9} parent=0 // pred_check_branch
    %14 = sbr.rel (%p12) target = $region13
  $region12: #{mla_forward.9} parent=0 // pred_region
    %vm15 = vcmask 261120
    %16 = vst.msk [vmem:[#allocation2] sm:$0xff] %vm15, 0.0
    %17 = vst.msk [vmem:[#allocation2 + $0x8] sm:$0xff] %vm15, 0.0
  $region13: #{mla_forward.9} parent=0 // pred_fallthru
    _
  %v18 = vld [vmem:[#allocation2] sm:$0xff]
  %v19 = vld [vmem:[#allocation2 + $0x8] sm:$0xff]
  %v20 = vld [vmem:[%s0] sm:$0xff]
  %v21 = vld [vmem:[%s0 + $0x8] sm:$0xff]
  %v22 = vld [vmem:[%s1] sm:$0xff]
  %v23 = vld [vmem:[%s1 + $0x8] sm:$0xff]
  %vm24 = vcmask 130048
  %v26 = vsel %vm24, %v20, 0
  %v29 = vsel %vm24, %v21, 0
  %31 = vmatprep.subr.mxu0 0.0
  %32 = vmatpush1.msra.mxu0 %v22
  %33 = vmatprep.subr.mxu0 0.0
  %34 = vmatpush1.msra.mxu0 %v23
  %35 = vmatprep.subr.mxu0 0.0
  %36 = vmatpush1.msra.mxu0 0.0
  %37 = vmatprep.subr.mxu0 0.0
  %38 = vmatpush1.msra.mxu0 0.0
  %39 = vmatprep.subr.mxu0 0.0
  %40 = vmatpush1.msra.mxu0 0.0
  %41 = vmatprep.subr.mxu0 0.0
  %42 = vmatpush1.msra.mxu0 0.0
  %43 = vmatprep.subr.mxu0 0.0
  %44 = vmatpush1.msra.mxu0 0.0
  %45 = vmatprep.subr.mxu0 0.0
  %46 = vmatpush1.msra.mxu0 0.0
  %47 = vmatprep.subr.mxu0 0.0
  %48 = vmatpush1.msra.mxu0 0.0
  %49 = vmatprep.subr.mxu0 0.0
  %50 = vmatpush1.msra.mxu0 0.0
  %51 = vmatprep.subr.mxu0 0.0
  %52 = vmatpush1.msra.mxu0 0.0
  %53 = vmatprep.subr.mxu0 0.0
  %54 = vmatpush1.msra.mxu0 0.0
  %55 = vmatprep.subr.mxu0 0.0
  %56 = vmatpush1.msra.mxu0 0.0
  %57 = vmatprep.subr.mxu0 0.0
  %58 = vmatpush1.msra.mxu0 0.0
  %59 = vmatprep.subr.mxu0 0.0
  %60 = vmatpush1.msra.mxu0 0.0
  %61 = vmatprep.subr.mxu0 0.0
  %62 = vmatpush1.msra.mxu0 0.0
  %63 = vmatprep.subr.mxu0 0.0
  %64 = vmatpush1.msra.mxu0 0.0
  %65 = vmatprep.subr.mxu0 0.0
  %66 = vmatpush1.msra.mxu0 0.0
  %67 = vmatprep.subr.mxu0 0.0
  %68 = vmatpush1.msra.mxu0 0.0
  %69 = vmatprep.subr.mxu0 0.0
  %70 = vmatpush1.msra.mxu0 0.0
  %71 = vmatprep.subr.mxu0 0.0
  %72 = vmatpush1.msra.mxu0 0.0
  %73 = vmatprep.subr.mxu0 0.0
  %74 = vmatpush1.msra.mxu0 0.0
  %75 = vmatprep.subr.mxu0 0.0
  %76 = vmatpush1.msra.mxu0 0.0
  %77 = vmatprep.subr.mxu0 0.0
  %78 = vmatpush1.msra.mxu0 0.0
  %79 = vmatprep.subr.mxu0 0.0
  %80 = vmatpush1.msra.mxu0 0.0
  %81 = vmatprep.subr.mxu0 0.0
  %82 = vmatpush1.msra.mxu0 0.0
  %83 = vmatprep.subr.mxu0 0.0
  %84 = vmatpush1.msra.mxu0 0.0
  %85 = vmatprep.subr.mxu0 0.0
  %86 = vmatpush1.msra.mxu0 0.0
  %87 = vmatprep.subr.mxu0 0.0
  %88 = vmatpush1.msra.mxu0 0.0
  %89 = vmatprep.subr.mxu0 0.0
  %90 = vmatpush1.msra.mxu0 0.0
  %91 = vmatprep.subr.mxu0 0.0
  %92 = vmatpush1.msra.mxu0 0.0
  %93 = vmatprep.subr.mxu0 0.0
  %94 = vmatpush1.msra.mxu0 0.0
  %95 = vmatprep.mubr.f32.mxu0 0.0
  %96 = vmatmul.mubr.f32.gmra.mrb[0].mxu0 %v26
  %v97 = vpop.f32.mrb[0].mxu0
  %v98 = vadd.f32 0.0, %v97
  %v99 = vpop.f32.mrb[0].mxu0
  %100 = vmatprep.mubr.f32.mxu0 0.0
  %101 = vmatmul.mubr.f32.gmra.mrb[0].mxu0 %v29
  %v102 = vpop.f32.mrb[0].mxu0
  %v103 = vadd.f32 0.0, %v102
  %v104 = vpop.f32.mrb[0].mxu0
  %105 = vdwg.mxu0
  %v106 = vadd.f32 %v18, %v98
  %v107 = vadd.f32 %v19, %v103
  %vm108 = vcmask 261120
  %109 = vst.msk [vmem:[#allocation2] sm:$0xff] %vm108, %v106
  %110 = vst.msk [vmem:[#allocation2 + $0x8] sm:$0xff] %vm108, %v107
  // Predicated region
  $region14: #{mla_forward.9} parent=0 // pred_check
    %p111 = pneg %p11
  $region15: #{mla_forward.9} parent=0 // pred_check_branch
    %113 = sbr.rel (%p111) target = $region17
  $region16: #{mla_forward.9} parent=0 // pred_region
    %v114 = vld [vmem:[#allocation2] sm:$0xff]
    %v115 = vld [vmem:[#allocation2 + $0x8] sm:$0xff]
    %116 = vst.msk [vmem:[%s2] sm:$0xff] %vm108, %v114
    %117 = vst.msk [vmem:[%s2 + $0x8] sm:$0xff] %vm108, %v115
  $region17: #{mla_forward.9} parent=0 // pred_fallthru
    _
  // Predicated region
  $region18: #{mla_forward.9} parent=0 // pred_check
    _
  $region19: #{mla_forward.9} parent=0 // pred_check_branch
    %119 = sbr.rel (0) target = $region21
  $region20: #{mla_forward.9} parent=0 // pred_region
    _
  $region21: #{mla_forward.9} parent=0 // pred_fallthru
    _
  // Predicated region
  $region22: #{mla_forward.9} parent=0 // pred_check
    _
  $region23: #{mla_forward.9} parent=0 // pred_check_branch
    %121 = sbr.rel (0) target = $region25
  $region24: #{mla_forward.9} parent=0 // pred_region
    _
  $region25: #{mla_forward.9} parent=0 // pred_fallthru
    _

// kernel: mla_forward.8
$region0: #{mla_forward.8}
  #allocation0 [shape = 'u32[]', space=smem, size = 0x4, offset = 0x4, fixed_abs, tag = 'smem constant byte address 0x4 - core index']
  #allocation1 [shape = 'u32[144,128]{1,0:T(1,128)}', space=vmem, size = 0x12000, scoped, tag = 'internal scratch']
  #allocation2 [shape = 'f32[16,16]{1,0:T(8,128)}', space=vmem, size = 0x2000, scoped, tag = 'scratch operand']
  %s0 = inlined_call_operand.vmem [shape: f32[16,32], index: 0, kind: input, shape index: {}]
  %s1 = inlined_call_operand.vmem [shape: f32[32,16], index: 1, kind: input, shape index: {}]
  %s2 = inlined_call_operand.vmem [shape: f32[1,16], index: 2, kind: input, shape index: {}]
  %s3 = inlined_call_operand.vmem [shape: f32[16,16], index: 3, kind: output, shape index: {}]
  %s4 = sld [smem:[#allocation0]]
  $region30: #{mla_forward.8} parent=0
    _
  %s6 = ssub.s32 1, %s4
  %s7 = scalar_select 0, %s6, %s4
  // Predicated region
  $region2: #{mla_forward.8} parent=0 // pred_check
    _
  $region3: #{mla_forward.8} parent=0 // pred_check_branch
    %9 = sbr.rel (0) target = $region5
  $region4: #{mla_forward.8} parent=0 // pred_region
    _
  $region5: #{mla_forward.8} parent=0 // pred_fallthru
    _
  // Predicated region
  $region6: #{mla_forward.8} parent=0 // pred_check
    _
  $region7: #{mla_forward.8} parent=0 // pred_check_branch
    %11 = sbr.rel (0) target = $region9
  $region8: #{mla_forward.8} parent=0 // pred_region
    _
  $region9: #{mla_forward.8} parent=0 // pred_fallthru
    _
  // Predicated region
  $region10: #{mla_forward.8} parent=0 // pred_check
    _
  $region11: #{mla_forward.8} parent=0 // pred_check_branch
    %13 = sbr.rel (0) target = $region13
  $region12: #{mla_forward.8} parent=0 // pred_region
    _
  $region13: #{mla_forward.8} parent=0 // pred_fallthru
    _
  %p14 = scmp.eq.s32.totalorder 0, 0
  // Predicated region
  $region14: #{mla_forward.8} parent=0 // pred_check
    %p15 = pneg %p14
  $region15: #{mla_forward.8} parent=0 // pred_check_branch
    %17 = sbr.rel (%p15) target = $region17
  $region16: #{mla_forward.8} parent=0 // pred_region
    %vm18 = vcmask 130048
    %19 = vst.msk [vmem:[#allocation2] sm:$0xff] %vm18, 0.0
    %20 = vst.msk [vmem:[#allocation2 + $0x8] sm:$0xff] %vm18, 0.0
  $region17: #{mla_forward.8} parent=0 // pred_fallthru
    _
  %v21 = vld [vmem:[#allocation2] sm:$0xff]
  %v22 = vld [vmem:[#allocation2 + $0x8] sm:$0xff]
  %v23 = vld [vmem:[%s0] sm:$0xff]
  %v24 = vld [vmem:[%s0 + $0x8] sm:$0xff]
  %v25 = vld [vmem:[%s1] sm:$0xff]
  %v26 = vld [vmem:[%s1 + $0x8] sm:$0xff]
  %v27 = vld [vmem:[%s1 + $0x10] sm:$0xff]
  %v28 = vld [vmem:[%s1 + $0x18] sm:$0xff]
  %vm29 = vcmask 261120
  %v31 = vsel %vm29, %v23, 0
  %v34 = vsel %vm29, %v24, 0
  %36 = vmatprep.subr.mxu0 0.0
  %37 = vmatpush1.msra.mxu0 %v25
  %38 = vmatprep.subr.mxu0 0.0
  %39 = vmatpush1.msra.mxu0 %v26
  %40 = vmatprep.subr.mxu0 0.0
  %41 = vmatpush1.msra.mxu0 %v27
  %42 = vmatprep.subr.mxu0 0.0
  %43 = vmatpush1.msra.mxu0 %v28
  %44 = vmatprep.subr.mxu0 0.0
  %45 = vmatpush1.msra.mxu0 0.0
  %46 = vmatprep.subr.mxu0 0.0
  %47 = vmatpush1.msra.mxu0 0.0
  %48 = vmatprep.subr.mxu0 0.0
  %49 = vmatpush1.msra.mxu0 0.0
  %50 = vmatprep.subr.mxu0 0.0
  %51 = vmatpush1.msra.mxu0 0.0
  %52 = vmatprep.subr.mxu0 0.0
  %53 = vmatpush1.msra.mxu0 0.0
  %54 = vmatprep.subr.mxu0 0.0
  %55 = vmatpush1.msra.mxu0 0.0
  %56 = vmatprep.subr.mxu0 0.0
  %57 = vmatpush1.msra.mxu0 0.0
  %58 = vmatprep.subr.mxu0 0.0
  %59 = vmatpush1.msra.mxu0 0.0
  %60 = vmatprep.subr.mxu0 0.0
  %61 = vmatpush1.msra.mxu0 0.0
  %62 = vmatprep.subr.mxu0 0.0
  %63 = vmatpush1.msra.mxu0 0.0
  %64 = vmatprep.subr.mxu0 0.0
  %65 = vmatpush1.msra.mxu0 0.0
  %66 = vmatprep.subr.mxu0 0.0
  %67 = vmatpush1.msra.mxu0 0.0
  %68 = vmatprep.subr.mxu0 0.0
  %69 = vmatpush1.msra.mxu0 0.0
  %70 = vmatprep.subr.mxu0 0.0
  %71 = vmatpush1.msra.mxu0 0.0
  %72 = vmatprep.subr.mxu0 0.0
  %73 = vmatpush1.msra.mxu0 0.0
  %74 = vmatprep.subr.mxu0 0.0
  %75 = vmatpush1.msra.mxu0 0.0
  %76 = vmatprep.subr.mxu0 0.0
  %77 = vmatpush1.msra.mxu0 0.0
  %78 = vmatprep.subr.mxu0 0.0
  %79 = vmatpush1.msra.mxu0 0.0
  %80 = vmatprep.subr.mxu0 0.0
  %81 = vmatpush1.msra.mxu0 0.0
  %82 = vmatprep.subr.mxu0 0.0
  %83 = vmatpush1.msra.mxu0 0.0
  %84 = vmatprep.subr.mxu0 0.0
  %85 = vmatpush1.msra.mxu0 0.0
  %86 = vmatprep.subr.mxu0 0.0
  %87 = vmatpush1.msra.mxu0 0.0
  %88 = vmatprep.subr.mxu0 0.0
  %89 = vmatpush1.msra.mxu0 0.0
  %90 = vmatprep.subr.mxu0 0.0
  %91 = vmatpush1.msra.mxu0 0.0
  %92 = vmatprep.subr.mxu0 0.0
  %93 = vmatpush1.msra.mxu0 0.0
  %94 = vmatprep.subr.mxu0 0.0
  %95 = vmatpush1.msra.mxu0 0.0
  %96 = vmatprep.subr.mxu0 0.0
  %97 = vmatpush1.msra.mxu0 0.0
  %98 = vmatprep.subr.mxu0 0.0
  %99 = vmatpush1.msra.mxu0 0.0
  %100 = vmatprep.mubr.f32.mxu0 0.0
  %101 = vmatmul.mubr.f32.gmra.mrb[0].mxu0 %v31
  %v102 = vpop.f32.mrb[0].mxu0
  %v103 = vadd.f32 0.0, %v102
  %v104 = vpop.f32.mrb[0].mxu0
  %105 = vmatprep.mubr.f32.mxu0 0.0
  %106 = vmatmul.mubr.f32.gmra.mrb[0].mxu0 %v34
  %v107 = vpop.f32.mrb[0].mxu0
  %v108 = vadd.f32 0.0, %v107
  %v109 = vpop.f32.mrb[0].mxu0
  %110 = vdwg.mxu0
  %v111 = vadd.f32 %v21, %v103
  %v112 = vadd.f32 %v22, %v108
  %vm113 = vcmask 130048
  %114 = vst.msk [vmem:[#allocation2] sm:$0xff] %vm113, %v111
  %115 = vst.msk [vmem:[#allocation2 + $0x8] sm:$0xff] %vm113, %v112
  // Predicated region
  $region18: #{mla_forward.8} parent=0 // pred_check
    %p116 = pneg %p14
  $region19: #{mla_forward.8} parent=0 // pred_check_branch
    %118 = sbr.rel (%p116) target = $region21
  $region20: #{mla_forward.8} parent=0 // pred_region
    %v119 = vld [vmem:[#allocation2] sm:$0xff]
    %v120 = vld [vmem:[#allocation2 + $0x8] sm:$0xff]
    %v121 = vld [vmem:[%s2] sm:$0x1]
    %v123 = vlaneseq
    %v124 = vshrl.u32 %v123, 7
    %v125 = vsub.s32 0, %v124
    %v126 = vrot.slane %v121, %v125
    %v128 = vadd.f32 %v119, %v126
    %v129 = vadd.f32 %v120, %v126
    %130 = vst.msk [vmem:[%s3] sm:$0xff] %vm113, %v128
    %131 = vst.msk [vmem:[%s3 + $0x8] sm:$0xff] %vm113, %v129
  $region21: #{mla_forward.8} parent=0 // pred_fallthru
    _
  // Predicated region
  $region22: #{mla_forward.8} parent=0 // pred_check
    _
  $region23: #{mla_forward.8} parent=0 // pred_check_branch
    %133 = sbr.rel (0) target = $region25
  $region24: #{mla_forward.8} parent=0 // pred_region
    _
  $region25: #{mla_forward.8} parent=0 // pred_fallthru
    _
  // Predicated region
  $region26: #{mla_forward.8} parent=0 // pred_check
    _
  $region27: #{mla_forward.8} parent=0 // pred_check_branch
    %135 = sbr.rel (0) target = $region29
  $region28: #{mla_forward.8} parent=0 // pred_region
    _
  $region29: #{mla_forward.8} parent=0 // pred_fallthru
    _

// kernel: mla_forward.11
$region0: #{mla_forward.11}
  #allocation0 [shape = 'u32[]', space=smem, size = 0x4, offset = 0x4, fixed_abs, tag = 'smem constant byte address 0x4 - core index']
  #allocation1 [shape = 'u32[144,128]{1,0:T(1,128)}', space=vmem, size = 0x12000, scoped, tag = 'internal scratch']
  #allocation2 [shape = 'f32[16,32]{1,0:T(8,128)}', space=vmem, size = 0x2000, scoped, tag = 'scratch operand']
  %s0 = inlined_call_operand.vmem [shape: f32[16,32], index: 0, kind: input, shape index: {}]
  %s1 = inlined_call_operand.vmem [shape: f32[32,32], index: 1, kind: input, shape index: {}]
  %s2 = inlined_call_operand.vmem [shape: f32[1,32], index: 2, kind: input, shape index: {}]
  %s3 = inlined_call_operand.hbm [shape: f32[16,32], index: 3, kind: output, shape index: {}]
  %s4 = sld [smem:[#allocation0]]
  $region30: #{mla_forward.11} parent=0
    _
  %s6 = ssub.s32 1, %s4
  %s7 = scalar_select 0, %s6, %s4
  $region1: #{mla_forward.11} parent=0
    #allocation3 [shape = 'u8[8192]{0}', space=vmem, size = 0x2000, scoped, tag = 'output window, operand 0, single buffered']
    #allocation4 [shape = 's32[1]{0}', space=sflag, size = 0x4, scoped, tag = 'scoped memory for mla_forward.11']
    %8 = vsyncpa [#allocation4], 0
    // Predicated region
    $region2: #{mla_forward.11} parent=1 // pred_check
      _
    $region3: #{mla_forward.11} parent=1 // pred_check_branch
      %10 = sbr.rel (0) target = $region5
    $region4: #{mla_forward.11} parent=1 // pred_region
      _
    $region5: #{mla_forward.11} parent=1 // pred_fallthru
      _
    // Predicated region
    $region6: #{mla_forward.11} parent=1 // pred_check
      _
    $region7: #{mla_forward.11} parent=1 // pred_check_branch
      %12 = sbr.rel (0) target = $region9
    $region8: #{mla_forward.11} parent=1 // pred_region
      _
    $region9: #{mla_forward.11} parent=1 // pred_fallthru
      _
    // Predicated region
    $region10: #{mla_forward.11} parent=1 // pred_check
      _
    $region11: #{mla_forward.11} parent=1 // pred_check_branch
      %14 = sbr.rel (0) target = $region13
    $region12: #{mla_forward.11} parent=1 // pred_region
      _
    $region13: #{mla_forward.11} parent=1 // pred_fallthru
      _
    %p15 = scmp.eq.s32.totalorder 0, 0
    // Predicated region
    $region14: #{mla_forward.11} parent=1 // pred_check
      %p16 = pneg %p15
    $region15: #{mla_forward.11} parent=1 // pred_check_branch
      %18 = sbr.rel (%p16) target = $region17
    $region16: #{mla_forward.11} parent=1 // pred_region
      %vm19 = vcmask 261120
      %20 = vst.msk [vmem:[#allocation2] sm:$0xff] %vm19, 0.0
      %21 = vst.msk [vmem:[#allocation2 + $0x8] sm:$0xff] %vm19, 0.0
    $region17: #{mla_forward.11} parent=1 // pred_fallthru
      _
    %v22 = vld [vmem:[#allocation2] sm:$0xff]
    %v23 = vld [vmem:[#allocation2 + $0x8] sm:$0xff]
    %v24 = vld [vmem:[%s0] sm:$0xff]
    %v25 = vld [vmem:[%s0 + $0x8] sm:$0xff]
    %v26 = vld [vmem:[%s1] sm:$0xff]
    %v27 = vld [vmem:[%s1 + $0x8] sm:$0xff]
    %v28 = vld [vmem:[%s1 + $0x10] sm:$0xff]
    %v29 = vld [vmem:[%s1 + $0x18] sm:$0xff]
    %vm30 = vcmask 261120
    %v32 = vsel %vm30, %v24, 0
    %v35 = vsel %vm30, %v25, 0
    %37 = vmatprep.subr.mxu0 0.0
    %38 = vmatpush1.msra.mxu0 %v26
    %39 = vmatprep.subr.mxu0 0.0
    %40 = vmatpush1.msra.mxu0 %v27
    %41 = vmatprep.subr.mxu0 0.0
    %42 = vmatpush1.msra.mxu0 %v28
    %43 = vmatprep.subr.mxu0 0.0
    %44 = vmatpush1.msra.mxu0 %v29
    %45 = vmatprep.subr.mxu0 0.0
    %46 = vmatpush1.msra.mxu0 0.0
    %47 = vmatprep.subr.mxu0 0.0
    %48 = vmatpush1.msra.mxu0 0.0
    %49 = vmatprep.subr.mxu0 0.0
    %50 = vmatpush1.msra.mxu0 0.0
    %51 = vmatprep.subr.mxu0 0.0
    %52 = vmatpush1.msra.mxu0 0.0
    %53 = vmatprep.subr.mxu0 0.0
    %54 = vmatpush1.msra.mxu0 0.0
    %55 = vmatprep.subr.mxu0 0.0
    %56 = vmatpush1.msra.mxu0 0.0
    %57 = vmatprep.subr.mxu0 0.0
    %58 = vmatpush1.msra.mxu0 0.0
    %59 = vmatprep.subr.mxu0 0.0
    %60 = vmatpush1.msra.mxu0 0.0
    %61 = vmatprep.subr.mxu0 0.0
    %62 = vmatpush1.msra.mxu0 0.0
    %63 = vmatprep.subr.mxu0 0.0
    %64 = vmatpush1.msra.mxu0 0.0
    %65 = vmatprep.subr.mxu0 0.0
    %66 = vmatpush1.msra.mxu0 0.0
    %67 = vmatprep.subr.mxu0 0.0
    %68 = vmatpush1.msra.mxu0 0.0
    %69 = vmatprep.subr.mxu0 0.0
    %70 = vmatpush1.msra.mxu0 0.0
    %71 = vmatprep.subr.mxu0 0.0
    %72 = vmatpush1.msra.mxu0 0.0
    %73 = vmatprep.subr.mxu0 0.0
    %74 = vmatpush1.msra.mxu0 0.0
    %75 = vmatprep.subr.mxu0 0.0
    %76 = vmatpush1.msra.mxu0 0.0
    %77 = vmatprep.subr.mxu0 0.0
    %78 = vmatpush1.msra.mxu0 0.0
    %79 = vmatprep.subr.mxu0 0.0
    %80 = vmatpush1.msra.mxu0 0.0
    %81 = vmatprep.subr.mxu0 0.0
    %82 = vmatpush1.msra.mxu0 0.0
    %83 = vmatprep.subr.mxu0 0.0
    %84 = vmatpush1.msra.mxu0 0.0
    %85 = vmatprep.subr.mxu0 0.0
    %86 = vmatpush1.msra.mxu0 0.0
    %87 = vmatprep.subr.mxu0 0.0
    %88 = vmatpush1.msra.mxu0 0.0
    %89 = vmatprep.subr.mxu0 0.0
    %90 = vmatpush1.msra.mxu0 0.0
    %91 = vmatprep.subr.mxu0 0.0
    %92 = vmatpush1.msra.mxu0 0.0
    %93 = vmatprep.subr.mxu0 0.0
    %94 = vmatpush1.msra.mxu0 0.0
    %95 = vmatprep.subr.mxu0 0.0
    %96 = vmatpush1.msra.mxu0 0.0
    %97 = vmatprep.subr.mxu0 0.0
    %98 = vmatpush1.msra.mxu0 0.0
    %99 = vmatprep.subr.mxu0 0.0
    %100 = vmatpush1.msra.mxu0 0.0
    %101 = vmatprep.mubr.f32.mxu0 0.0
    %102 = vmatmul.mubr.f32.gmra.mrb[0].mxu0 %v32
    %v103 = vpop.f32.mrb[0].mxu0
    %v104 = vadd.f32 0.0, %v103
    %v105 = vpop.f32.mrb[0].mxu0
    %106 = vmatprep.mubr.f32.mxu0 0.0
    %107 = vmatmul.mubr.f32.gmra.mrb[0].mxu0 %v35
    %v108 = vpop.f32.mrb[0].mxu0
    %v109 = vadd.f32 0.0, %v108
    %v110 = vpop.f32.mrb[0].mxu0
    %111 = vdwg.mxu0
    %v112 = vadd.f32 %v22, %v104
    %v113 = vadd.f32 %v23, %v109
    %114 = vst.msk [vmem:[#allocation2] sm:$0xff] %vm30, %v112
    %115 = vst.msk [vmem:[#allocation2 + $0x8] sm:$0xff] %vm30, %v113
    // Predicated region
    $region18: #{mla_forward.11} parent=1 // pred_check
      %p116 = pneg %p15
    $region19: #{mla_forward.11} parent=1 // pred_check_branch
      %118 = sbr.rel (%p116) target = $region21
    $region20: #{mla_forward.11} parent=1 // pred_region
      %v119 = vld [vmem:[#allocation2] sm:$0xff]
      %v120 = vld [vmem:[#allocation2 + $0x8] sm:$0xff]
      %v121 = vld [vmem:[%s2] sm:$0x1]
      %v123 = vlaneseq
      %v124 = vshrl.u32 %v123, 7
      %v125 = vsub.s32 0, %v124
      %v126 = vrot.slane %v121, %v125
      %v128 = vadd.f32 %v119, %v126
      %v129 = vadd.f32 %v120, %v126
      %130 = vst.msk [vmem:[#allocation3] sm:$0xff] %vm30, %v128
      %131 = vst.msk [vmem:[#allocation3 + $0x8] sm:$0xff] %vm30, %v129
    $region21: #{mla_forward.11} parent=1 // pred_fallthru
      _
    // Predicated region
    $region22: #{mla_forward.11} parent=1 // pred_check
      _
    $region23: #{mla_forward.11} parent=1 // pred_check_branch
      %133 = sbr.rel (0) target = $region25
    $region24: #{mla_forward.11} parent=1 // pred_region
      %s135 = ssub.s32 256, 256
      %136 = vsyncadd [#allocation4], %s135
      %s137 = sshll.u32 [#allocation3], 4
      %s138 = int_to_ptr.vmem [resolvable:$true] %s137
      %143 = dma.vmem_to_hbm [thread:$0]  %s138, 256, %s3, [#allocation4], 128, 128, 8
    $region25: #{mla_forward.11} parent=1 // pred_fallthru
      _
    // Predicated region
    $region26: #{mla_forward.11} parent=1 // pred_check
      _
    $region27: #{mla_forward.11} parent=1 // pred_check_branch
      %145 = sbr.rel (0) target = $region29
    $region28: #{mla_forward.11} parent=1 // pred_region
      %146 = dma.done [#allocation4], 256
    $region29: #{mla_forward.11} parent=1 // pred_fallthru
      _
    %147 = vsyncpa [#allocation4], 1

// kernel: mla_forward.10
$region0: #{mla_forward.10}
  #allocation0 [shape = 'u32[]', space=smem, size = 0x4, offset = 0x4, fixed_abs, tag = 'smem constant byte address 0x4 - core index']
  #allocation1 [shape = 'u32[144,128]{1,0:T(1,128)}', space=vmem, size = 0x12000, scoped, tag = 'internal scratch']
  #allocation2 [shape = 'f32[4,8,8]{2,1,0:T(8,128)}', space=vmem, size = 0x4000, scoped, tag = 'scratch operand']
  #allocation3 [shape = 'f32[4,8,1]{2,1,0:T(8,128)}', space=vmem, size = 0x4000, scoped, tag = 'scratch operand']
  #allocation4 [shape = 'f32[4,8,1]{2,1,0:T(8,128)}', space=vmem, size = 0x4000, scoped, tag = 'scratch operand']
  #allocation5 [shape = 'f32[4,8,8]{2,1,0:T(8,128)}', space=vmem, size = 0x4000, scoped, tag = 'scratch operand']
  %s0 = inlined_call_operand.vmem [shape: f32[8,8], index: 0, kind: input, shape index: {}]
  %s1 = inlined_call_operand.vmem [shape: f32[8,8], index: 1, kind: input, shape index: {}]
  %s2 = inlined_call_operand.vmem [shape: f32[8,8], index: 2, kind: input, shape index: {}]
  %s3 = inlined_call_operand.vmem [shape: f32[8,8], index: 3, kind: input, shape index: {}]
  %s4 = inlined_call_operand.vmem [shape: f32[2,8,4,8], index: 4, kind: input, shape index: {}]
  %s5 = inlined_call_operand.vmem [shape: f32[2,8,2,4,8], index: 5, kind: input, shape index: {}, may-alias: {5,6}]
  %s6 = inlined_call_operand.vmem [shape: f32[2,8,2,4,8], index: 6, kind: input, shape index: {}, may-alias: {5,6}]
  %s7 = inlined_call_operand.vmem [shape: f32[2,8,4,8], index: 7, kind: output, shape index: {}]
  %s8 = sld [smem:[#allocation0]]
  $region155: #{mla_forward.10} parent=0
    _
  %s10 = ssub.s32 1, %s8
  %s11 = scalar_select 0, %s10, %s8
  $region1: #{mla_forward.10} parent=0
    #allocation6 [shape = 'u8[32768]{0}', space=vmem, size = 0x8000, scoped, tag = 'input window, operand 5']
    #allocation7 [shape = 'u8[32768]{0}', space=vmem, size = 0x8000, scoped, tag = 'input window, operand 6']
    loop: start=0, step=1, limit=4
    $region2: #{mla_forward.10} parent=1 // loop_pre_header
      _
    $region3: #{mla_forward.10} parent=1 // loop_header
      %s13 = sphi 0, %s17
      %p14 = scmp.ge.s32.totalorder %s13, 4
      %s20 = sphi 0, %s39
      %s21 = sphi 0, %s35
      %s22 = sphi 0, %s31
      %s23 = sphi 0, %s20
      %s24 = sphi 0, %s21
      %s25 = sphi 0, %s22
      %s26 = sphi 0, %s23
      %s27 = sphi 0, %s24
      %s28 = sphi 0, %s25
      %s42 = sphi 0, %s44
      %s45 = sphi 0, %s42
      %s46 = sphi 0, %s45
      %s62 = sphi 0, %s46
      %s68 = sphi 0, %s70
      %s71 = sphi 0, %s68
      %s72 = sphi 0, %s71
      %s88 = sphi 0, %s72
      %s94 = sphi 0, %s96
      %s97 = sphi 0, %s94
      %s98 = sphi 0, %s97
      %s114 = sphi 0, %s98
      %s120 = sphi 0, %s122
      %s123 = sphi 0, %s120
      %s124 = sphi 0, %s123
      %s140 = sphi 0, %s124
      %s148 = sphi 0, %s150
      %s151 = sphi 0, %s148
      %s152 = sphi 0, %s151
      %s168 = sphi 0, %s152
      %s176 = sphi 0, %s178
      %s179 = sphi 0, %s176
      %s180 = sphi 0, %s179
      %s196 = sphi 0, %s180
      %s204 = sphi 0, %s206
      %s207 = sphi 0, %s204
      %s208 = sphi 0, %s207
      %s224 = sphi 0, %s208
      %s232 = sphi 0, %s234
      %s235 = sphi 0, %s232
      %s236 = sphi 0, %s235
      %s252 = sphi 0, %s236
    $region4: #{mla_forward.10} parent=1 // loop_header_branch
      %16 = sbr.rel (%p14) target = $region8
    $region5: #{mla_forward.10} parent=1 // loop_body
      %s18 = ssub.s32 %s13, 1
      %s19 = ssub.s32 %s13, 2
      %s29 = sadd.s32 1, %s22
      %p30 = scmp.ge.s32.totalorder %s29, 1
      %s31 = scalar_select %p30, 0, %s29
      %s32 = sadd.s32 1, %s21
      %s33 = scalar_select %p30, %s32, %s21
      %p34 = scmp.ge.s32.totalorder %s33, 1
      %s35 = scalar_select %p34, 0, %s33
      %s36 = sadd.s32 1, %s20
      %s37 = scalar_select %p34, %s36, %s20
      %p38 = scmp.ge.s32.totalorder %s37, 2
      %s39 = scalar_select %p38, 0, %s37
      %s40 = ssub.s32 %s21, %s35
      %p41 = scmp.eq.s32.totalorder %s40, 0
      %s43 = sadd.s32 %s42, 1
      %s44 = scalar_select %p41, %s42, %s43
      %p47 = pneg %p41
      %p48 = scmp.eq.s32.totalorder %s13, 1
      %p49 = por %p47, %p48
      %p50 = scmp.ne.s32.totalorder %s42, %s45
      %p51 = scmp.eq.s32.totalorder %s13, 0
      %p52 = por %p50, %p51
      %p53 = scmp.ne.s32.totalorder %s42, %s45
      %p54 = scmp.eq.s32.totalorder %s18, 1
      %p55 = por %p53, %p54
      %p56 = scmp.ne.s32.totalorder %s45, %s46
      %p57 = scmp.eq.s32.totalorder %s18, 0
      %p58 = por %p56, %p57
      %p59 = scmp.ne.s32.totalorder %s45, %s46
      %p60 = scmp.eq.s32.totalorder %s19, 1
      %p61 = por %p59, %p60
      %p63 = scmp.ne.s32.totalorder %s46, %s62
      %p64 = scmp.eq.s32.totalorder %s19, 0
      %p65 = por %p63, %p64
      %s66 = ssub.s32 %s21, %s35
      %p67 = scmp.eq.s32.totalorder %s66, 0
      %s69 = sadd.s32 %s68, 1
      %s70 = scalar_select %p67, %s68, %s69
      %p73 = pneg %p67
      %p74 = scmp.eq.s32.totalorder %s13, 1
      %p75 = por %p73, %p74
      %p76 = scmp.ne.s32.totalorder %s68, %s71
      %p77 = scmp.eq.s32.totalorder %s13, 0
      %p78 = por %p76, %p77
      %p79 = scmp.ne.s32.totalorder %s68, %s71
      %p80 = scmp.eq.s32.totalorder %s18, 1
      %p81 = por %p79, %p80
      %p82 = scmp.ne.s32.totalorder %s71, %s72
      %p83 = scmp.eq.s32.totalorder %s18, 0
      %p84 = por %p82, %p83
      %p85 = scmp.ne.s32.totalorder %s71, %s72
      %p86 = scmp.eq.s32.totalorder %s19, 1
      %p87 = por %p85, %p86
      %p89 = scmp.ne.s32.totalorder %s72, %s88
      %p90 = scmp.eq.s32.totalorder %s19, 0
      %p91 = por %p89, %p90
      %s92 = ssub.s32 %s22, %s31
      %p93 = scmp.eq.s32.totalorder %s92, 0
      %s95 = sadd.s32 %s94, 1
      %s96 = scalar_select %p93, %s94, %s95
      %p99 = pneg %p93
      %p100 = scmp.eq.s32.totalorder %s13, 1
      %p101 = por %p99, %p100
      %p102 = scmp.ne.s32.totalorder %s94, %s97
      %p103 = scmp.eq.s32.totalorder %s13, 0
      %p104 = por %p102, %p103
      %p105 = scmp.ne.s32.totalorder %s94, %s97
      %p106 = scmp.eq.s32.totalorder %s18, 1
      %p107 = por %p105, %p106
      %p108 = scmp.ne.s32.totalorder %s97, %s98
      %p109 = scmp.eq.s32.totalorder %s18, 0
      %p110 = por %p108, %p109
      %p111 = scmp.ne.s32.totalorder %s97, %s98
      %p112 = scmp.eq.s32.totalorder %s19, 1
      %p113 = por %p111, %p112
      %p115 = scmp.ne.s32.totalorder %s98, %s114
      %p116 = scmp.eq.s32.totalorder %s19, 0
      %p117 = por %p115, %p116
      %s118 = ssub.s32 %s22, %s31
      %p119 = scmp.eq.s32.totalorder %s118, 0
      %s121 = sadd.s32 %s120, 1
      %s122 = scalar_select %p119, %s120, %s121
      %p125 = pneg %p119
      %p126 = scmp.eq.s32.totalorder %s13, 1
      %p127 = por %p125, %p126
      %p128 = scmp.ne.s32.totalorder %s120, %s123
      %p129 = scmp.eq.s32.totalorder %s13, 0
      %p130 = por %p128, %p129
      %p131 = scmp.ne.s32.totalorder %s120, %s123
      %p132 = scmp.eq.s32.totalorder %s18, 1
      %p133 = por %p131, %p132
      %p134 = scmp.ne.s32.totalorder %s123, %s124
      %p135 = scmp.eq.s32.totalorder %s18, 0
      %p136 = por %p134, %p135
      %p137 = scmp.ne.s32.totalorder %s123, %s124
      %p138 = scmp.eq.s32.totalorder %s19, 1
      %p139 = por %p137, %p138
      %p141 = scmp.ne.s32.totalorder %s124, %s140
      %p142 = scmp.eq.s32.totalorder %s19, 0
      %p143 = por %p141, %p142
      %s144 = ssub.s32 %s20, %s39
      %s145 = ssub.s32 %s21, %s35
      %s146 = sor.u32 %s144, %s145
      %p147 = scmp.eq.s32.totalorder %s146, 0
      %s149 = sadd.s32 %s148, 1
      %s150 = scalar_select %p147, %s148, %s149
      %p153 = pneg %p147
      %p154 = scmp.eq.s32.totalorder %s13, 1
      %p155 = por %p153, %p154
      %p156 = scmp.ne.s32.totalorder %s148, %s151
      %p157 = scmp.eq.s32.totalorder %s13, 0
      %p158 = por %p156, %p157
      %p159 = scmp.ne.s32.totalorder %s148, %s151
      %p160 = scmp.eq.s32.totalorder %s18, 1
      %p161 = por %p159, %p160
      %p162 = scmp.ne.s32.totalorder %s151, %s152
      %p163 = scmp.eq.s32.totalorder %s18, 0
      %p164 = por %p162, %p163
      %p165 = scmp.ne.s32.totalorder %s151, %s152
      %p166 = scmp.eq.s32.totalorder %s19, 1
      %p167 = por %p165, %p166
      %p169 = scmp.ne.s32.totalorder %s152, %s168
      %p170 = scmp.eq.s32.totalorder %s19, 0
      %p171 = por %p169, %p170
      %s172 = ssub.s32 %s20, %s39
      %s173 = ssub.s32 %s22, %s31
      %s174 = sor.u32 %s172, %s173
      %p175 = scmp.eq.s32.totalorder %s174, 0
      %s177 = sadd.s32 %s176, 1
      %s178 = scalar_select %p175, %s176, %s177
      %p181 = pneg %p175
      %p182 = scmp.eq.s32.totalorder %s13, 1
      %p183 = por %p181, %p182
      %p184 = scmp.ne.s32.totalorder %s176, %s179
      %p185 = scmp.eq.s32.totalorder %s13, 0
      %p186 = por %p184, %p185
      %p187 = scmp.ne.s32.totalorder %s176, %s179
      %p188 = scmp.eq.s32.totalorder %s18, 1
      %p189 = por %p187, %p188
      %p190 = scmp.ne.s32.totalorder %s179, %s180
      %p191 = scmp.eq.s32.totalorder %s18, 0
      %p192 = por %p190, %p191
      %p193 = scmp.ne.s32.totalorder %s179, %s180
      %p194 = scmp.eq.s32.totalorder %s19, 1
      %p195 = por %p193, %p194
      %p197 = scmp.ne.s32.totalorder %s180, %s196
      %p198 = scmp.eq.s32.totalorder %s19, 0
      %p199 = por %p197, %p198
      %s200 = ssub.s32 %s20, %s39
      %s201 = ssub.s32 %s22, %s31
      %s202 = sor.u32 %s200, %s201
      %p203 = scmp.eq.s32.totalorder %s202, 0
      %s205 = sadd.s32 %s204, 1
      %s206 = scalar_select %p203, %s204, %s205
      %p209 = pneg %p203
      %p210 = scmp.eq.s32.totalorder %s13, 1
      %p211 = por %p209, %p210
      %p212 = scmp.ne.s32.totalorder %s204, %s207
      %p213 = scmp.eq.s32.totalorder %s13, 0
      %p214 = por %p212, %p213
      %p215 = scmp.ne.s32.totalorder %s204, %s207
      %p216 = scmp.eq.s32.totalorder %s18, 1
      %p217 = por %p215, %p216
      %p218 = scmp.ne.s32.totalorder %s207, %s208
      %p219 = scmp.eq.s32.totalorder %s18, 0
      %p220 = por %p218, %p219
      %p221 = scmp.ne.s32.totalorder %s207, %s208
      %p222 = scmp.eq.s32.totalorder %s19, 1
      %p223 = por %p221, %p222
      %p225 = scmp.ne.s32.totalorder %s208, %s224
      %p226 = scmp.eq.s32.totalorder %s19, 0
      %p227 = por %p225, %p226
      %s228 = ssub.s32 %s20, %s39
      %s229 = ssub.s32 %s21, %s35
      %s230 = sor.u32 %s228, %s229
      %p231 = scmp.eq.s32.totalorder %s230, 0
      %s233 = sadd.s32 %s232, 1
      %s234 = scalar_select %p231, %s232, %s233
      %p237 = pneg %p231
      %p238 = scmp.eq.s32.totalorder %s13, 1
      %p239 = por %p237, %p238
      %p240 = scmp.ne.s32.totalorder %s232, %s235
      %p241 = scmp.eq.s32.totalorder %s13, 0
      %p242 = por %p240, %p241
      %p243 = scmp.ne.s32.totalorder %s232, %s235
      %p244 = scmp.eq.s32.totalorder %s18, 1
      %p245 = por %p243, %p244
      %p246 = scmp.ne.s32.totalorder %s235, %s236
      %p247 = scmp.eq.s32.totalorder %s18, 0
      %p248 = por %p246, %p247
      %p249 = scmp.ne.s32.totalorder %s235, %s236
      %p250 = scmp.eq.s32.totalorder %s19, 1
      %p251 = por %p249, %p250
      %p253 = scmp.ne.s32.totalorder %s236, %s252
      %p254 = scmp.eq.s32.totalorder %s19, 0
      %p255 = por %p253, %p254
      %p256 = scmp.le.s32.totalorder 1, %s13
      %p257 = scmp.lt.s32.totalorder %s13, 3
      %p258 = pnand %p256, %p257
      %p259 = pneg %p258
      // Predicated region
      $region9: #{mla_forward.10} parent=5 // pred_check
        _
      $region10: #{mla_forward.10} parent=5 // pred_check_branch
        %261 = sbr.rel (%p258) target = $region12
      $region11: #{mla_forward.10} parent=5 // pred_region
        %s262 = ssub.s32 %s13, 1
        // Predicated region
        $region13: #{mla_forward.10} parent=11 // pred_check
          %p263 = pneg %p58
        $region14: #{mla_forward.10} parent=11 // pred_check_branch
          %265 = sbr.rel (%p263) target = $region16
        $region15: #{mla_forward.10} parent=11 // pred_region
          %p266 = scmp.lt.s32.totalorder %s24, 0
          %s267 = scalar_select %p266, %s24, 0
          %s268 = smul.addr %s267, 8
          %s269 = scalar_lea.vmem %s0, %s268
        $region16: #{mla_forward.10} parent=11 // pred_fallthru
          _
        // Predicated region
        $region17: #{mla_forward.10} parent=11 // pred_check
          %p270 = pneg %p84
        $region18: #{mla_forward.10} parent=11 // pred_check_branch
          %272 = sbr.rel (%p270) target = $region20
        $region19: #{mla_forward.10} parent=11 // pred_region
          %p273 = scmp.lt.s32.totalorder %s24, 0
          %s274 = scalar_select %p273, %s24, 0
          %s275 = smul.addr %s274, 8
          %s276 = scalar_lea.vmem %s1, %s275
        $region20: #{mla_forward.10} parent=11 // pred_fallthru
          _
        // Predicated region
        $region21: #{mla_forward.10} parent=11 // pred_check
          %p277 = pneg %p110
        $region22: #{mla_forward.10} parent=11 // pred_check_branch
          %279 = sbr.rel (%p277) target = $region24
        $region23: #{mla_forward.10} parent=11 // pred_region
          %p280 = scmp.lt.s32.totalorder %s25, 0
          %s281 = scalar_select %p280, %s25, 0
          %s282 = smul.addr %s281, 8
          %s283 = scalar_lea.vmem %s2, %s282
        $region24: #{mla_forward.10} parent=11 // pred_fallthru
          _
        // Predicated region
        $region25: #{mla_forward.10} parent=11 // pred_check
          %p284 = pneg %p136
        $region26: #{mla_forward.10} parent=11 // pred_check_branch
          %286 = sbr.rel (%p284) target = $region28
        $region27: #{mla_forward.10} parent=11 // pred_region
          %p287 = scmp.lt.s32.totalorder %s25, 0
          %s288 = scalar_select %p287, %s25, 0
          %s289 = smul.addr %s288, 8
          %s290 = scalar_lea.vmem %s3, %s289
        $region28: #{mla_forward.10} parent=11 // pred_fallthru
          _
      $region12: #{mla_forward.10} parent=5 // pred_fallthru
        _
      %p291 = scmp.lt.s32.totalorder %s13, 2
      // Predicated region
      $region29: #{mla_forward.10} parent=5 // pred_check
        %p292 = pneg %p291
      $region30: #{mla_forward.10} parent=5 // pred_check_branch
        %294 = sbr.rel (%p292) target = $region32
      $region31: #{mla_forward.10} parent=5 // pred_region
        // Predicated region
        $region33: #{mla_forward.10} parent=31 // pred_check
          %p295 = pneg %p158
        $region34: #{mla_forward.10} parent=31 // pred_check_branch
          %297 = sbr.rel (%p295) target = $region36
        $region35: #{mla_forward.10} parent=31 // pred_region
          %s298 = smul.u32 8, %s21
          %p299 = scmp.lt.s32.totalorder %s20, 1
          %s300 = scalar_select %p299, %s20, 1
          %p301 = scmp.lt.s32.totalorder %s298, 7
          %s302 = scalar_select %p301, %s298, 7
          %s303 = smul.addr %s300, 8
          %s304 = sadd.s32 %s302, %s303
          %s305 = smul.addr %s304, 4
          %s306 = scalar_lea.vmem %s4, %s305
          %s307 = smul.u32 8, %s21
        $region36: #{mla_forward.10} parent=31 // pred_fallthru
          _
        // Predicated region
        $region37: #{mla_forward.10} parent=31 // pred_check
          %p308 = pneg %p186
        $region38: #{mla_forward.10} parent=31 // pred_check_branch
          %310 = sbr.rel (%p308) target = $region40
        $region39: #{mla_forward.10} parent=31 // pred_region
          %s311 = sand.u32 %s176, 1
          %s312 = sand.u32 %s176, 1
          %s313 = smul.addr %s312, 32
          %s314 = scalar_lea.vmem [#allocation6], %s313
          %s315 = smul.u32 8, %s22
          %s316 = smul.addr %s315, 2
          %s317 = smul.addr %s20, 16
          %s318 = sadd.s32 %s316, %s317
          %s319 = smul.addr %s318, 4
          %s320 = scalar_lea.vmem %s5, %s319
          // Predicated region
          $region41: #{mla_forward.10} parent=39 // pred_check
            _
          $region42: #{mla_forward.10} parent=39 // pred_check_branch
            %322 = sbr.rel (0) target = $region44
          $region43: #{mla_forward.10} parent=39 // pred_region
            // Predicated region
            $region45: #{mla_forward.10} parent=43 // pred_check
              _
            $region46: #{mla_forward.10} parent=43 // pred_check_branch
              %324 = sbr.rel target = $region48
            $region47: #{mla_forward.10} parent=43 // pred_region
              // Predicated region
              $region60: #{mla_forward.10} parent=47 // pred_check
                _
              $region61: #{mla_forward.10} parent=47 // pred_check_branch
                %353 = sbr.rel (0) target = $region63
              $region62: #{mla_forward.10} parent=47 // pred_region
                loop: start=0, step=1, limit=1
                $region64: #{mla_forward.10} parent=62 // loop_pre_header
                  _
                $region65: #{mla_forward.10} parent=62 // loop_header
                  %s355 = sphi 0, %s359
                  %p356 = scmp.ge.s32.totalorder %s355, 1
                  %s360 = sphi %s320, %s320
                  %s361 = sphi %s314, %s314
                $region66: #{mla_forward.10} parent=62 // loop_header_branch
                  %358 = sbr.rel (%p356) target = $region70
                $region67: #{mla_forward.10} parent=62 // loop_body
                  _
                $region68: #{mla_forward.10} parent=62 // loop_footer
                  %s359 = sadd.s32 1, %s355
                $region69: #{mla_forward.10} parent=62 // loop_footer_branch
                  %354 = sbr.rel target = $region65
                $region70: #{mla_forward.10} parent=62 // loop_exit
                  _
                loop: start=0, step=1, limit=1
                $region71: #{mla_forward.10} parent=62 // loop_pre_header
                  _
                $region72: #{mla_forward.10} parent=62 // loop_header
                  %s364 = sphi 0, %s368
                  %p365 = scmp.ge.s32.totalorder %s364, 1
                  %s369 = sphi %s320, %s320
                  %s370 = sphi %s314, %s314
                $region73: #{mla_forward.10} parent=62 // loop_header_branch
                  %367 = sbr.rel (%p365) target = $region77
                $region74: #{mla_forward.10} parent=62 // loop_body
                  %v371 = vld [vmem:[%s369] sm:$0xf]
                  %372 = vst [vmem:[%s370] sm:$0xf] %v371
                  %v373 = vld [vmem:[%s369 + $0x8] sm:$0xf]
                  %374 = vst [vmem:[%s370 + $0x4] sm:$0xf] %v373
                  %v375 = vld [vmem:[%s369 + $0x10] sm:$0xf]
                  %376 = vst [vmem:[%s370 + $0x8] sm:$0xf] %v375
                  %v377 = vld [vmem:[%s369 + $0x18] sm:$0xf]
                  %378 = vst [vmem:[%s370 + $0xc] sm:$0xf] %v377
                  %v379 = vld [vmem:[%s369 + $0x20] sm:$0xf]
                  %380 = vst [vmem:[%s370 + $0x10] sm:$0xf] %v379
                  %v381 = vld [vmem:[%s369 + $0x28] sm:$0xf]
                  %382 = vst [vmem:[%s370 + $0x14] sm:$0xf] %v381
                  %v383 = vld [vmem:[%s369 + $0x30] sm:$0xf]
                  %384 = vst [vmem:[%s370 + $0x18] sm:$0xf] %v383
                  %v385 = vld [vmem:[%s369 + $0x38] sm:$0xf]
                  %386 = vst [vmem:[%s370 + $0x1c] sm:$0xf] %v385
                $region75: #{mla_forward.10} parent=62 // loop_footer
                  %s368 = sadd.s32 1, %s364
                $region76: #{mla_forward.10} parent=62 // loop_footer_branch
                  %363 = sbr.rel target = $region72
                $region77: #{mla_forward.10} parent=62 // loop_exit
                  _
              $region63: #{mla_forward.10} parent=47 // pred_fallthru
                _
            $region48: #{mla_forward.10} parent=43 // pred_fallthru
              _
            // Predicated region
            $region49: #{mla_forward.10} parent=43 // pred_check
              _
            $region50: #{mla_forward.10} parent=43 // pred_check_branch
              %326 = sbr.rel (0) target = $region52
            $region51: #{mla_forward.10} parent=43 // pred_region
              loop: start=0, step=1, limit=1
              $region53: #{mla_forward.10} parent=51 // loop_pre_header
                _
              $region54: #{mla_forward.10} parent=51 // loop_header
                %s329 = sphi 0, %s333
                %p330 = scmp.ge.s32.totalorder %s329, 1
                %s334 = sphi %s320, %s320
                %s335 = sphi %s314, %s314
              $region55: #{mla_forward.10} parent=51 // loop_header_branch
                %332 = sbr.rel (%p330) target = $region59
              $region56: #{mla_forward.10} parent=51 // loop_body
                %v336 = vld [vmem:[%s334] sm:$0xf]
                %337 = vst [vmem:[%s335] sm:$0xf] %v336
                %v338 = vld [vmem:[%s334 + $0x8] sm:$0xf]
                %339 = vst [vmem:[%s335 + $0x4] sm:$0xf] %v338
                %v340 = vld [vmem:[%s334 + $0x10] sm:$0xf]
                %341 = vst [vmem:[%s335 + $0x8] sm:$0xf] %v340
                %v342 = vld [vmem:[%s334 + $0x18] sm:$0xf]
                %343 = vst [vmem:[%s335 + $0xc] sm:$0xf] %v342
                %v344 = vld [vmem:[%s334 + $0x20] sm:$0xf]
                %345 = vst [vmem:[%s335 + $0x10] sm:$0xf] %v344
                %v346 = vld [vmem:[%s334 + $0x28] sm:$0xf]
                %347 = vst [vmem:[%s335 + $0x14] sm:$0xf] %v346
                %v348 = vld [vmem:[%s334 + $0x30] sm:$0xf]
                %349 = vst [vmem:[%s335 + $0x18] sm:$0xf] %v348
                %v350 = vld [vmem:[%s334 + $0x38] sm:$0xf]
                %351 = vst [vmem:[%s335 + $0x1c] sm:$0xf] %v350
              $region57: #{mla_forward.10} parent=51 // loop_footer
                %s333 = sadd.s32 1, %s329
              $region58: #{mla_forward.10} parent=51 // loop_footer_branch
                %328 = sbr.rel target = $region54
              $region59: #{mla_forward.10} parent=51 // loop_exit
                _
            $region52: #{mla_forward.10} parent=43 // pred_fallthru
              _
          $region44: #{mla_forward.10} parent=39 // pred_fallthru
            _
          %387 = vnop
        $region40: #{mla_forward.10} parent=31 // pred_fallthru
          _
        // Predicated region
        $region78: #{mla_forward.10} parent=31 // pred_check
          %p388 = pneg %p214
        $region79: #{mla_forward.10} parent=31 // pred_check_branch
          %390 = sbr.rel (%p388) target = $region81
        $region80: #{mla_forward.10} parent=31 // pred_region
          %s391 = sand.u32 %s204, 1
          %s392 = sand.u32 %s204, 1
          %s393 = smul.addr %s392, 32
          %s394 = scalar_lea.vmem [#allocation7], %s393
          %s395 = smul.u32 8, %s22
          %s396 = smul.addr %s395, 2
          %s397 = sadd.s32 1, %s396
          %s398 = smul.addr %s20, 16
          %s399 = sadd.s32 %s397, %s398
          %s400 = smul.addr %s399, 4
          %s401 = scalar_lea.vmem %s6, %s400
          // Predicated region
          $region82: #{mla_forward.10} parent=80 // pred_check
            _
          $region83: #{mla_forward.10} parent=80 // pred_check_branch
            %403 = sbr.rel (0) target = $region85
          $region84: #{mla_forward.10} parent=80 // pred_region
            // Predicated region
            $region86: #{mla_forward.10} parent=84 // pred_check
              _
            $region87: #{mla_forward.10} parent=84 // pred_check_branch
              %405 = sbr.rel target = $region89
            $region88: #{mla_forward.10} parent=84 // pred_region
              // Predicated region
              $region101: #{mla_forward.10} parent=88 // pred_check
                _
              $region102: #{mla_forward.10} parent=88 // pred_check_branch
                %434 = sbr.rel (0) target = $region104
              $region103: #{mla_forward.10} parent=88 // pred_region
                loop: start=0, step=1, limit=1
                $region105: #{mla_forward.10} parent=103 // loop_pre_header
                  _
                $region106: #{mla_forward.10} parent=103 // loop_header
                  %s436 = sphi 0, %s440
                  %p437 = scmp.ge.s32.totalorder %s436, 1
                  %s441 = sphi %s401, %s401
                  %s442 = sphi %s394, %s394
                $region107: #{mla_forward.10} parent=103 // loop_header_branch
                  %439 = sbr.rel (%p437) target = $region111
                $region108: #{mla_forward.10} parent=103 // loop_body
                  _
                $region109: #{mla_forward.10} parent=103 // loop_footer
                  %s440 = sadd.s32 1, %s436
                $region110: #{mla_forward.10} parent=103 // loop_footer_branch
                  %435 = sbr.rel target = $region106
                $region111: #{mla_forward.10} parent=103 // loop_exit
                  _
                loop: start=0, step=1, limit=1
                $region112: #{mla_forward.10} parent=103 // loop_pre_header
                  _
                $region113: #{mla_forward.10} parent=103 // loop_header
                  %s445 = sphi 0, %s449
                  %p446 = scmp.ge.s32.totalorder %s445, 1
                  %s450 = sphi %s401, %s401
                  %s451 = sphi %s394, %s394
                $region114: #{mla_forward.10} parent=103 // loop_header_branch
                  %448 = sbr.rel (%p446) target = $region118
                $region115: #{mla_forward.10} parent=103 // loop_body
                  %v452 = vld [vmem:[%s450] sm:$0xf]
                  %453 = vst [vmem:[%s451] sm:$0xf] %v452
                  %v454 = vld [vmem:[%s450 + $0x8] sm:$0xf]
                  %455 = vst [vmem:[%s451 + $0x4] sm:$0xf] %v454
                  %v456 = vld [vmem:[%s450 + $0x10] sm:$0xf]
                  %457 = vst [vmem:[%s451 + $0x8] sm:$0xf] %v456
                  %v458 = vld [vmem:[%s450 + $0x18] sm:$0xf]
                  %459 = vst [vmem:[%s451 + $0xc] sm:$0xf] %v458
                  %v460 = vld [vmem:[%s450 + $0x20] sm:$0xf]
                  %461 = vst [vmem:[%s451 + $0x10] sm:$0xf] %v460
                  %v462 = vld [vmem:[%s450 + $0x28] sm:$0xf]
                  %463 = vst [vmem:[%s451 + $0x14] sm:$0xf] %v462
                  %v464 = vld [vmem:[%s450 + $0x30] sm:$0xf]
                  %465 = vst [vmem:[%s451 + $0x18] sm:$0xf] %v464
                  %v466 = vld [vmem:[%s450 + $0x38] sm:$0xf]
                  %467 = vst [vmem:[%s451 + $0x1c] sm:$0xf] %v466
                $region116: #{mla_forward.10} parent=103 // loop_footer
                  %s449 = sadd.s32 1, %s445
                $region117: #{mla_forward.10} parent=103 // loop_footer_branch
                  %444 = sbr.rel target = $region113
                $region118: #{mla_forward.10} parent=103 // loop_exit
                  _
              $region104: #{mla_forward.10} parent=88 // pred_fallthru
                _
            $region89: #{mla_forward.10} parent=84 // pred_fallthru
              _
            // Predicated region
            $region90: #{mla_forward.10} parent=84 // pred_check
              _
            $region91: #{mla_forward.10} parent=84 // pred_check_branch
              %407 = sbr.rel (0) target = $region93
            $region92: #{mla_forward.10} parent=84 // pred_region
              loop: start=0, step=1, limit=1
              $region94: #{mla_forward.10} parent=92 // loop_pre_header
                _
              $region95: #{mla_forward.10} parent=92 // loop_header
                %s410 = sphi 0, %s414
                %p411 = scmp.ge.s32.totalorder %s410, 1
                %s415 = sphi %s401, %s401
                %s416 = sphi %s394, %s394
              $region96: #{mla_forward.10} parent=92 // loop_header_branch
                %413 = sbr.rel (%p411) target = $region100
              $region97: #{mla_forward.10} parent=92 // loop_body
                %v417 = vld [vmem:[%s415] sm:$0xf]
                %418 = vst [vmem:[%s416] sm:$0xf] %v417
                %v419 = vld [vmem:[%s415 + $0x8] sm:$0xf]
                %420 = vst [vmem:[%s416 + $0x4] sm:$0xf] %v419
                %v421 = vld [vmem:[%s415 + $0x10] sm:$0xf]
                %422 = vst [vmem:[%s416 + $0x8] sm:$0xf] %v421
                %v423 = vld [vmem:[%s415 + $0x18] sm:$0xf]
                %424 = vst [vmem:[%s416 + $0xc] sm:$0xf] %v423
                %v425 = vld [vmem:[%s415 + $0x20] sm:$0xf]
                %426 = vst [vmem:[%s416 + $0x10] sm:$0xf] %v425
                %v427 = vld [vmem:[%s415 + $0x28] sm:$0xf]
                %428 = vst [vmem:[%s416 + $0x14] sm:$0xf] %v427
                %v429 = vld [vmem:[%s415 + $0x30] sm:$0xf]
                %430 = vst [vmem:[%s416 + $0x18] sm:$0xf] %v429
                %v431 = vld [vmem:[%s415 + $0x38] sm:$0xf]
                %432 = vst [vmem:[%s416 + $0x1c] sm:$0xf] %v431
              $region98: #{mla_forward.10} parent=92 // loop_footer
                %s414 = sadd.s32 1, %s410
              $region99: #{mla_forward.10} parent=92 // loop_footer_branch
                %409 = sbr.rel target = $region95
              $region100: #{mla_forward.10} parent=92 // loop_exit
                _
            $region93: #{mla_forward.10} parent=84 // pred_fallthru
              _
          $region85: #{mla_forward.10} parent=80 // pred_fallthru
            _
          %468 = vnop
        $region81: #{mla_forward.10} parent=31 // pred_fallthru
          _
      $region32: #{mla_forward.10} parent=5 // pred_fallthru
        _
      %p469 = scmp.le.s32.totalorder 1, %s13
      %p470 = scmp.lt.s32.totalorder %s13, 3
      %p471 = pnand %p469, %p470
      %p472 = pneg %p471
      // Predicated region
      $region119: #{mla_forward.10} parent=5 // pred_check
        _
      $region120: #{mla_forward.10} parent=5 // pred_check_branch
        %474 = sbr.rel (%p471) target = $region122
      $region121: #{mla_forward.10} parent=5 // pred_region
        %s475 = ssub.s32 %s13, 1
        %s476 = sand.u32 %s179, 1
        %s477 = sand.u32 %s179, 1
        %s478 = smul.addr %s477, 32
        %s479 = scalar_lea.vmem [#allocation6], %s478
        // Predicated region
        $region123: #{mla_forward.10} parent=121 // pred_check
          %p480 = pneg %p192
        $region124: #{mla_forward.10} parent=121 // pred_check_branch
          %482 = sbr.rel (%p480) target = $region126
        $region125: #{mla_forward.10} parent=121 // pred_region
          _
        $region126: #{mla_forward.10} parent=121 // pred_fallthru
          _
        %s483 = sand.u32 %s207, 1
        %s484 = sand.u32 %s207, 1
        %s485 = smul.addr %s484, 32
        %s486 = scalar_lea.vmem [#allocation7], %s485
        // Predicated region
        $region127: #{mla_forward.10} parent=121 // pred_check
          %p487 = pneg %p220
        $region128: #{mla_forward.10} parent=121 // pred_check_branch
          %489 = sbr.rel (%p487) target = $region130
        $region129: #{mla_forward.10} parent=121 // pred_region
          _
        $region130: #{mla_forward.10} parent=121 // pred_fallthru
          _
        %p490 = scmp.lt.s32.totalorder %s24, 0
        %s491 = scalar_select %p490, %s24, 0
        %s492 = smul.addr %s491, 8
        %s493 = scalar_lea.vmem %s0, %s492
        %p494 = pneg %p58
        %p495 = pneg %p55
        %p496 = scmp.lt.s32.totalorder %s24, 0
        %s497 = scalar_select %p496, %s24, 0
        %s498 = smul.addr %s497, 8
        %s499 = scalar_lea.vmem %s1, %s498
        %p500 = pneg %p84
        %p501 = pneg %p81
        %p502 = scmp.lt.s32.totalorder %s25, 0
        %s503 = scalar_select %p502, %s25, 0
        %s504 = smul.addr %s503, 8
        %s505 = scalar_lea.vmem %s2, %s504
        %p506 = pneg %p110
        %p507 = pneg %p107
        %p508 = scmp.lt.s32.totalorder %s25, 0
        %s509 = scalar_select %p508, %s25, 0
        %s510 = smul.addr %s509, 8
        %s511 = scalar_lea.vmem %s3, %s510
        %p512 = pneg %p136
        %p513 = pneg %p133
        %s514 = smul.u32 8, %s24
        %p515 = scmp.lt.s32.totalorder %s23, 1
        %s516 = scalar_select %p515, %s23, 1
        %p517 = scmp.lt.s32.totalorder %s514, 7
        %s518 = scalar_select %p517, %s514, 7
        %s519 = smul.addr %s516, 8
        %s520 = sadd.s32 %s518, %s519
        %s521 = smul.addr %s520, 4
        %s522 = scalar_lea.vmem %s4, %s521
        %p523 = pneg %p164
        %p524 = pneg %p161
        %s525 = sand.u32 %s179, 1
        %s526 = sand.u32 %s179, 1
        %s527 = smul.addr %s526, 32
        %s528 = scalar_lea.vmem [#allocation6], %s527
        %p529 = pneg %p192
        %p530 = pneg %p189
        %s531 = sand.u32 %s207, 1
        %s532 = sand.u32 %s207, 1
        %s533 = smul.addr %s532, 32
        %s534 = scalar_lea.vmem [#allocation7], %s533
        %p535 = pneg %p220
        %p536 = pneg %p217
        %p537 = pneg %p248
        %p538 = pneg %p245
        %s539 = smul.u32 8, %s24
        %p540 = scmp.lt.s32.totalorder %s23, 1
        %s541 = scalar_select %p540, %s23, 1
        %p542 = scmp.lt.s32.totalorder %s539, 7
        %s543 = scalar_select %p542, %s539, 7
        %s544 = smul.addr %s541, 8
        %s545 = sadd.s32 %s543, %s544
        %s546 = smul.addr %s545, 4
        %s547 = scalar_lea.vmem %s7, %s546
        %p548 = scmp.lt.s32.totalorder %s24, 0
        %s549 = scalar_select %p548, %s24, 0
        %s550 = smul.addr %s549, 8
        %s551 = scalar_lea.vmem %s0, %s550
        %p552 = scmp.lt.s32.totalorder %s24, 0
        %s553 = scalar_select %p552, %s24, 0
        %s554 = smul.addr %s553, 8
        %s555 = scalar_lea.vmem %s1, %s554
        %p556 = scmp.lt.s32.totalorder %s25, 0
        %s557 = scalar_select %p556, %s25, 0
        %s558 = smul.addr %s557, 8
        %s559 = scalar_lea.vmem %s2, %s558
        %p560 = scmp.lt.s32.totalorder %s25, 0
        %s561 = scalar_select %p560, %s25, 0
        %s562 = smul.addr %s561, 8
        %s563 = scalar_lea.vmem %s3, %s562
        %s564 = smul.u32 8, %s24
        %p565 = scmp.lt.s32.totalorder %s23, 1
        %s566 = scalar_select %p565, %s23, 1
        %p567 = scmp.lt.s32.totalorder %s564, 7
        %s568 = scalar_select %p567, %s564, 7
        %s569 = smul.addr %s566, 8
        %s570 = sadd.s32 %s568, %s569
        %s571 = smul.addr %s570, 4
        %s572 = scalar_lea.vmem %s4, %s571
        %s573 = smul.u32 8, %s24
        %s574 = smul.u32 8, %s25
        %s575 = smul.u32 8, %s25
        %s576 = smul.u32 8, %s24
        %p577 = scmp.lt.s32.totalorder %s23, 1
        %s578 = scalar_select %p577, %s23, 1
        %p579 = scmp.lt.s32.totalorder %s576, 7
        %s580 = scalar_select %p579, %s576, 7
        %s581 = smul.addr %s578, 8
        %s582 = sadd.s32 %s580, %s581
        %s583 = smul.addr %s582, 4
        %s584 = scalar_lea.vmem %s7, %s583
        %s585 = smul.u32 8, %s24
        %p586 = scmp.eq.s32.totalorder %s25, 0
        // Predicated region
        $region131: #{mla_forward.10} parent=121 // pred_check
          %p587 = pneg %p586
        $region132: #{mla_forward.10} parent=121 // pred_check_branch
          %589 = sbr.rel (%p587) target = $region134
        $region133: #{mla_forward.10} parent=121 // pred_region
          %vm590 = vcmask 7168
          %591 = vst.msk [vmem:[#allocation3] sm:$0xff] %vm590, -inf
          %592 = vst.msk [vmem:[#allocation3 + $0x8] sm:$0xff] %vm590, -inf
          %593 = vst.msk [vmem:[#allocation3 + $0x10] sm:$0xff] %vm590, -inf
          %594 = vst.msk [vmem:[#allocation3 + $0x18] sm:$0xff] %vm590, -inf
          %595 = vst.msk [vmem:[#allocation4] sm:$0xff] %vm590, 0.0
          %596 = vst.msk [vmem:[#allocation4 + $0x8] sm:$0xff] %vm590, 0.0
          %597 = vst.msk [vmem:[#allocation4 + $0x10] sm:$0xff] %vm590, 0.0
          %598 = vst.msk [vmem:[#allocation4 + $0x18] sm:$0xff] %vm590, 0.0
          %vm599 = vcmask 64512
          %600 = vst.msk [vmem:[#allocation5] sm:$0xff] %vm599, 0.0
          %601 = vst.msk [vmem:[#allocation5 + $0x8] sm:$0xff] %vm599, 0.0
          %602 = vst.msk [vmem:[#allocation5 + $0x10] sm:$0xff] %vm599, 0.0
          %603 = vst.msk [vmem:[#allocation5 + $0x18] sm:$0xff] %vm599, 0.0
          %v604 = vld [vmem:[%s551] sm:$0xff]
          %v605 = vld [vmem:[%s555] sm:$0xff]
          %v606 = vld [vmem:[%s572] sm:$0x1]
          %v607 = vld [vmem:[%s572 + $0x4] sm:$0x1]
          %v608 = vld [vmem:[%s572 + $0x8] sm:$0x1]
          %v609 = vld [vmem:[%s572 + $0xc] sm:$0x1]
          %v610 = vld [vmem:[%s572 + $0x10] sm:$0x1]
          %v611 = vld [vmem:[%s572 + $0x14] sm:$0x1]
          %v612 = vld [vmem:[%s572 + $0x18] sm:$0x1]
          %v613 = vld [vmem:[%s572 + $0x1c] sm:$0x1]
          %v615 = vrot.slane %v604, 1
          %v616 = vrot.slane %v604, 2
          %v617 = vrot.slane %v604, 3
          %v618 = vrot.slane %v604, 4
          %v619 = vrot.slane %v604, 5
          %v620 = vrot.slane %v604, 6
          %v621 = vrot.slane %v604, 7
          %v630 = vmul.f32 %v606, %v604
          %v631 = vmul.f32 %v607, %v615
          %v632 = vmul.f32 %v608, %v616
          %v633 = vmul.f32 %v609, %v617
          %v634 = vmul.f32 %v610, %v618
          %v635 = vmul.f32 %v611, %v619
          %v636 = vmul.f32 %v612, %v620
          %v637 = vmul.f32 %v613, %v621
          %v646 = vrot.slane %v607, 7
          %vm647 = vcmask 1041409
          %v648 = vsel %vm647, %v646, %v606
          %v649 = vrot.slane %v608, 6
          %vm650 = vcmask 1042434
          %v651 = vsel %vm650, %v649, %v648
          %v652 = vrot.slane %v609, 5
          %vm653 = vcmask 1043459
          %v654 = vsel %vm653, %v652, %v651
          %v655 = vrot.slane %v610, 4
          %vm656 = vcmask 1044484
          %v657 = vsel %vm656, %v655, %v654
          %v658 = vrot.slane %v611, 3
          %vm659 = vcmask 1045509
          %v660 = vsel %vm659, %v658, %v657
          %v661 = vrot.slane %v612, 2
          %vm662 = vcmask 1046534
          %v663 = vsel %vm662, %v661, %v660
          %v664 = vrot.slane %v613, 1
          %vm665 = vcmask 1047559
          %v666 = vsel %vm665, %v664, %v663
          %667 = vrot.lane.b32.xlu0 %v666, 124
          %v668 = vpop.permute.xlu0 %667
          %670 = vrot.lane.b32.xlu0 %v666, 4
          %v671 = vpop.permute.xlu0 %670
          %vm673 = vcmask 31744
          %v674 = vsel %vm673, %v668, %v671
          %v675 = vmul.f32 %v674, %v605
          %v677 = vrot.slane %v675, 1
          %v678 = vrot.slane %v675, 2
          %v679 = vrot.slane %v675, 3
          %v680 = vrot.slane %v675, 4
          %v681 = vrot.slane %v675, 5
          %v682 = vrot.slane %v675, 6
          %v683 = vrot.slane %v675, 7
          %v692 = vadd.f32 %v630, %v675
          %v693 = vadd.f32 %v631, %v677
          %v694 = vadd.f32 %v632, %v678
          %v695 = vadd.f32 %v633, %v679
          %v696 = vadd.f32 %v634, %v680
          %v697 = vadd.f32 %v635, %v681
          %v698 = vadd.f32 %v636, %v682
          %v699 = vadd.f32 %v637, %v683
          %v708 = vrot.slane %v693, 7
          %v709 = vsel %vm647, %v708, %v692
          %v710 = vrot.slane %v694, 6
          %v711 = vsel %vm650, %v710, %v709
          %v712 = vrot.slane %v695, 5
          %v713 = vsel %vm653, %v712, %v711
          %v714 = vrot.slane %v696, 4
          %v715 = vsel %vm656, %v714, %v713
          %v716 = vrot.slane %v697, 3
          %v717 = vsel %vm659, %v716, %v715
          %v718 = vrot.slane %v698, 2
          %v719 = vsel %vm662, %v718, %v717
          %v720 = vrot.slane %v699, 1
          %v721 = vsel %vm665, %v720, %v719
          %723 = vst.msk [vmem:[#allocation2] sm:$0xff] %vm599, %v721
          %v724 = vld [vmem:[%s572 + $0x1] sm:$0x1]
          %v725 = vld [vmem:[%s572 + $0x5] sm:$0x1]
          %v726 = vld [vmem:[%s572 + $0x9] sm:$0x1]
          %v727 = vld [vmem:[%s572 + $0xd] sm:$0x1]
          %v728 = vld [vmem:[%s572 + $0x11] sm:$0x1]
          %v729 = vld [vmem:[%s572 + $0x15] sm:$0x1]
          %v730 = vld [vmem:[%s572 + $0x19] sm:$0x1]
          %v731 = vld [vmem:[%s572 + $0x1d] sm:$0x1]
          %v732 = vmul.f32 %v724, %v604
          %v733 = vmul.f32 %v725, %v615
          %v734 = vmul.f32 %v726, %v616
          %v735 = vmul.f32 %v727, %v617
          %v736 = vmul.f32 %v728, %v618
          %v737 = vmul.f32 %v729, %v619
          %v738 = vmul.f32 %v730, %v620
          %v739 = vmul.f32 %v731, %v621
          %v748 = vrot.slane %v725, 7
          %v749 = vsel %vm647, %v748, %v724
          %v750 = vrot.slane %v726, 6
          %v751 = vsel %vm650, %v750, %v749
          %v752 = vrot.slane %v727, 5
          %v753 = vsel %vm653, %v752, %v751
          %v754 = vrot.slane %v728, 4
          %v755 = vsel %vm656, %v754, %v753
          %v756 = vrot.slane %v729, 3
          %v757 = vsel %vm659, %v756, %v755
          %v758 = vrot.slane %v730, 2
          %v759 = vsel %vm662, %v758, %v757
          %v760 = vrot.slane %v731, 1
          %v761 = vsel %vm665, %v760, %v759
          %762 = vrot.lane.b32.xlu0 %v761, 124
          %v763 = vpop.permute.xlu0 %762
          %765 = vrot.lane.b32.xlu0 %v761, 4
          %v766 = vpop.permute.xlu0 %765
          %v768 = vsel %vm673, %v763, %v766
          %v769 = vmul.f32 %v768, %v605
          %v771 = vrot.slane %v769, 1
          %v772 = vrot.slane %v769, 2
          %v773 = vrot.slane %v769, 3
          %v774 = vrot.slane %v769, 4
          %v775 = vrot.slane %v769, 5
          %v776 = vrot.slane %v769, 6
          %v777 = vrot.slane %v769, 7
          %v786 = vadd.f32 %v732, %v769
          %v787 = vadd.f32 %v733, %v771
          %v788 = vadd.f32 %v734, %v772
          %v789 = vadd.f32 %v735, %v773
          %v790 = vadd.f32 %v736, %v774
          %v791 = vadd.f32 %v737, %v775
          %v792 = vadd.f32 %v738, %v776
          %v793 = vadd.f32 %v739, %v777
          %v802 = vrot.slane %v787, 7
          %v803 = vsel %vm647, %v802, %v786
          %v804 = vrot.slane %v788, 6
          %v805 = vsel %vm650, %v804, %v803
          %v806 = vrot.slane %v789, 5
          %v807 = vsel %vm653, %v806, %v805
          %v808 = vrot.slane %v790, 4
          %v809 = vsel %vm656, %v808, %v807
          %v810 = vrot.slane %v791, 3
          %v811 = vsel %vm659, %v810, %v809
          %v812 = vrot.slane %v792, 2
          %v813 = vsel %vm662, %v812, %v811
          %v814 = vrot.slane %v793, 1
          %v815 = vsel %vm665, %v814, %v813
          %s817 = scalar_lea.vmem [#allocation2], 8
          %818 = vst.msk [vmem:[%s817] sm:$0xff] %vm599, %v815
          %v819 = vld [vmem:[%s572 + $0x2] sm:$0x1]
          %v820 = vld [vmem:[%s572 + $0x6] sm:$0x1]
          %v821 = vld [vmem:[%s572 + $0xa] sm:$0x1]
          %v822 = vld [vmem:[%s572 + $0xe] sm:$0x1]
          %v823 = vld [vmem:[%s572 + $0x12] sm:$0x1]
          %v824 = vld [vmem:[%s572 + $0x16] sm:$0x1]
          %v825 = vld [vmem:[%s572 + $0x1a] sm:$0x1]
          %v826 = vld [vmem:[%s572 + $0x1e] sm:$0x1]
          %v827 = vmul.f32 %v819, %v604
          %v828 = vmul.f32 %v820, %v615
          %v829 = vmul.f32 %v821, %v616
          %v830 = vmul.f32 %v822, %v617
          %v831 = vmul.f32 %v823, %v618
          %v832 = vmul.f32 %v824, %v619
          %v833 = vmul.f32 %v825, %v620
          %v834 = vmul.f32 %v826, %v621
          %v843 = vrot.slane %v820, 7
          %v844 = vsel %vm647, %v843, %v819
          %v845 = vrot.slane %v821, 6
          %v846 = vsel %vm650, %v845, %v844
          %v847 = vrot.slane %v822, 5
          %v848 = vsel %vm653, %v847, %v846
          %v849 = vrot.slane %v823, 4
          %v850 = vsel %vm656, %v849, %v848
          %v851 = vrot.slane %v824, 3
          %v852 = vsel %vm659, %v851, %v850
          %v853 = vrot.slane %v825, 2
          %v854 = vsel %vm662, %v853, %v852
          %v855 = vrot.slane %v826, 1
          %v856 = vsel %vm665, %v855, %v854
          %857 = vrot.lane.b32.xlu0 %v856, 124
          %v858 = vpop.permute.xlu0 %857
          %860 = vrot.lane.b32.xlu0 %v856, 4
          %v861 = vpop.permute.xlu0 %860
          %v863 = vsel %vm673, %v858, %v861
          %v864 = vmul.f32 %v863, %v605
          %v866 = vrot.slane %v864, 1
          %v867 = vrot.slane %v864, 2
          %v868 = vrot.slane %v864, 3
          %v869 = vrot.slane %v864, 4
          %v870 = vrot.slane %v864, 5
          %v871 = vrot.slane %v864, 6
          %v872 = vrot.slane %v864, 7
          %v881 = vadd.f32 %v827, %v864
          %v882 = vadd.f32 %v828, %v866
          %v883 = vadd.f32 %v829, %v867
          %v884 = vadd.f32 %v830, %v868
          %v885 = vadd.f32 %v831, %v869
          %v886 = vadd.f32 %v832, %v870
          %v887 = vadd.f32 %v833, %v871
          %v888 = vadd.f32 %v834, %v872
          %v897 = vrot.slane %v882, 7
          %v898 = vsel %vm647, %v897, %v881
          %v899 = vrot.slane %v883, 6
          %v900 = vsel %vm650, %v899, %v898
          %v901 = vrot.slane %v884, 5
          %v902 = vsel %vm653, %v901, %v900
          %v903 = vrot.slane %v885, 4
          %v904 = vsel %vm656, %v903, %v902
          %v905 = vrot.slane %v886, 3
          %v906 = vsel %vm659, %v905, %v904
          %v907 = vrot.slane %v887, 2
          %v908 = vsel %vm662, %v907, %v906
          %v909 = vrot.slane %v888, 1
          %v910 = vsel %vm665, %v909, %v908
          %s912 = scalar_lea.vmem [#allocation2], 16
          %913 = vst.msk [vmem:[%s912] sm:$0xff] %vm599, %v910
          %v914 = vld [vmem:[%s572 + $0x3] sm:$0x1]
          %v915 = vld [vmem:[%s572 + $0x7] sm:$0x1]
          %v916 = vld [vmem:[%s572 + $0xb] sm:$0x1]
          %v917 = vld [vmem:[%s572 + $0xf] sm:$0x1]
          %v918 = vld [vmem:[%s572 + $0x13] sm:$0x1]
          %v919 = vld [vmem:[%s572 + $0x17] sm:$0x1]
          %v920 = vld [vmem:[%s572 + $0x1b] sm:$0x1]
          %v921 = vld [vmem:[%s572 + $0x1f] sm:$0x1]
          %v922 = vmul.f32 %v914, %v604
          %v923 = vmul.f32 %v915, %v615
          %v924 = vmul.f32 %v916, %v616
          %v925 = vmul.f32 %v917, %v617
          %v926 = vmul.f32 %v918, %v618
          %v927 = vmul.f32 %v919, %v619
          %v928 = vmul.f32 %v920, %v620
          %v929 = vmul.f32 %v921, %v621
          %v938 = vrot.slane %v915, 7
          %v939 = vsel %vm647, %v938, %v914
          %v940 = vrot.slane %v916, 6
          %v941 = vsel %vm650, %v940, %v939
          %v942 = vrot.slane %v917, 5
          %v943 = vsel %vm653, %v942, %v941
          %v944 = vrot.slane %v918, 4
          %v945 = vsel %vm656, %v944, %v943
          %v946 = vrot.slane %v919, 3
          %v947 = vsel %vm659, %v946, %v945
          %v948 = vrot.slane %v920, 2
          %v949 = vsel %vm662, %v948, %v947
          %v950 = vrot.slane %v921, 1
          %v951 = vsel %vm665, %v950, %v949
          %952 = vrot.lane.b32.xlu0 %v951, 124
          %v953 = vpop.permute.xlu0 %952
          %955 = vrot.lane.b32.xlu0 %v951, 4
          %v956 = vpop.permute.xlu0 %955
          %v958 = vsel %vm673, %v953, %v956
          %v959 = vmul.f32 %v958, %v605
          %v961 = vrot.slane %v959, 1
          %v962 = vrot.slane %v959, 2
          %v963 = vrot.slane %v959, 3
          %v964 = vrot.slane %v959, 4
          %v965 = vrot.slane %v959, 5
          %v966 = vrot.slane %v959, 6
          %v967 = vrot.slane %v959, 7
          %v976 = vadd.f32 %v922, %v959
          %v977 = vadd.f32 %v923, %v961
          %v978 = vadd.f32 %v924, %v962
          %v979 = vadd.f32 %v925, %v963
          %v980 = vadd.f32 %v926, %v964
          %v981 = vadd.f32 %v927, %v965
          %v982 = vadd.f32 %v928, %v966
          %v983 = vadd.f32 %v929, %v967
          %v992 = vrot.slane %v977, 7
          %v993 = vsel %vm647, %v992, %v976
          %v994 = vrot.slane %v978, 6
          %v995 = vsel %vm650, %v994, %v993
          %v996 = vrot.slane %v979, 5
          %v997 = vsel %vm653, %v996, %v995
          %v998 = vrot.slane %v980, 4
          %v999 = vsel %vm656, %v998, %v997
          %v1000 = vrot.slane %v981, 3
          %v1001 = vsel %vm659, %v1000, %v999
          %v1002 = vrot.slane %v982, 2
          %v1003 = vsel %vm662, %v1002, %v1001
          %v1004 = vrot.slane %v983, 1
          %v1005 = vsel %vm665, %v1004, %v1003
          %s1007 = scalar_lea.vmem [#allocation2], 24
          %1008 = vst.msk [vmem:[%s1007] sm:$0xff] %vm599, %v1005
        $region134: #{mla_forward.10} parent=121 // pred_fallthru
          _
        %s1009 = smul.u32 %s25, 8
        %s1010 = sadd.s32 %s24, 1
        %s1011 = smul.u32 %s1010, 8
        %p1012 = scmp.lt.s32.totalorder %s1009, %s1011
        // Predicated region
        $region135: #{mla_forward.10} parent=121 // pred_check
          %p1013 = pneg %p1012
        $region136: #{mla_forward.10} parent=121 // pred_check_branch
          %1015 = sbr.rel (%p1013) target = $region138
        $region137: #{mla_forward.10} parent=121 // pred_region
          %v1016 = vld [vmem:[%s559] sm:$0xff]
          %v1017 = vld [vmem:[%s563] sm:$0xff]
          %s1018 = smul.u32 %s24, 8
          %v1019 = vlaneseq
          %v1020 = vshrl.u32 %v1019, 7
          %v1021 = vstv %s1018
          %v1022 = vadd.s32 %v1021, %v1020
          %v1023 = vlaneseq
          %v1024 = vand.u32 %v1023, 127
          %v1025 = vstv %s1009
          %v1026 = vadd.s32 %v1025, %v1024
          %vm1027 = vcmp.le.s32.totalorder %v1026, %v1022
          %v1028 = vld [vmem:[%s479] sm:$0x1]
          %v1029 = vld [vmem:[%s479 + $0x4] sm:$0x1]
          %v1030 = vld [vmem:[%s479 + $0x8] sm:$0x1]
          %v1031 = vld [vmem:[%s479 + $0xc] sm:$0x1]
          %v1032 = vld [vmem:[%s479 + $0x10] sm:$0x1]
          %v1033 = vld [vmem:[%s479 + $0x14] sm:$0x1]
          %v1034 = vld [vmem:[%s479 + $0x18] sm:$0x1]
          %v1035 = vld [vmem:[%s479 + $0x1c] sm:$0x1]
          %v1037 = vrot.slane %v1016, 1
          %v1038 = vrot.slane %v1016, 2
          %v1039 = vrot.slane %v1016, 3
          %v1040 = vrot.slane %v1016, 4
          %v1041 = vrot.slane %v1016, 5
          %v1042 = vrot.slane %v1016, 6
          %v1043 = vrot.slane %v1016, 7
          %v1052 = vmul.f32 %v1028, %v1016
          %v1053 = vmul.f32 %v1029, %v1037
          %v1054 = vmul.f32 %v1030, %v1038
          %v1055 = vmul.f32 %v1031, %v1039
          %v1056 = vmul.f32 %v1032, %v1040
          %v1057 = vmul.f32 %v1033, %v1041
          %v1058 = vmul.f32 %v1034, %v1042
          %v1059 = vmul.f32 %v1035, %v1043
          %v1068 = vrot.slane %v1029, 7
          %vm1069 = vcmask 1041409
          %v1070 = vsel %vm1069, %v1068, %v1028
          %v1071 = vrot.slane %v1030, 6
          %vm1072 = vcmask 1042434
          %v1073 = vsel %vm1072, %v1071, %v1070
          %v1074 = vrot.slane %v1031, 5
          %vm1075 = vcmask 1043459
          %v1076 = vsel %vm1075, %v1074, %v1073
          %v1077 = vrot.slane %v1032, 4
          %vm1078 = vcmask 1044484
          %v1079 = vsel %vm1078, %v1077, %v1076
          %v1080 = vrot.slane %v1033, 3
          %vm1081 = vcmask 1045509
          %v1082 = vsel %vm1081, %v1080, %v1079
          %v1083 = vrot.slane %v1034, 2
          %vm1084 = vcmask 1046534
          %v1085 = vsel %vm1084, %v1083, %v1082
          %v1086 = vrot.slane %v1035, 1
          %vm1087 = vcmask 1047559
          %v1088 = vsel %vm1087, %v1086, %v1085
          %1089 = vrot.lane.b32.xlu0 %v1088, 124
          %v1090 = vpop.permute.xlu0 %1089
          %1092 = vrot.lane.b32.xlu0 %v1088, 4
          %v1093 = vpop.permute.xlu0 %1092
          %vm1095 = vcmask 31744
          %v1096 = vsel %vm1095, %v1090, %v1093
          %v1097 = vmul.f32 %v1096, %v1017
          %v1099 = vrot.slane %v1097, 1
          %v1100 = vrot.slane %v1097, 2
          %v1101 = vrot.slane %v1097, 3
          %v1102 = vrot.slane %v1097, 4
          %v1103 = vrot.slane %v1097, 5
          %v1104 = vrot.slane %v1097, 6
          %v1105 = vrot.slane %v1097, 7
          %v1114 = vadd.f32 %v1052, %v1097
          %v1115 = vadd.f32 %v1053, %v1099
          %v1116 = vadd.f32 %v1054, %v1100
          %v1117 = vadd.f32 %v1055, %v1101
          %v1118 = vadd.f32 %v1056, %v1102
          %v1119 = vadd.f32 %v1057, %v1103
          %v1120 = vadd.f32 %v1058, %v1104
          %v1121 = vadd.f32 %v1059, %v1105
          %v1122 = vld [vmem:[#allocation2] sm:$0xff]
          %v1131 = vrot.slane %v1115, 7
          %v1132 = vsel %vm1069, %v1131, %v1114
          %v1133 = vrot.slane %v1116, 6
          %v1134 = vsel %vm1072, %v1133, %v1132
          %v1135 = vrot.slane %v1117, 5
          %v1136 = vsel %vm1075, %v1135, %v1134
          %v1137 = vrot.slane %v1118, 4
          %v1138 = vsel %vm1078, %v1137, %v1136
          %v1139 = vrot.slane %v1119, 3
          %v1140 = vsel %vm1081, %v1139, %v1138
          %v1141 = vrot.slane %v1120, 2
          %v1142 = vsel %vm1084, %v1141, %v1140
          %v1143 = vrot.slane %v1121, 1
          %v1144 = vsel %vm1087, %v1143, %v1142
          %vm1145 = vcmask 64512
          %v1147 = vsel %vm1145, %v1122, 0
          %v1149 = vsel %vm1145, %v1144, 0
          %1151 = vmatprep.subr.mxu0 0.0
          %1152 = vmatpush1.xpose.msra.mxu0 %v1149
          %1153 = vmatprep.subr.mxu0 0.0
          %1154 = vmatpush1.xpose.msra.mxu0 0.0
          %1155 = vmatprep.subr.mxu0 0.0
          %1156 = vmatpush1.xpose.msra.mxu0 0.0
          %1157 = vmatprep.subr.mxu0 0.0
          %1158 = vmatpush1.xpose.msra.mxu0 0.0
          %1159 = vmatprep.subr.mxu0 0.0
          %1160 = vmatpush1.xpose.msra.mxu0 0.0
          %1161 = vmatprep.subr.mxu0 0.0
          %1162 = vmatpush1.xpose.msra.mxu0 0.0
          %1163 = vmatprep.subr.mxu0 0.0
          %1164 = vmatpush1.xpose.msra.mxu0 0.0
          %1165 = vmatprep.subr.mxu0 0.0
          %1166 = vmatpush1.xpose.msra.mxu0 0.0
          %1167 = vmatprep.subr.mxu0 0.0
          %1168 = vmatpush1.xpose.msra.mxu0 0.0
          %1169 = vmatprep.subr.mxu0 0.0
          %1170 = vmatpush1.xpose.msra.mxu0 0.0
          %1171 = vmatprep.subr.mxu0 0.0
          %1172 = vmatpush1.xpose.msra.mxu0 0.0
          %1173 = vmatprep.subr.mxu0 0.0
          %1174 = vmatpush1.xpose.msra.mxu0 0.0
          %1175 = vmatprep.subr.mxu0 0.0
          %1176 = vmatpush1.xpose.msra.mxu0 0.0
          %1177 = vmatprep.subr.mxu0 0.0
          %1178 = vmatpush1.xpose.msra.mxu0 0.0
          %1179 = vmatprep.subr.mxu0 0.0
          %1180 = vmatpush1.xpose.msra.mxu0 0.0
          %1181 = vmatprep.subr.mxu0 0.0
          %1182 = vmatpush1.xpose.msra.mxu0 0.0
          %1183 = vmatprep.subr.mxu0 0.0
          %1184 = vmatpush1.xpose.msra.mxu0 0.0
          %1185 = vmatprep.subr.mxu0 0.0
          %1186 = vmatpush1.xpose.msra.mxu0 0.0
          %1187 = vmatprep.subr.mxu0 0.0
          %1188 = vmatpush1.xpose.msra.mxu0 0.0
          %1189 = vmatprep.subr.mxu0 0.0
          %1190 = vmatpush1.xpose.msra.mxu0 0.0
          %1191 = vmatprep.subr.mxu0 0.0
          %1192 = vmatpush1.xpose.msra.mxu0 0.0
          %1193 = vmatprep.subr.mxu0 0.0
          %1194 = vmatpush1.xpose.msra.mxu0 0.0
          %1195 = vmatprep.subr.mxu0 0.0
          %1196 = vmatpush1.xpose.msra.mxu0 0.0
          %1197 = vmatprep.subr.mxu0 0.0
          %1198 = vmatpush1.xpose.msra.mxu0 0.0
          %1199 = vmatprep.subr.mxu0 0.0
          %1200 = vmatpush1.xpose.msra.mxu0 0.0
          %1201 = vmatprep.subr.mxu0 0.0
          %1202 = vmatpush1.xpose.msra.mxu0 0.0
          %1203 = vmatprep.subr.mxu0 0.0
          %1204 = vmatpush1.xpose.msra.mxu0 0.0
          %1205 = vmatprep.subr.mxu0 0.0
          %1206 = vmatpush1.xpose.msra.mxu0 0.0
          %1207 = vmatprep.subr.mxu0 0.0
          %1208 = vmatpush1.xpose.msra.mxu0 0.0
          %1209 = vmatprep.subr.mxu0 0.0
          %1210 = vmatpush1.xpose.msra.mxu0 0.0
          %1211 = vmatprep.subr.mxu0 0.0
          %1212 = vmatpush1.xpose.msra.mxu0 0.0
          %1213 = vmatprep.subr.mxu0 0.0
          %1214 = vmatpush1.xpose.msra.mxu0 0.0
          %1215 = vmatprep.mubr.f32.mxu0 0.0
          %1216 = vmatmul.mubr.f32.gmra.mrb[0].mxu0 %v1147
          %v1217 = vpop.f32.mrb[0].mxu0
          %v1218 = vadd.f32 0.0, %v1217
          %v1219 = vpop.f32.mrb[0].mxu0
          %1220 = vdwg.mxu0
          %v1221 = vsel %vm1027, %v1218, -inf
          %v1222 = vld [vmem:[#allocation3] sm:$0xff]
          %v1223 = vsel %vm1145, %v1221, -inf
          %1224 = vmax.xlane.f32.xlu0 %v1223
          %v1225 = vpop.xlane.xlu0 %1224
          %v1226 = vmax.f32 %v1222, %v1225
          %v1227 = vsub.f32 %v1222, %v1226
          %v1228 = vmul.f32 %v1227, 1.442695
          %v1229 = vpow.pop %v1228
          %1231 = vset.pattern.permute.xlu0 0
          %1232 = vperm.xlu0 %1231, %v1226
          %v1233 = vpop.permute.xlu0 %1232
          %v1235 = vsub.f32 %v1221, %v1233
          %v1236 = vmul.f32 %v1235, 1.442695
          %v1237 = vpow.pop %v1236
          %v1238 = vld [vmem:[#allocation4] sm:$0xff]
          %v1239 = vmul.f32 %v1229, %v1238
          %v1240 = vsel %vm1145, %v1237, 0.0
          %1241 = vadd.xlane.f32.xlu0 %v1240
          %v1242 = vpop.xlane.xlu0 %1241
          %v1243 = vadd.f32 %v1239, %v1242
          %vm1244 = vcmask 7168
          %1245 = vst.msk [vmem:[#allocation4] sm:$0xff] %vm1244, %v1243
          %v1246 = vld [vmem:[#allocation5] sm:$0xff]
          %1248 = vset.pattern.permute.xlu0 0
          %1249 = vperm.xlu0 %1248, %v1229
          %v1250 = vpop.permute.xlu0 %1249
          %v1252 = vmul.f32 %v1250, %v1246
          %v1253 = vld [vmem:[%s486] sm:$0x1]
          %v1254 = vld [vmem:[%s486 + $0x4] sm:$0x1]
          %v1255 = vld [vmem:[%s486 + $0x8] sm:$0x1]
          %v1256 = vld [vmem:[%s486 + $0xc] sm:$0x1]
          %v1257 = vld [vmem:[%s486 + $0x10] sm:$0x1]
          %v1258 = vld [vmem:[%s486 + $0x14] sm:$0x1]
          %v1259 = vld [vmem:[%s486 + $0x18] sm:$0x1]
          %v1260 = vld [vmem:[%s486 + $0x1c] sm:$0x1]
          %v1269 = vrot.slane %v1254, 7
          %v1270 = vsel %vm1069, %v1269, %v1253
          %v1271 = vrot.slane %v1255, 6
          %v1272 = vsel %vm1072, %v1271, %v1270
          %v1273 = vrot.slane %v1256, 5
          %v1274 = vsel %vm1075, %v1273, %v1272
          %v1275 = vrot.slane %v1257, 4
          %v1276 = vsel %vm1078, %v1275, %v1274
          %v1277 = vrot.slane %v1258, 3
          %v1278 = vsel %vm1081, %v1277, %v1276
          %v1279 = vrot.slane %v1259, 2
          %v1280 = vsel %vm1084, %v1279, %v1278
          %v1281 = vrot.slane %v1260, 1
          %v1282 = vsel %vm1087, %v1281, %v1280
          %v1285 = vsel %vm1145, %v1237, 0
          %1287 = vmatprep.subr.mxu0 0.0
          %1288 = vmatpush1.msra.mxu0 %v1282
          %1289 = vmatprep.subr.mxu0 0.0
          %1290 = vmatpush1.msra.mxu0 0.0
          %1291 = vmatprep.subr.mxu0 0.0
          %1292 = vmatpush1.msra.mxu0 0.0
          %1293 = vmatprep.subr.mxu0 0.0
          %1294 = vmatpush1.msra.mxu0 0.0
          %1295 = vmatprep.subr.mxu0 0.0
          %1296 = vmatpush1.msra.mxu0 0.0
          %1297 = vmatprep.subr.mxu0 0.0
          %1298 = vmatpush1.msra.mxu0 0.0
          %1299 = vmatprep.subr.mxu0 0.0
          %1300 = vmatpush1.msra.mxu0 0.0
          %1301 = vmatprep.subr.mxu0 0.0
          %1302 = vmatpush1.msra.mxu0 0.0
          %1303 = vmatprep.subr.mxu0 0.0
          %1304 = vmatpush1.msra.mxu0 0.0
          %1305 = vmatprep.subr.mxu0 0.0
          %1306 = vmatpush1.msra.mxu0 0.0
          %1307 = vmatprep.subr.mxu0 0.0
          %1308 = vmatpush1.msra.mxu0 0.0
          %1309 = vmatprep.subr.mxu0 0.0
          %1310 = vmatpush1.msra.mxu0 0.0
          %1311 = vmatprep.subr.mxu0 0.0
          %1312 = vmatpush1.msra.mxu0 0.0
          %1313 = vmatprep.subr.mxu0 0.0
          %1314 = vmatpush1.msra.mxu0 0.0
          %1315 = vmatprep.subr.mxu0 0.0
          %1316 = vmatpush1.msra.mxu0 0.0
          %1317 = vmatprep.subr.mxu0 0.0
          %1318 = vmatpush1.msra.mxu0 0.0
          %1319 = vmatprep.subr.mxu0 0.0
          %1320 = vmatpush1.msra.mxu0 0.0
          %1321 = vmatprep.subr.mxu0 0.0
          %1322 = vmatpush1.msra.mxu0 0.0
          %1323 = vmatprep.subr.mxu0 0.0
          %1324 = vmatpush1.msra.mxu0 0.0
          %1325 = vmatprep.subr.mxu0 0.0
          %1326 = vmatpush1.msra.mxu0 0.0
          %1327 = vmatprep.subr.mxu0 0.0
          %1328 = vmatpush1.msra.mxu0 0.0
          %1329 = vmatprep.subr.mxu0 0.0
          %1330 = vmatpush1.msra.mxu0 0.0
          %1331 = vmatprep.subr.mxu0 0.0
          %1332 = vmatpush1.msra.mxu0 0.0
          %1333 = vmatprep.subr.mxu0 0.0
          %1334 = vmatpush1.msra.mxu0 0.0
          %1335 = vmatprep.subr.mxu0 0.0
          %1336 = vmatpush1.msra.mxu0 0.0
          %1337 = vmatprep.subr.mxu0 0.0
          %1338 = vmatpush1.msra.mxu0 0.0
          %1339 = vmatprep.subr.mxu0 0.0
          %1340 = vmatpush1.msra.mxu0 0.0
          %1341 = vmatprep.subr.mxu0 0.0
          %1342 = vmatpush1.msra.mxu0 0.0
          %1343 = vmatprep.subr.mxu0 0.0
          %1344 = vmatpush1.msra.mxu0 0.0
          %1345 = vmatprep.subr.mxu0 0.0
          %1346 = vmatpush1.msra.mxu0 0.0
          %1347 = vmatprep.subr.mxu0 0.0
          %1348 = vmatpush1.msra.mxu0 0.0
          %1349 = vmatprep.subr.mxu0 0.0
          %1350 = vmatpush1.msra.mxu0 0.0
          %1351 = vmatprep.mubr.f32.mxu0 0.0
          %1352 = vmatmul.mubr.f32.gmra.mrb[0].mxu0 %v1285
          %v1353 = vpop.f32.mrb[0].mxu0
          %v1354 = vadd.f32 0.0, %v1353
          %v1355 = vpop.f32.mrb[0].mxu0
          %1356 = vdwg.mxu0
          %v1357 = vadd.f32 %v1252, %v1354
          %1358 = vst.msk [vmem:[#allocation5] sm:$0xff] %vm1145, %v1357
          %1359 = vst.msk [vmem:[#allocation3] sm:$0xff] %vm1244, %v1226
          %v1360 = vld [vmem:[%s479 + $0x1] sm:$0x1]
          %v1361 = vld [vmem:[%s479 + $0x5] sm:$0x1]
          %v1362 = vld [vmem:[%s479 + $0x9] sm:$0x1]
          %v1363 = vld [vmem:[%s479 + $0xd] sm:$0x1]
          %v1364 = vld [vmem:[%s479 + $0x11] sm:$0x1]
          %v1365 = vld [vmem:[%s479 + $0x15] sm:$0x1]
          %v1366 = vld [vmem:[%s479 + $0x19] sm:$0x1]
          %v1367 = vld [vmem:[%s479 + $0x1d] sm:$0x1]
          %v1368 = vmul.f32 %v1360, %v1016
          %v1369 = vmul.f32 %v1361, %v1037
          %v1370 = vmul.f32 %v1362, %v1038
          %v1371 = vmul.f32 %v1363, %v1039
          %v1372 = vmul.f32 %v1364, %v1040
          %v1373 = vmul.f32 %v1365, %v1041
          %v1374 = vmul.f32 %v1366, %v1042
          %v1375 = vmul.f32 %v1367, %v1043
          %v1384 = vrot.slane %v1361, 7
          %v1385 = vsel %vm1069, %v1384, %v1360
          %v1386 = vrot.slane %v1362, 6
          %v1387 = vsel %vm1072, %v1386, %v1385
          %v1388 = vrot.slane %v1363, 5
          %v1389 = vsel %vm1075, %v1388, %v1387
          %v1390 = vrot.slane %v1364, 4
          %v1391 = vsel %vm1078, %v1390, %v1389
          %v1392 = vrot.slane %v1365, 3
          %v1393 = vsel %vm1081, %v1392, %v1391
          %v1394 = vrot.slane %v1366, 2
          %v1395 = vsel %vm1084, %v1394, %v1393
          %v1396 = vrot.slane %v1367, 1
          %v1397 = vsel %vm1087, %v1396, %v1395
          %1398 = vrot.lane.b32.xlu0 %v1397, 124
          %v1399 = vpop.permute.xlu0 %1398
          %1401 = vrot.lane.b32.xlu0 %v1397, 4
          %v1402 = vpop.permute.xlu0 %1401
          %v1404 = vsel %vm1095, %v1399, %v1402
          %v1405 = vmul.f32 %v1404, %v1017
          %v1407 = vrot.slane %v1405, 1
          %v1408 = vrot.slane %v1405, 2
          %v1409 = vrot.slane %v1405, 3
          %v1410 = vrot.slane %v1405, 4
          %v1411 = vrot.slane %v1405, 5
          %v1412 = vrot.slane %v1405, 6
          %v1413 = vrot.slane %v1405, 7
          %v1422 = vadd.f32 %v1368, %v1405
          %v1423 = vadd.f32 %v1369, %v1407
          %v1424 = vadd.f32 %v1370, %v1408
          %v1425 = vadd.f32 %v1371, %v1409
          %v1426 = vadd.f32 %v1372, %v1410
          %v1427 = vadd.f32 %v1373, %v1411
          %v1428 = vadd.f32 %v1374, %v1412
          %v1429 = vadd.f32 %v1375, %v1413
          %s1430 = scalar_lea.vmem [#allocation2], 8
          %v1431 = vld [vmem:[%s1430] sm:$0xff]
          %v1440 = vrot.slane %v1423, 7
          %v1441 = vsel %vm1069, %v1440, %v1422
          %v1442 = vrot.slane %v1424, 6
          %v1443 = vsel %vm1072, %v1442, %v1441
          %v1444 = vrot.slane %v1425, 5
          %v1445 = vsel %vm1075, %v1444, %v1443
          %v1446 = vrot.slane %v1426, 4
          %v1447 = vsel %vm1078, %v1446, %v1445
          %v1448 = vrot.slane %v1427, 3
          %v1449 = vsel %vm1081, %v1448, %v1447
          %v1450 = vrot.slane %v1428, 2
          %v1451 = vsel %vm1084, %v1450, %v1449
          %v1452 = vrot.slane %v1429, 1
          %v1453 = vsel %vm1087, %v1452, %v1451
          %v1455 = vsel %vm1145, %v1431, 0
          %v1457 = vsel %vm1145, %v1453, 0
          %1459 = vmatprep.subr.mxu0 0.0
          %1460 = vmatpush1.xpose.msra.mxu0 %v1457
          %1461 = vmatprep.subr.mxu0 0.0
          %1462 = vmatpush1.xpose.msra.mxu0 0.0
          %1463 = vmatprep.subr.mxu0 0.0
          %1464 = vmatpush1.xpose.msra.mxu0 0.0
          %1465 = vmatprep.subr.mxu0 0.0
          %1466 = vmatpush1.xpose.msra.mxu0 0.0
          %1467 = vmatprep.subr.mxu0 0.0
          %1468 = vmatpush1.xpose.msra.mxu0 0.0
          %1469 = vmatprep.subr.mxu0 0.0
          %1470 = vmatpush1.xpose.msra.mxu0 0.0
          %1471 = vmatprep.subr.mxu0 0.0
          %1472 = vmatpush1.xpose.msra.mxu0 0.0
          %1473 = vmatprep.subr.mxu0 0.0
          %1474 = vmatpush1.xpose.msra.mxu0 0.0
          %1475 = vmatprep.subr.mxu0 0.0
          %1476 = vmatpush1.xpose.msra.mxu0 0.0
          %1477 = vmatprep.subr.mxu0 0.0
          %1478 = vmatpush1.xpose.msra.mxu0 0.0
          %1479 = vmatprep.subr.mxu0 0.0
          %1480 = vmatpush1.xpose.msra.mxu0 0.0
          %1481 = vmatprep.subr.mxu0 0.0
          %1482 = vmatpush1.xpose.msra.mxu0 0.0
          %1483 = vmatprep.subr.mxu0 0.0
          %1484 = vmatpush1.xpose.msra.mxu0 0.0
          %1485 = vmatprep.subr.mxu0 0.0
          %1486 = vmatpush1.xpose.msra.mxu0 0.0
          %1487 = vmatprep.subr.mxu0 0.0
          %1488 = vmatpush1.xpose.msra.mxu0 0.0
          %1489 = vmatprep.subr.mxu0 0.0
          %1490 = vmatpush1.xpose.msra.mxu0 0.0
          %1491 = vmatprep.subr.mxu0 0.0
          %1492 = vmatpush1.xpose.msra.mxu0 0.0
          %1493 = vmatprep.subr.mxu0 0.0
          %1494 = vmatpush1.xpose.msra.mxu0 0.0
          %1495 = vmatprep.subr.mxu0 0.0
          %1496 = vmatpush1.xpose.msra.mxu0 0.0
          %1497 = vmatprep.subr.mxu0 0.0
          %1498 = vmatpush1.xpose.msra.mxu0 0.0
          %1499 = vmatprep.subr.mxu0 0.0
          %1500 = vmatpush1.xpose.msra.mxu0 0.0
          %1501 = vmatprep.subr.mxu0 0.0
          %1502 = vmatpush1.xpose.msra.mxu0 0.0
          %1503 = vmatprep.subr.mxu0 0.0
          %1504 = vmatpush1.xpose.msra.mxu0 0.0
          %1505 = vmatprep.subr.mxu0 0.0
          %1506 = vmatpush1.xpose.msra.mxu0 0.0
          %1507 = vmatprep.subr.mxu0 0.0
          %1508 = vmatpush1.xpose.msra.mxu0 0.0
          %1509 = vmatprep.subr.mxu0 0.0
          %1510 = vmatpush1.xpose.msra.mxu0 0.0
          %1511 = vmatprep.subr.mxu0 0.0
          %1512 = vmatpush1.xpose.msra.mxu0 0.0
          %1513 = vmatprep.subr.mxu0 0.0
          %1514 = vmatpush1.xpose.msra.mxu0 0.0
          %1515 = vmatprep.subr.mxu0 0.0
          %1516 = vmatpush1.xpose.msra.mxu0 0.0
          %1517 = vmatprep.subr.mxu0 0.0
          %1518 = vmatpush1.xpose.msra.mxu0 0.0
          %1519 = vmatprep.subr.mxu0 0.0
          %1520 = vmatpush1.xpose.msra.mxu0 0.0
          %1521 = vmatprep.subr.mxu0 0.0
          %1522 = vmatpush1.xpose.msra.mxu0 0.0
          %1523 = vmatprep.mubr.f32.mxu0 0.0
          %1524 = vmatmul.mubr.f32.gmra.mrb[0].mxu0 %v1455
          %v1525 = vpop.f32.mrb[0].mxu0
          %v1526 = vadd.f32 0.0, %v1525
          %v1527 = vpop.f32.mrb[0].mxu0
          %1528 = vdwg.mxu0
          %v1529 = vsel %vm1027, %v1526, -inf
          %s1530 = scalar_lea.vmem [#allocation3], 8
          %v1531 = vld [vmem:[%s1530] sm:$0xff]
          %v1532 = vsel %vm1145, %v1529, -inf
          %1533 = vmax.xlane.f32.xlu0 %v1532
          %v1534 = vpop.xlane.xlu0 %1533
          %v1535 = vmax.f32 %v1531, %v1534
          %v1536 = vsub.f32 %v1531, %v1535
          %v1537 = vmul.f32 %v1536, 1.442695
          %v1538 = vpow.pop %v1537
          %1540 = vset.pattern.permute.xlu0 0
          %1541 = vperm.xlu0 %1540, %v1535
          %v1542 = vpop.permute.xlu0 %1541
          %v1544 = vsub.f32 %v1529, %v1542
          %v1545 = vmul.f32 %v1544, 1.442695
          %v1546 = vpow.pop %v1545
          %s1547 = scalar_lea.vmem [#allocation4], 8
          %v1548 = vld [vmem:[%s1547] sm:$0xff]
          %v1549 = vmul.f32 %v1538, %v1548
          %v1550 = vsel %vm1145, %v1546, 0.0
          %1551 = vadd.xlane.f32.xlu0 %v1550
          %v1552 = vpop.xlane.xlu0 %1551
          %v1553 = vadd.f32 %v1549, %v1552
          %1554 = vst.msk [vmem:[%s1547] sm:$0xff] %vm1244, %v1553
          %s1555 = scalar_lea.vmem [#allocation5], 8
          %v1556 = vld [vmem:[%s1555] sm:$0xff]
          %1558 = vset.pattern.permute.xlu0 0
          %1559 = vperm.xlu0 %1558, %v1538
          %v1560 = vpop.permute.xlu0 %1559
          %v1562 = vmul.f32 %v1560, %v1556
          %v1563 = vld [vmem:[%s486 + $0x1] sm:$0x1]
          %v1564 = vld [vmem:[%s486 + $0x5] sm:$0x1]
          %v1565 = vld [vmem:[%s486 + $0x9] sm:$0x1]
          %v1566 = vld [vmem:[%s486 + $0xd] sm:$0x1]
          %v1567 = vld [vmem:[%s486 + $0x11] sm:$0x1]
          %v1568 = vld [vmem:[%s486 + $0x15] sm:$0x1]
          %v1569 = vld [vmem:[%s486 + $0x19] sm:$0x1]
          %v1570 = vld [vmem:[%s486 + $0x1d] sm:$0x1]
          %v1579 = vrot.slane %v1564, 7
          %v1580 = vsel %vm1069, %v1579, %v1563
          %v1581 = vrot.slane %v1565, 6
          %v1582 = vsel %vm1072, %v1581, %v1580
          %v1583 = vrot.slane %v1566, 5
          %v1584 = vsel %vm1075, %v1583, %v1582
          %v1585 = vrot.slane %v1567, 4
          %v1586 = vsel %vm1078, %v1585, %v1584
          %v1587 = vrot.slane %v1568, 3
          %v1588 = vsel %vm1081, %v1587, %v1586
          %v1589 = vrot.slane %v1569, 2
          %v1590 = vsel %vm1084, %v1589, %v1588
          %v1591 = vrot.slane %v1570, 1
          %v1592 = vsel %vm1087, %v1591, %v1590
          %v1595 = vsel %vm1145, %v1546, 0
          %1597 = vmatprep.subr.mxu0 0.0
          %1598 = vmatpush1.msra.mxu0 %v1592
          %1599 = vmatprep.subr.mxu0 0.0
          %1600 = vmatpush1.msra.mxu0 0.0
          %1601 = vmatprep.subr.mxu0 0.0
          %1602 = vmatpush1.msra.mxu0 0.0
          %1603 = vmatprep.subr.mxu0 0.0
          %1604 = vmatpush1.msra.mxu0 0.0
          %1605 = vmatprep.subr.mxu0 0.0
          %1606 = vmatpush1.msra.mxu0 0.0
          %1607 = vmatprep.subr.mxu0 0.0
          %1608 = vmatpush1.msra.mxu0 0.0
          %1609 = vmatprep.subr.mxu0 0.0
          %1610 = vmatpush1.msra.mxu0 0.0
          %1611 = vmatprep.subr.mxu0 0.0
          %1612 = vmatpush1.msra.mxu0 0.0
          %1613 = vmatprep.subr.mxu0 0.0
          %1614 = vmatpush1.msra.mxu0 0.0
          %1615 = vmatprep.subr.mxu0 0.0
          %1616 = vmatpush1.msra.mxu0 0.0
          %1617 = vmatprep.subr.mxu0 0.0
          %1618 = vmatpush1.msra.mxu0 0.0
          %1619 = vmatprep.subr.mxu0 0.0
          %1620 = vmatpush1.msra.mxu0 0.0
          %1621 = vmatprep.subr.mxu0 0.0
          %1622 = vmatpush1.msra.mxu0 0.0
          %1623 = vmatprep.subr.mxu0 0.0
          %1624 = vmatpush1.msra.mxu0 0.0
          %1625 = vmatprep.subr.mxu0 0.0
          %1626 = vmatpush1.msra.mxu0 0.0
          %1627 = vmatprep.subr.mxu0 0.0
          %1628 = vmatpush1.msra.mxu0 0.0
          %1629 = vmatprep.subr.mxu0 0.0
          %1630 = vmatpush1.msra.mxu0 0.0
          %1631 = vmatprep.subr.mxu0 0.0
          %1632 = vmatpush1.msra.mxu0 0.0
          %1633 = vmatprep.subr.mxu0 0.0
          %1634 = vmatpush1.msra.mxu0 0.0
          %1635 = vmatprep.subr.mxu0 0.0
          %1636 = vmatpush1.msra.mxu0 0.0
          %1637 = vmatprep.subr.mxu0 0.0
          %1638 = vmatpush1.msra.mxu0 0.0
          %1639 = vmatprep.subr.mxu0 0.0
          %1640 = vmatpush1.msra.mxu0 0.0
          %1641 = vmatprep.subr.mxu0 0.0
          %1642 = vmatpush1.msra.mxu0 0.0
          %1643 = vmatprep.subr.mxu0 0.0
          %1644 = vmatpush1.msra.mxu0 0.0
          %1645 = vmatprep.subr.mxu0 0.0
          %1646 = vmatpush1.msra.mxu0 0.0
          %1647 = vmatprep.subr.mxu0 0.0
          %1648 = vmatpush1.msra.mxu0 0.0
          %1649 = vmatprep.subr.mxu0 0.0
          %1650 = vmatpush1.msra.mxu0 0.0
          %1651 = vmatprep.subr.mxu0 0.0
          %1652 = vmatpush1.msra.mxu0 0.0
          %1653 = vmatprep.subr.mxu0 0.0
          %1654 = vmatpush1.msra.mxu0 0.0
          %1655 = vmatprep.subr.mxu0 0.0
          %1656 = vmatpush1.msra.mxu0 0.0
          %1657 = vmatprep.subr.mxu0 0.0
          %1658 = vmatpush1.msra.mxu0 0.0
          %1659 = vmatprep.subr.mxu0 0.0
          %1660 = vmatpush1.msra.mxu0 0.0
          %1661 = vmatprep.mubr.f32.mxu0 0.0
          %1662 = vmatmul.mubr.f32.gmra.mrb[0].mxu0 %v1595
          %v1663 = vpop.f32.mrb[0].mxu0
          %v1664 = vadd.f32 0.0, %v1663
          %v1665 = vpop.f32.mrb[0].mxu0
          %1666 = vdwg.mxu0
          %v1667 = vadd.f32 %v1562, %v1664
          %1668 = vst.msk [vmem:[%s1555] sm:$0xff] %vm1145, %v1667
          %1669 = vst.msk [vmem:[%s1530] sm:$0xff] %vm1244, %v1535
          %v1670 = vld [vmem:[%s479 + $0x2] sm:$0x1]
          %v1671 = vld [vmem:[%s479 + $0x6] sm:$0x1]
          %v1672 = vld [vmem:[%s479 + $0xa] sm:$0x1]
          %v1673 = vld [vmem:[%s479 + $0xe] sm:$0x1]
          %v1674 = vld [vmem:[%s479 + $0x12] sm:$0x1]
          %v1675 = vld [vmem:[%s479 + $0x16] sm:$0x1]
          %v1676 = vld [vmem:[%s479 + $0x1a] sm:$0x1]
          %v1677 = vld [vmem:[%s479 + $0x1e] sm:$0x1]
          %v1678 = vmul.f32 %v1670, %v1016
          %v1679 = vmul.f32 %v1671, %v1037
          %v1680 = vmul.f32 %v1672, %v1038
          %v1681 = vmul.f32 %v1673, %v1039
          %v1682 = vmul.f32 %v1674, %v1040
          %v1683 = vmul.f32 %v1675, %v1041
          %v1684 = vmul.f32 %v1676, %v1042
          %v1685 = vmul.f32 %v1677, %v1043
          %v1694 = vrot.slane %v1671, 7
          %v1695 = vsel %vm1069, %v1694, %v1670
          %v1696 = vrot.slane %v1672, 6
          %v1697 = vsel %vm1072, %v1696, %v1695
          %v1698 = vrot.slane %v1673, 5
          %v1699 = vsel %vm1075, %v1698, %v1697
          %v1700 = vrot.slane %v1674, 4
          %v1701 = vsel %vm1078, %v1700, %v1699
          %v1702 = vrot.slane %v1675, 3
          %v1703 = vsel %vm1081, %v1702, %v1701
          %v1704 = vrot.slane %v1676, 2
          %v1705 = vsel %vm1084, %v1704, %v1703
          %v1706 = vrot.slane %v1677, 1
          %v1707 = vsel %vm1087, %v1706, %v1705
          %1708 = vrot.lane.b32.xlu0 %v1707, 124
          %v1709 = vpop.permute.xlu0 %1708
          %1711 = vrot.lane.b32.xlu0 %v1707, 4
          %v1712 = vpop.permute.xlu0 %1711
          %v1714 = vsel %vm1095, %v1709, %v1712
          %v1715 = vmul.f32 %v1714, %v1017
          %v1717 = vrot.slane %v1715, 1
          %v1718 = vrot.slane %v1715, 2
          %v1719 = vrot.slane %v1715, 3
          %v1720 = vrot.slane %v1715, 4
          %v1721 = vrot.slane %v1715, 5
          %v1722 = vrot.slane %v1715, 6
          %v1723 = vrot.slane %v1715, 7
          %v1732 = vadd.f32 %v1678, %v1715
          %v1733 = vadd.f32 %v1679, %v1717
          %v1734 = vadd.f32 %v1680, %v1718
          %v1735 = vadd.f32 %v1681, %v1719
          %v1736 = vadd.f32 %v1682, %v1720
          %v1737 = vadd.f32 %v1683, %v1721
          %v1738 = vadd.f32 %v1684, %v1722
          %v1739 = vadd.f32 %v1685, %v1723
          %s1740 = scalar_lea.vmem [#allocation2], 16
          %v1741 = vld [vmem:[%s1740] sm:$0xff]
          %v1750 = vrot.slane %v1733, 7
          %v1751 = vsel %vm1069, %v1750, %v1732
          %v1752 = vrot.slane %v1734, 6
          %v1753 = vsel %vm1072, %v1752, %v1751
          %v1754 = vrot.slane %v1735, 5
          %v1755 = vsel %vm1075, %v1754, %v1753
          %v1756 = vrot.slane %v1736, 4
          %v1757 = vsel %vm1078, %v1756, %v1755
          %v1758 = vrot.slane %v1737, 3
          %v1759 = vsel %vm1081, %v1758, %v1757
          %v1760 = vrot.slane %v1738, 2
          %v1761 = vsel %vm1084, %v1760, %v1759
          %v1762 = vrot.slane %v1739, 1
          %v1763 = vsel %vm1087, %v1762, %v1761
          %v1765 = vsel %vm1145, %v1741, 0
          %v1767 = vsel %vm1145, %v1763, 0
          %1769 = vmatprep.subr.mxu0 0.0
          %1770 = vmatpush1.xpose.msra.mxu0 %v1767
          %1771 = vmatprep.subr.mxu0 0.0
          %1772 = vmatpush1.xpose.msra.mxu0 0.0
          %1773 = vmatprep.subr.mxu0 0.0
          %1774 = vmatpush1.xpose.msra.mxu0 0.0
          %1775 = vmatprep.subr.mxu0 0.0
          %1776 = vmatpush1.xpose.msra.mxu0 0.0
          %1777 = vmatprep.subr.mxu0 0.0
          %1778 = vmatpush1.xpose.msra.mxu0 0.0
          %1779 = vmatprep.subr.mxu0 0.0
          %1780 = vmatpush1.xpose.msra.mxu0 0.0
          %1781 = vmatprep.subr.mxu0 0.0
          %1782 = vmatpush1.xpose.msra.mxu0 0.0
          %1783 = vmatprep.subr.mxu0 0.0
          %1784 = vmatpush1.xpose.msra.mxu0 0.0
          %1785 = vmatprep.subr.mxu0 0.0
          %1786 = vmatpush1.xpose.msra.mxu0 0.0
          %1787 = vmatprep.subr.mxu0 0.0
          %1788 = vmatpush1.xpose.msra.mxu0 0.0
          %1789 = vmatprep.subr.mxu0 0.0
          %1790 = vmatpush1.xpose.msra.mxu0 0.0
          %1791 = vmatprep.subr.mxu0 0.0
          %1792 = vmatpush1.xpose.msra.mxu0 0.0
          %1793 = vmatprep.subr.mxu0 0.0
          %1794 = vmatpush1.xpose.msra.mxu0 0.0
          %1795 = vmatprep.subr.mxu0 0.0
          %1796 = vmatpush1.xpose.msra.mxu0 0.0
          %1797 = vmatprep.subr.mxu0 0.0
          %1798 = vmatpush1.xpose.msra.mxu0 0.0
          %1799 = vmatprep.subr.mxu0 0.0
          %1800 = vmatpush1.xpose.msra.mxu0 0.0
          %1801 = vmatprep.subr.mxu0 0.0
          %1802 = vmatpush1.xpose.msra.mxu0 0.0
          %1803 = vmatprep.subr.mxu0 0.0
          %1804 = vmatpush1.xpose.msra.mxu0 0.0
          %1805 = vmatprep.subr.mxu0 0.0
          %1806 = vmatpush1.xpose.msra.mxu0 0.0
          %1807 = vmatprep.subr.mxu0 0.0
          %1808 = vmatpush1.xpose.msra.mxu0 0.0
          %1809 = vmatprep.subr.mxu0 0.0
          %1810 = vmatpush1.xpose.msra.mxu0 0.0
          %1811 = vmatprep.subr.mxu0 0.0
          %1812 = vmatpush1.xpose.msra.mxu0 0.0
          %1813 = vmatprep.subr.mxu0 0.0
          %1814 = vmatpush1.xpose.msra.mxu0 0.0
          %1815 = vmatprep.subr.mxu0 0.0
          %1816 = vmatpush1.xpose.msra.mxu0 0.0
          %1817 = vmatprep.subr.mxu0 0.0
          %1818 = vmatpush1.xpose.msra.mxu0 0.0
          %1819 = vmatprep.subr.mxu0 0.0
          %1820 = vmatpush1.xpose.msra.mxu0 0.0
          %1821 = vmatprep.subr.mxu0 0.0
          %1822 = vmatpush1.xpose.msra.mxu0 0.0
          %1823 = vmatprep.subr.mxu0 0.0
          %1824 = vmatpush1.xpose.msra.mxu0 0.0
          %1825 = vmatprep.subr.mxu0 0.0
          %1826 = vmatpush1.xpose.msra.mxu0 0.0
          %1827 = vmatprep.subr.mxu0 0.0
          %1828 = vmatpush1.xpose.msra.mxu0 0.0
          %1829 = vmatprep.subr.mxu0 0.0
          %1830 = vmatpush1.xpose.msra.mxu0 0.0
          %1831 = vmatprep.subr.mxu0 0.0
          %1832 = vmatpush1.xpose.msra.mxu0 0.0
          %1833 = vmatprep.mubr.f32.mxu0 0.0
          %1834 = vmatmul.mubr.f32.gmra.mrb[0].mxu0 %v1765
          %v1835 = vpop.f32.mrb[0].mxu0
          %v1836 = vadd.f32 0.0, %v1835
          %v1837 = vpop.f32.mrb[0].mxu0
          %1838 = vdwg.mxu0
          %v1839 = vsel %vm1027, %v1836, -inf
          %s1840 = scalar_lea.vmem [#allocation3], 16
          %v1841 = vld [vmem:[%s1840] sm:$0xff]
          %v1842 = vsel %vm1145, %v1839, -inf
          %1843 = vmax.xlane.f32.xlu0 %v1842
          %v1844 = vpop.xlane.xlu0 %1843
          %v1845 = vmax.f32 %v1841, %v1844
          %v1846 = vsub.f32 %v1841, %v1845
          %v1847 = vmul.f32 %v1846, 1.442695
          %v1848 = vpow.pop %v1847
          %1850 = vset.pattern.permute.xlu0 0
          %1851 = vperm.xlu0 %1850, %v1845
          %v1852 = vpop.permute.xlu0 %1851
          %v1854 = vsub.f32 %v1839, %v1852
          %v1855 = vmul.f32 %v1854, 1.442695
          %v1856 = vpow.pop %v1855
          %s1857 = scalar_lea.vmem [#allocation4], 16
          %v1858 = vld [vmem:[%s1857] sm:$0xff]
          %v1859 = vmul.f32 %v1848, %v1858
          %v1860 = vsel %vm1145, %v1856, 0.0
          %1861 = vadd.xlane.f32.xlu0 %v1860
          %v1862 = vpop.xlane.xlu0 %1861
          %v1863 = vadd.f32 %v1859, %v1862
          %1864 = vst.msk [vmem:[%s1857] sm:$0xff] %vm1244, %v1863
          %s1865 = scalar_lea.vmem [#allocation5], 16
          %v1866 = vld [vmem:[%s1865] sm:$0xff]
          %1868 = vset.pattern.permute.xlu0 0
          %1869 = vperm.xlu0 %1868, %v1848
          %v1870 = vpop.permute.xlu0 %1869
          %v1872 = vmul.f32 %v1870, %v1866
          %v1873 = vld [vmem:[%s486 + $0x2] sm:$0x1]
          %v1874 = vld [vmem:[%s486 + $0x6] sm:$0x1]
          %v1875 = vld [vmem:[%s486 + $0xa] sm:$0x1]
          %v1876 = vld [vmem:[%s486 + $0xe] sm:$0x1]
          %v1877 = vld [vmem:[%s486 + $0x12] sm:$0x1]
          %v1878 = vld [vmem:[%s486 + $0x16] sm:$0x1]
          %v1879 = vld [vmem:[%s486 + $0x1a] sm:$0x1]
          %v1880 = vld [vmem:[%s486 + $0x1e] sm:$0x1]
          %v1889 = vrot.slane %v1874, 7
          %v1890 = vsel %vm1069, %v1889, %v1873
          %v1891 = vrot.slane %v1875, 6
          %v1892 = vsel %vm1072, %v1891, %v1890
          %v1893 = vrot.slane %v1876, 5
          %v1894 = vsel %vm1075, %v1893, %v1892
          %v1895 = vrot.slane %v1877, 4
          %v1896 = vsel %vm1078, %v1895, %v1894
          %v1897 = vrot.slane %v1878, 3
          %v1898 = vsel %vm1081, %v1897, %v1896
          %v1899 = vrot.slane %v1879, 2
          %v1900 = vsel %vm1084, %v1899, %v1898
          %v1901 = vrot.slane %v1880, 1
          %v1902 = vsel %vm1087, %v1901, %v1900
          %v1905 = vsel %vm1145, %v1856, 0
          %1907 = vmatprep.subr.mxu0 0.0
          %1908 = vmatpush1.msra.mxu0 %v1902
          %1909 = vmatprep.subr.mxu0 0.0
          %1910 = vmatpush1.msra.mxu0 0.0
          %1911 = vmatprep.subr.mxu0 0.0
          %1912 = vmatpush1.msra.mxu0 0.0
          %1913 = vmatprep.subr.mxu0 0.0
          %1914 = vmatpush1.msra.mxu0 0.0
          %1915 = vmatprep.subr.mxu0 0.0
          %1916 = vmatpush1.msra.mxu0 0.0
          %1917 = vmatprep.subr.mxu0 0.0
          %1918 = vmatpush1.msra.mxu0 0.0
          %1919 = vmatprep.subr.mxu0 0.0
          %1920 = vmatpush1.msra.mxu0 0.0
          %1921 = vmatprep.subr.mxu0 0.0
          %1922 = vmatpush1.msra.mxu0 0.0
          %1923 = vmatprep.subr.mxu0 0.0
          %1924 = vmatpush1.msra.mxu0 0.0
          %1925 = vmatprep.subr.mxu0 0.0
          %1926 = vmatpush1.msra.mxu0 0.0
          %1927 = vmatprep.subr.mxu0 0.0
          %1928 = vmatpush1.msra.mxu0 0.0
          %1929 = vmatprep.subr.mxu0 0.0
          %1930 = vmatpush1.msra.mxu0 0.0
          %1931 = vmatprep.subr.mxu0 0.0
          %1932 = vmatpush1.msra.mxu0 0.0
          %1933 = vmatprep.subr.mxu0 0.0
          %1934 = vmatpush1.msra.mxu0 0.0
          %1935 = vmatprep.subr.mxu0 0.0
          %1936 = vmatpush1.msra.mxu0 0.0
          %1937 = vmatprep.subr.mxu0 0.0
          %1938 = vmatpush1.msra.mxu0 0.0
          %1939 = vmatprep.subr.mxu0 0.0
          %1940 = vmatpush1.msra.mxu0 0.0
          %1941 = vmatprep.subr.mxu0 0.0
          %1942 = vmatpush1.msra.mxu0 0.0
          %1943 = vmatprep.subr.mxu0 0.0
          %1944 = vmatpush1.msra.mxu0 0.0
          %1945 = vmatprep.subr.mxu0 0.0
          %1946 = vmatpush1.msra.mxu0 0.0
          %1947 = vmatprep.subr.mxu0 0.0
          %1948 = vmatpush1.msra.mxu0 0.0
          %1949 = vmatprep.subr.mxu0 0.0
          %1950 = vmatpush1.msra.mxu0 0.0
          %1951 = vmatprep.subr.mxu0 0.0
          %1952 = vmatpush1.msra.mxu0 0.0
          %1953 = vmatprep.subr.mxu0 0.0
          %1954 = vmatpush1.msra.mxu0 0.0
          %1955 = vmatprep.subr.mxu0 0.0
          %1956 = vmatpush1.msra.mxu0 0.0
          %1957 = vmatprep.subr.mxu0 0.0
          %1958 = vmatpush1.msra.mxu0 0.0
          %1959 = vmatprep.subr.mxu0 0.0
          %1960 = vmatpush1.msra.mxu0 0.0
          %1961 = vmatprep.subr.mxu0 0.0
          %1962 = vmatpush1.msra.mxu0 0.0
          %1963 = vmatprep.subr.mxu0 0.0
          %1964 = vmatpush1.msra.mxu0 0.0
          %1965 = vmatprep.subr.mxu0 0.0
          %1966 = vmatpush1.msra.mxu0 0.0
          %1967 = vmatprep.subr.mxu0 0.0
          %1968 = vmatpush1.msra.mxu0 0.0
          %1969 = vmatprep.subr.mxu0 0.0
          %1970 = vmatpush1.msra.mxu0 0.0
          %1971 = vmatprep.mubr.f32.mxu0 0.0
          %1972 = vmatmul.mubr.f32.gmra.mrb[0].mxu0 %v1905
          %v1973 = vpop.f32.mrb[0].mxu0
          %v1974 = vadd.f32 0.0, %v1973
          %v1975 = vpop.f32.mrb[0].mxu0
          %1976 = vdwg.mxu0
          %v1977 = vadd.f32 %v1872, %v1974
          %1978 = vst.msk [vmem:[%s1865] sm:$0xff] %vm1145, %v1977
          %1979 = vst.msk [vmem:[%s1840] sm:$0xff] %vm1244, %v1845
          %v1980 = vld [vmem:[%s479 + $0x3] sm:$0x1]
          %v1981 = vld [vmem:[%s479 + $0x7] sm:$0x1]
          %v1982 = vld [vmem:[%s479 + $0xb] sm:$0x1]
          %v1983 = vld [vmem:[%s479 + $0xf] sm:$0x1]
          %v1984 = vld [vmem:[%s479 + $0x13] sm:$0x1]
          %v1985 = vld [vmem:[%s479 + $0x17] sm:$0x1]
          %v1986 = vld [vmem:[%s479 + $0x1b] sm:$0x1]
          %v1987 = vld [vmem:[%s479 + $0x1f] sm:$0x1]
          %v1988 = vmul.f32 %v1980, %v1016
          %v1989 = vmul.f32 %v1981, %v1037
          %v1990 = vmul.f32 %v1982, %v1038
          %v1991 = vmul.f32 %v1983, %v1039
          %v1992 = vmul.f32 %v1984, %v1040
          %v1993 = vmul.f32 %v1985, %v1041
          %v1994 = vmul.f32 %v1986, %v1042
          %v1995 = vmul.f32 %v1987, %v1043
          %v2004 = vrot.slane %v1981, 7
          %v2005 = vsel %vm1069, %v2004, %v1980
          %v2006 = vrot.slane %v1982, 6
          %v2007 = vsel %vm1072, %v2006, %v2005
          %v2008 = vrot.slane %v1983, 5
          %v2009 = vsel %vm1075, %v2008, %v2007
          %v2010 = vrot.slane %v1984, 4
          %v2011 = vsel %vm1078, %v2010, %v2009
          %v2012 = vrot.slane %v1985, 3
          %v2013 = vsel %vm1081, %v2012, %v2011
          %v2014 = vrot.slane %v1986, 2
          %v2015 = vsel %vm1084, %v2014, %v2013
          %v2016 = vrot.slane %v1987, 1
          %v2017 = vsel %vm1087, %v2016, %v2015
          %2018 = vrot.lane.b32.xlu0 %v2017, 124
          %v2019 = vpop.permute.xlu0 %2018
          %2021 = vrot.lane.b32.xlu0 %v2017, 4
          %v2022 = vpop.permute.xlu0 %2021
          %v2024 = vsel %vm1095, %v2019, %v2022
          %v2025 = vmul.f32 %v2024, %v1017
          %v2027 = vrot.slane %v2025, 1
          %v2028 = vrot.slane %v2025, 2
          %v2029 = vrot.slane %v2025, 3
          %v2030 = vrot.slane %v2025, 4
          %v2031 = vrot.slane %v2025, 5
          %v2032 = vrot.slane %v2025, 6
          %v2033 = vrot.slane %v2025, 7
          %v2042 = vadd.f32 %v1988, %v2025
          %v2043 = vadd.f32 %v1989, %v2027
          %v2044 = vadd.f32 %v1990, %v2028
          %v2045 = vadd.f32 %v1991, %v2029
          %v2046 = vadd.f32 %v1992, %v2030
          %v2047 = vadd.f32 %v1993, %v2031
          %v2048 = vadd.f32 %v1994, %v2032
          %v2049 = vadd.f32 %v1995, %v2033
          %s2050 = scalar_lea.vmem [#allocation2], 24
          %v2051 = vld [vmem:[%s2050] sm:$0xff]
          %v2060 = vrot.slane %v2043, 7
          %v2061 = vsel %vm1069, %v2060, %v2042
          %v2062 = vrot.slane %v2044, 6
          %v2063 = vsel %vm1072, %v2062, %v2061
          %v2064 = vrot.slane %v2045, 5
          %v2065 = vsel %vm1075, %v2064, %v2063
          %v2066 = vrot.slane %v2046, 4
          %v2067 = vsel %vm1078, %v2066, %v2065
          %v2068 = vrot.slane %v2047, 3
          %v2069 = vsel %vm1081, %v2068, %v2067
          %v2070 = vrot.slane %v2048, 2
          %v2071 = vsel %vm1084, %v2070, %v2069
          %v2072 = vrot.slane %v2049, 1
          %v2073 = vsel %vm1087, %v2072, %v2071
          %v2075 = vsel %vm1145, %v2051, 0
          %v2077 = vsel %vm1145, %v2073, 0
          %2079 = vmatprep.subr.mxu0 0.0
          %2080 = vmatpush1.xpose.msra.mxu0 %v2077
          %2081 = vmatprep.subr.mxu0 0.0
          %2082 = vmatpush1.xpose.msra.mxu0 0.0
          %2083 = vmatprep.subr.mxu0 0.0
          %2084 = vmatpush1.xpose.msra.mxu0 0.0
          %2085 = vmatprep.subr.mxu0 0.0
          %2086 = vmatpush1.xpose.msra.mxu0 0.0
          %2087 = vmatprep.subr.mxu0 0.0
          %2088 = vmatpush1.xpose.msra.mxu0 0.0
          %2089 = vmatprep.subr.mxu0 0.0
          %2090 = vmatpush1.xpose.msra.mxu0 0.0
          %2091 = vmatprep.subr.mxu0 0.0
          %2092 = vmatpush1.xpose.msra.mxu0 0.0
          %2093 = vmatprep.subr.mxu0 0.0
          %2094 = vmatpush1.xpose.msra.mxu0 0.0
          %2095 = vmatprep.subr.mxu0 0.0
          %2096 = vmatpush1.xpose.msra.mxu0 0.0
          %2097 = vmatprep.subr.mxu0 0.0
          %2098 = vmatpush1.xpose.msra.mxu0 0.0
          %2099 = vmatprep.subr.mxu0 0.0
          %2100 = vmatpush1.xpose.msra.mxu0 0.0
          %2101 = vmatprep.subr.mxu0 0.0
          %2102 = vmatpush1.xpose.msra.mxu0 0.0
          %2103 = vmatprep.subr.mxu0 0.0
          %2104 = vmatpush1.xpose.msra.mxu0 0.0
          %2105 = vmatprep.subr.mxu0 0.0
          %2106 = vmatpush1.xpose.msra.mxu0 0.0
          %2107 = vmatprep.subr.mxu0 0.0
          %2108 = vmatpush1.xpose.msra.mxu0 0.0
          %2109 = vmatprep.subr.mxu0 0.0
          %2110 = vmatpush1.xpose.msra.mxu0 0.0
          %2111 = vmatprep.subr.mxu0 0.0
          %2112 = vmatpush1.xpose.msra.mxu0 0.0
          %2113 = vmatprep.subr.mxu0 0.0
          %2114 = vmatpush1.xpose.msra.mxu0 0.0
          %2115 = vmatprep.subr.mxu0 0.0
          %2116 = vmatpush1.xpose.msra.mxu0 0.0
          %2117 = vmatprep.subr.mxu0 0.0
          %2118 = vmatpush1.xpose.msra.mxu0 0.0
          %2119 = vmatprep.subr.mxu0 0.0
          %2120 = vmatpush1.xpose.msra.mxu0 0.0
          %2121 = vmatprep.subr.mxu0 0.0
          %2122 = vmatpush1.xpose.msra.mxu0 0.0
          %2123 = vmatprep.subr.mxu0 0.0
          %2124 = vmatpush1.xpose.msra.mxu0 0.0
          %2125 = vmatprep.subr.mxu0 0.0
          %2126 = vmatpush1.xpose.msra.mxu0 0.0
          %2127 = vmatprep.subr.mxu0 0.0
          %2128 = vmatpush1.xpose.msra.mxu0 0.0
          %2129 = vmatprep.subr.mxu0 0.0
          %2130 = vmatpush1.xpose.msra.mxu0 0.0
          %2131 = vmatprep.subr.mxu0 0.0
          %2132 = vmatpush1.xpose.msra.mxu0 0.0
          %2133 = vmatprep.subr.mxu0 0.0
          %2134 = vmatpush1.xpose.msra.mxu0 0.0
          %2135 = vmatprep.subr.mxu0 0.0
          %2136 = vmatpush1.xpose.msra.mxu0 0.0
          %2137 = vmatprep.subr.mxu0 0.0
          %2138 = vmatpush1.xpose.msra.mxu0 0.0
          %2139 = vmatprep.subr.mxu0 0.0
          %2140 = vmatpush1.xpose.msra.mxu0 0.0
          %2141 = vmatprep.subr.mxu0 0.0
          %2142 = vmatpush1.xpose.msra.mxu0 0.0
          %2143 = vmatprep.mubr.f32.mxu0 0.0
          %2144 = vmatmul.mubr.f32.gmra.mrb[0].mxu0 %v2075
          %v2145 = vpop.f32.mrb[0].mxu0
          %v2146 = vadd.f32 0.0, %v2145
          %v2147 = vpop.f32.mrb[0].mxu0
          %2148 = vdwg.mxu0
          %v2149 = vsel %vm1027, %v2146, -inf
          %s2150 = scalar_lea.vmem [#allocation3], 24
          %v2151 = vld [vmem:[%s2150] sm:$0xff]
          %v2152 = vsel %vm1145, %v2149, -inf
          %2153 = vmax.xlane.f32.xlu0 %v2152
          %v2154 = vpop.xlane.xlu0 %2153
          %v2155 = vmax.f32 %v2151, %v2154
          %v2156 = vsub.f32 %v2151, %v2155
          %v2157 = vmul.f32 %v2156, 1.442695
          %v2158 = vpow.pop %v2157
          %2160 = vset.pattern.permute.xlu0 0
          %2161 = vperm.xlu0 %2160, %v2155
          %v2162 = vpop.permute.xlu0 %2161
          %v2164 = vsub.f32 %v2149, %v2162
          %v2165 = vmul.f32 %v2164, 1.442695
          %v2166 = vpow.pop %v2165
          %s2167 = scalar_lea.vmem [#allocation4], 24
          %v2168 = vld [vmem:[%s2167] sm:$0xff]
          %v2169 = vmul.f32 %v2158, %v2168
          %v2170 = vsel %vm1145, %v2166, 0.0
          %2171 = vadd.xlane.f32.xlu0 %v2170
          %v2172 = vpop.xlane.xlu0 %2171
          %v2173 = vadd.f32 %v2169, %v2172
          %2174 = vst.msk [vmem:[%s2167] sm:$0xff] %vm1244, %v2173
          %s2175 = scalar_lea.vmem [#allocation5], 24
          %v2176 = vld [vmem:[%s2175] sm:$0xff]
          %2178 = vset.pattern.permute.xlu0 0
          %2179 = vperm.xlu0 %2178, %v2158
          %v2180 = vpop.permute.xlu0 %2179
          %v2182 = vmul.f32 %v2180, %v2176
          %v2183 = vld [vmem:[%s486 + $0x3] sm:$0x1]
          %v2184 = vld [vmem:[%s486 + $0x7] sm:$0x1]
          %v2185 = vld [vmem:[%s486 + $0xb] sm:$0x1]
          %v2186 = vld [vmem:[%s486 + $0xf] sm:$0x1]
          %v2187 = vld [vmem:[%s486 + $0x13] sm:$0x1]
          %v2188 = vld [vmem:[%s486 + $0x17] sm:$0x1]
          %v2189 = vld [vmem:[%s486 + $0x1b] sm:$0x1]
          %v2190 = vld [vmem:[%s486 + $0x1f] sm:$0x1]
          %v2199 = vrot.slane %v2184, 7
          %v2200 = vsel %vm1069, %v2199, %v2183
          %v2201 = vrot.slane %v2185, 6
          %v2202 = vsel %vm1072, %v2201, %v2200
          %v2203 = vrot.slane %v2186, 5
          %v2204 = vsel %vm1075, %v2203, %v2202
          %v2205 = vrot.slane %v2187, 4
          %v2206 = vsel %vm1078, %v2205, %v2204
          %v2207 = vrot.slane %v2188, 3
          %v2208 = vsel %vm1081, %v2207, %v2206
          %v2209 = vrot.slane %v2189, 2
          %v2210 = vsel %vm1084, %v2209, %v2208
          %v2211 = vrot.slane %v2190, 1
          %v2212 = vsel %vm1087, %v2211, %v2210
          %v2215 = vsel %vm1145, %v2166, 0
          %2217 = vmatprep.subr.mxu0 0.0
          %2218 = vmatpush1.msra.mxu0 %v2212
          %2219 = vmatprep.subr.mxu0 0.0
          %2220 = vmatpush1.msra.mxu0 0.0
          %2221 = vmatprep.subr.mxu0 0.0
          %2222 = vmatpush1.msra.mxu0 0.0
          %2223 = vmatprep.subr.mxu0 0.0
          %2224 = vmatpush1.msra.mxu0 0.0
          %2225 = vmatprep.subr.mxu0 0.0
          %2226 = vmatpush1.msra.mxu0 0.0
          %2227 = vmatprep.subr.mxu0 0.0
          %2228 = vmatpush1.msra.mxu0 0.0
          %2229 = vmatprep.subr.mxu0 0.0
          %2230 = vmatpush1.msra.mxu0 0.0
          %2231 = vmatprep.subr.mxu0 0.0
          %2232 = vmatpush1.msra.mxu0 0.0
          %2233 = vmatprep.subr.mxu0 0.0
          %2234 = vmatpush1.msra.mxu0 0.0
          %2235 = vmatprep.subr.mxu0 0.0
          %2236 = vmatpush1.msra.mxu0 0.0
          %2237 = vmatprep.subr.mxu0 0.0
          %2238 = vmatpush1.msra.mxu0 0.0
          %2239 = vmatprep.subr.mxu0 0.0
          %2240 = vmatpush1.msra.mxu0 0.0
          %2241 = vmatprep.subr.mxu0 0.0
          %2242 = vmatpush1.msra.mxu0 0.0
          %2243 = vmatprep.subr.mxu0 0.0
          %2244 = vmatpush1.msra.mxu0 0.0
          %2245 = vmatprep.subr.mxu0 0.0
          %2246 = vmatpush1.msra.mxu0 0.0
          %2247 = vmatprep.subr.mxu0 0.0
          %2248 = vmatpush1.msra.mxu0 0.0
          %2249 = vmatprep.subr.mxu0 0.0
          %2250 = vmatpush1.msra.mxu0 0.0
          %2251 = vmatprep.subr.mxu0 0.0
          %2252 = vmatpush1.msra.mxu0 0.0
          %2253 = vmatprep.subr.mxu0 0.0
          %2254 = vmatpush1.msra.mxu0 0.0
          %2255 = vmatprep.subr.mxu0 0.0
          %2256 = vmatpush1.msra.mxu0 0.0
          %2257 = vmatprep.subr.mxu0 0.0
          %2258 = vmatpush1.msra.mxu0 0.0
          %2259 = vmatprep.subr.mxu0 0.0
          %2260 = vmatpush1.msra.mxu0 0.0
          %2261 = vmatprep.subr.mxu0 0.0
          %2262 = vmatpush1.msra.mxu0 0.0
          %2263 = vmatprep.subr.mxu0 0.0
          %2264 = vmatpush1.msra.mxu0 0.0
          %2265 = vmatprep.subr.mxu0 0.0
          %2266 = vmatpush1.msra.mxu0 0.0
          %2267 = vmatprep.subr.mxu0 0.0
          %2268 = vmatpush1.msra.mxu0 0.0
          %2269 = vmatprep.subr.mxu0 0.0
          %2270 = vmatpush1.msra.mxu0 0.0
          %2271 = vmatprep.subr.mxu0 0.0
          %2272 = vmatpush1.msra.mxu0 0.0
          %2273 = vmatprep.subr.mxu0 0.0
          %2274 = vmatpush1.msra.mxu0 0.0
          %2275 = vmatprep.subr.mxu0 0.0
          %2276 = vmatpush1.msra.mxu0 0.0
          %2277 = vmatprep.subr.mxu0 0.0
          %2278 = vmatpush1.msra.mxu0 0.0
          %2279 = vmatprep.subr.mxu0 0.0
          %2280 = vmatpush1.msra.mxu0 0.0
          %2281 = vmatprep.mubr.f32.mxu0 0.0
          %2282 = vmatmul.mubr.f32.gmra.mrb[0].mxu0 %v2215
          %v2283 = vpop.f32.mrb[0].mxu0
          %v2284 = vadd.f32 0.0, %v2283
          %v2285 = vpop.f32.mrb[0].mxu0
          %2286 = vdwg.mxu0
          %v2287 = vadd.f32 %v2182, %v2284
          %2288 = vst.msk [vmem:[%s2175] sm:$0xff] %vm1145, %v2287
          %2289 = vst.msk [vmem:[%s2150] sm:$0xff] %vm1244, %v2155
        $region138: #{mla_forward.10} parent=121 // pred_fallthru
          _
        // Predicated region
        $region139: #{mla_forward.10} parent=121 // pred_check
          %p2290 = pneg %p586
        $region140: #{mla_forward.10} parent=121 // pred_check_branch
          %2292 = sbr.rel (%p2290) target = $region142
        $region141: #{mla_forward.10} parent=121 // pred_region
          %v2293 = vld [vmem:[#allocation4] sm:$0xff]
          %v2294 = vrcp.pop %v2293
          %v2295 = vld [vmem:[#allocation5] sm:$0xff]
          %2297 = vset.pattern.permute.xlu0 0
          %2298 = vperm.xlu0 %2297, %v2294
          %v2299 = vpop.permute.xlu0 %2298
          %v2301 = vmul.f32 %v2295, %v2299
          %v2303 = vcombine.high %v2301, %v2301
          %v2305 = vunpack.c.l.s4 1966171168
          %v2306 = vunpack.c.0.s8 %v2305
          %v2307 = vlaneseq
          %v2308 = vshrl.u32 %v2307, 7
          %v2309 = vsub.s32 %v2306, %v2308
          %v2310 = vrot.slane %v2301, %v2309
          %v2312 = vunpack.c.l.s4 1966171168
          %v2313 = vunpack.c.0.s8 %v2312
          %v2314 = vlaneseq
          %v2315 = vshrl.u32 %v2314, 7
          %v2316 = vsub.s32 %v2313, %v2315
          %v2317 = vrot.slane %v2303, %v2316
          %v2318 = vcombine.high %v2310, %v2310
          %v2319 = vcombine.high %v2317, %v2317
          %v2321 = vunpack.c.l.s4 1966171168
          %v2322 = vunpack.c.0.s8 %v2321
          %v2323 = vlaneseq
          %v2324 = vshrl.u32 %v2323, 7
          %v2325 = vsub.s32 %v2322, %v2324
          %v2326 = vrot.slane %v2310, %v2325
          %v2328 = vunpack.c.l.s4 1966171168
          %v2329 = vunpack.c.0.s8 %v2328
          %v2330 = vlaneseq
          %v2331 = vshrl.u32 %v2330, 7
          %v2332 = vsub.s32 %v2329, %v2331
          %v2333 = vrot.slane %v2317, %v2332
          %v2335 = vunpack.c.l.s4 1966171168
          %v2336 = vunpack.c.0.s8 %v2335
          %v2337 = vlaneseq
          %v2338 = vshrl.u32 %v2337, 7
          %v2339 = vsub.s32 %v2336, %v2338
          %v2340 = vrot.slane %v2318, %v2339
          %v2342 = vunpack.c.l.s4 1966171168
          %v2343 = vunpack.c.0.s8 %v2342
          %v2344 = vlaneseq
          %v2345 = vshrl.u32 %v2344, 7
          %v2346 = vsub.s32 %v2343, %v2345
          %v2347 = vrot.slane %v2319, %v2346
          %v2348 = vcombine.high %v2326, %v2326
          %v2349 = vcombine.high %v2333, %v2333
          %v2350 = vcombine.high %v2340, %v2340
          %v2351 = vcombine.high %v2347, %v2347
          %vm2360 = vcmask 57344
          %2361 = vst.msk [vmem:[%s584] sm:$0x1] %vm2360, %v2326
          %2362 = vst.msk [vmem:[%s584 + $0x4] sm:$0x1] %vm2360, %v2340
          %2363 = vst.msk [vmem:[%s584 + $0x8] sm:$0x1] %vm2360, %v2348
          %2364 = vst.msk [vmem:[%s584 + $0xc] sm:$0x1] %vm2360, %v2350
          %2365 = vst.msk [vmem:[%s584 + $0x10] sm:$0x1] %vm2360, %v2333
          %2366 = vst.msk [vmem:[%s584 + $0x14] sm:$0x1] %vm2360, %v2347
          %2367 = vst.msk [vmem:[%s584 + $0x18] sm:$0x1] %vm2360, %v2349
          %2368 = vst.msk [vmem:[%s584 + $0x1c] sm:$0x1] %vm2360, %v2351
          %s2369 = scalar_lea.vmem [#allocation4], 8
          %v2370 = vld [vmem:[%s2369] sm:$0xff]
          %v2371 = vrcp.pop %v2370
          %s2372 = scalar_lea.vmem [#allocation5], 8
          %v2373 = vld [vmem:[%s2372] sm:$0xff]
          %2375 = vset.pattern.permute.xlu0 0
          %2376 = vperm.xlu0 %2375, %v2371
          %v2377 = vpop.permute.xlu0 %2376
          %v2379 = vmul.f32 %v2373, %v2377
          %v2381 = vcombine.high %v2379, %v2379
          %v2383 = vunpack.c.l.s4 1966171168
          %v2384 = vunpack.c.0.s8 %v2383
          %v2385 = vlaneseq
          %v2386 = vshrl.u32 %v2385, 7
          %v2387 = vsub.s32 %v2384, %v2386
          %v2388 = vrot.slane %v2379, %v2387
          %v2390 = vunpack.c.l.s4 1966171168
          %v2391 = vunpack.c.0.s8 %v2390
          %v2392 = vlaneseq
          %v2393 = vshrl.u32 %v2392, 7
          %v2394 = vsub.s32 %v2391, %v2393
          %v2395 = vrot.slane %v2381, %v2394
          %v2396 = vcombine.high %v2388, %v2388
          %v2397 = vcombine.high %v2395, %v2395
          %v2399 = vunpack.c.l.s4 1966171168
          %v2400 = vunpack.c.0.s8 %v2399
          %v2401 = vlaneseq
          %v2402 = vshrl.u32 %v2401, 7
          %v2403 = vsub.s32 %v2400, %v2402
          %v2404 = vrot.slane %v2388, %v2403
          %v2406 = vunpack.c.l.s4 1966171168
          %v2407 = vunpack.c.0.s8 %v2406
          %v2408 = vlaneseq
          %v2409 = vshrl.u32 %v2408, 7
          %v2410 = vsub.s32 %v2407, %v2409
          %v2411 = vrot.slane %v2395, %v2410
          %v2413 = vunpack.c.l.s4 1966171168
          %v2414 = vunpack.c.0.s8 %v2413
          %v2415 = vlaneseq
          %v2416 = vshrl.u32 %v2415, 7
          %v2417 = vsub.s32 %v2414, %v2416
          %v2418 = vrot.slane %v2396, %v2417
          %v2420 = vunpack.c.l.s4 1966171168
          %v2421 = vunpack.c.0.s8 %v2420
          %v2422 = vlaneseq
          %v2423 = vshrl.u32 %v2422, 7
          %v2424 = vsub.s32 %v2421, %v2423
          %v2425 = vrot.slane %v2397, %v2424
          %v2426 = vcombine.high %v2404, %v2404
          %v2427 = vcombine.high %v2411, %v2411
          %v2428 = vcombine.high %v2418, %v2418
          %v2429 = vcombine.high %v2425, %v2425
          %2438 = vst.msk [vmem:[%s584 + $0x1] sm:$0x1] %vm2360, %v2404
          %2439 = vst.msk [vmem:[%s584 + $0x5] sm:$0x1] %vm2360, %v2418
          %2440 = vst.msk [vmem:[%s584 + $0x9] sm:$0x1] %vm2360, %v2426
          %2441 = vst.msk [vmem:[%s584 + $0xd] sm:$0x1] %vm2360, %v2428
          %2442 = vst.msk [vmem:[%s584 + $0x11] sm:$0x1] %vm2360, %v2411
          %2443 = vst.msk [vmem:[%s584 + $0x15] sm:$0x1] %vm2360, %v2425
          %2444 = vst.msk [vmem:[%s584 + $0x19] sm:$0x1] %vm2360, %v2427
          %2445 = vst.msk [vmem:[%s584 + $0x1d] sm:$0x1] %vm2360, %v2429
          %s2446 = scalar_lea.vmem [#allocation4], 16
          %v2447 = vld [vmem:[%s2446] sm:$0xff]
          %v2448 = vrcp.pop %v2447
          %s2449 = scalar_lea.vmem [#allocation5], 16
          %v2450 = vld [vmem:[%s2449] sm:$0xff]
          %2452 = vset.pattern.permute.xlu0 0
          %2453 = vperm.xlu0 %2452, %v2448
          %v2454 = vpop.permute.xlu0 %2453
          %v2456 = vmul.f32 %v2450, %v2454
          %v2458 = vcombine.high %v2456, %v2456
          %v2460 = vunpack.c.l.s4 1966171168
          %v2461 = vunpack.c.0.s8 %v2460
          %v2462 = vlaneseq
          %v2463 = vshrl.u32 %v2462, 7
          %v2464 = vsub.s32 %v2461, %v2463
          %v2465 = vrot.slane %v2456, %v2464
          %v2467 = vunpack.c.l.s4 1966171168
          %v2468 = vunpack.c.0.s8 %v2467
          %v2469 = vlaneseq
          %v2470 = vshrl.u32 %v2469, 7
          %v2471 = vsub.s32 %v2468, %v2470
          %v2472 = vrot.slane %v2458, %v2471
          %v2473 = vcombine.high %v2465, %v2465
          %v2474 = vcombine.high %v2472, %v2472
          %v2476 = vunpack.c.l.s4 1966171168
          %v2477 = vunpack.c.0.s8 %v2476
          %v2478 = vlaneseq
          %v2479 = vshrl.u32 %v2478, 7
          %v2480 = vsub.s32 %v2477, %v2479
          %v2481 = vrot.slane %v2465, %v2480
          %v2483 = vunpack.c.l.s4 1966171168
          %v2484 = vunpack.c.0.s8 %v2483
          %v2485 = vlaneseq
          %v2486 = vshrl.u32 %v2485, 7
          %v2487 = vsub.s32 %v2484, %v2486
          %v2488 = vrot.slane %v2472, %v2487
          %v2490 = vunpack.c.l.s4 1966171168
          %v2491 = vunpack.c.0.s8 %v2490
          %v2492 = vlaneseq
          %v2493 = vshrl.u32 %v2492, 7
          %v2494 = vsub.s32 %v2491, %v2493
          %v2495 = vrot.slane %v2473, %v2494
          %v2497 = vunpack.c.l.s4 1966171168
          %v2498 = vunpack.c.0.s8 %v2497
          %v2499 = vlaneseq
          %v2500 = vshrl.u32 %v2499, 7
          %v2501 = vsub.s32 %v2498, %v2500
          %v2502 = vrot.slane %v2474, %v2501
          %v2503 = vcombine.high %v2481, %v2481
          %v2504 = vcombine.high %v2488, %v2488
          %v2505 = vcombine.high %v2495, %v2495
          %v2506 = vcombine.high %v2502, %v2502
          %2515 = vst.msk [vmem:[%s584 + $0x2] sm:$0x1] %vm2360, %v2481
          %2516 = vst.msk [vmem:[%s584 + $0x6] sm:$0x1] %vm2360, %v2495
          %2517 = vst.msk [vmem:[%s584 + $0xa] sm:$0x1] %vm2360, %v2503
          %2518 = vst.msk [vmem:[%s584 + $0xe] sm:$0x1] %vm2360, %v2505
          %2519 = vst.msk [vmem:[%s584 + $0x12] sm:$0x1] %vm2360, %v2488
          %2520 = vst.msk [vmem:[%s584 + $0x16] sm:$0x1] %vm2360, %v2502
          %2521 = vst.msk [vmem:[%s584 + $0x1a] sm:$0x1] %vm2360, %v2504
          %2522 = vst.msk [vmem:[%s584 + $0x1e] sm:$0x1] %vm2360, %v2506
          %s2523 = scalar_lea.vmem [#allocation4], 24
          %v2524 = vld [vmem:[%s2523] sm:$0xff]
          %v2525 = vrcp.pop %v2524
          %s2526 = scalar_lea.vmem [#allocation5], 24
          %v2527 = vld [vmem:[%s2526] sm:$0xff]
          %2529 = vset.pattern.permute.xlu0 0
          %2530 = vperm.xlu0 %2529, %v2525
          %v2531 = vpop.permute.xlu0 %2530
          %v2533 = vmul.f32 %v2527, %v2531
          %v2535 = vcombine.high %v2533, %v2533
          %v2537 = vunpack.c.l.s4 1966171168
          %v2538 = vunpack.c.0.s8 %v2537
          %v2539 = vlaneseq
          %v2540 = vshrl.u32 %v2539, 7
          %v2541 = vsub.s32 %v2538, %v2540
          %v2542 = vrot.slane %v2533, %v2541
          %v2544 = vunpack.c.l.s4 1966171168
          %v2545 = vunpack.c.0.s8 %v2544
          %v2546 = vlaneseq
          %v2547 = vshrl.u32 %v2546, 7
          %v2548 = vsub.s32 %v2545, %v2547
          %v2549 = vrot.slane %v2535, %v2548
          %v2550 = vcombine.high %v2542, %v2542
          %v2551 = vcombine.high %v2549, %v2549
          %v2553 = vunpack.c.l.s4 1966171168
          %v2554 = vunpack.c.0.s8 %v2553
          %v2555 = vlaneseq
          %v2556 = vshrl.u32 %v2555, 7
          %v2557 = vsub.s32 %v2554, %v2556
          %v2558 = vrot.slane %v2542, %v2557
          %v2560 = vunpack.c.l.s4 1966171168
          %v2561 = vunpack.c.0.s8 %v2560
          %v2562 = vlaneseq
          %v2563 = vshrl.u32 %v2562, 7
          %v2564 = vsub.s32 %v2561, %v2563
          %v2565 = vrot.slane %v2549, %v2564
          %v2567 = vunpack.c.l.s4 1966171168
          %v2568 = vunpack.c.0.s8 %v2567
          %v2569 = vlaneseq
          %v2570 = vshrl.u32 %v2569, 7
          %v2571 = vsub.s32 %v2568, %v2570
          %v2572 = vrot.slane %v2550, %v2571
          %v2574 = vunpack.c.l.s4 1966171168
          %v2575 = vunpack.c.0.s8 %v2574
          %v2576 = vlaneseq
          %v2577 = vshrl.u32 %v2576, 7
          %v2578 = vsub.s32 %v2575, %v2577
          %v2579 = vrot.slane %v2551, %v2578
          %v2580 = vcombine.high %v2558, %v2558
          %v2581 = vcombine.high %v2565, %v2565
          %v2582 = vcombine.high %v2572, %v2572
          %v2583 = vcombine.high %v2579, %v2579
          %2592 = vst.msk [vmem:[%s584 + $0x3] sm:$0x1] %vm2360, %v2558
          %2593 = vst.msk [vmem:[%s584 + $0x7] sm:$0x1] %vm2360, %v2572
          %2594 = vst.msk [vmem:[%s584 + $0xb] sm:$0x1] %vm2360, %v2580
          %2595 = vst.msk [vmem:[%s584 + $0xf] sm:$0x1] %vm2360, %v2582
          %2596 = vst.msk [vmem:[%s584 + $0x13] sm:$0x1] %vm2360, %v2565
          %2597 = vst.msk [vmem:[%s584 + $0x17] sm:$0x1] %vm2360, %v2579
          %2598 = vst.msk [vmem:[%s584 + $0x1b] sm:$0x1] %vm2360, %v2581
          %2599 = vst.msk [vmem:[%s584 + $0x1f] sm:$0x1] %vm2360, %v2583
        $region142: #{mla_forward.10} parent=121 // pred_fallthru
          _
        %s2600 = smul.u32 8, %s24
        %p2601 = scmp.lt.s32.totalorder %s23, 1
        %s2602 = scalar_select %p2601, %s23, 1
        %p2603 = scmp.lt.s32.totalorder %s2600, 7
        %s2604 = scalar_select %p2603, %s2600, 7
        %s2605 = smul.addr %s2602, 8
        %s2606 = sadd.s32 %s2604, %s2605
        %s2607 = smul.addr %s2606, 4
        %s2608 = scalar_lea.vmem %s7, %s2607
        // Predicated region
        $region143: #{mla_forward.10} parent=121 // pred_check
          %p2609 = pneg %p245
        $region144: #{mla_forward.10} parent=121 // pred_check_branch
          %2611 = sbr.rel (%p2609) target = $region146
        $region145: #{mla_forward.10} parent=121 // pred_region
          %s2612 = smul.u32 8, %s24
        $region146: #{mla_forward.10} parent=121 // pred_fallthru
          _
      $region122: #{mla_forward.10} parent=5 // pred_fallthru
        _
      %p2613 = scmp.le.s32.totalorder 2, %s13
      // Predicated region
      $region147: #{mla_forward.10} parent=5 // pred_check
        %p2614 = pneg %p2613
      $region148: #{mla_forward.10} parent=5 // pred_check_branch
        %2616 = sbr.rel (%p2614) target = $region150
      $region149: #{mla_forward.10} parent=5 // pred_region
        %s2617 = ssub.s32 %s13, 2
        // Predicated region
        $region151: #{mla_forward.10} parent=149 // pred_check
          %p2618 = pneg %p251
        $region152: #{mla_forward.10} parent=149 // pred_check_branch
          %2620 = sbr.rel (%p2618) target = $region154
        $region153: #{mla_forward.10} parent=149 // pred_region
          %s2621 = smul.u32 8, %s27
          %p2622 = scmp.lt.s32.totalorder %s26, 1
          %s2623 = scalar_select %p2622, %s26, 1
          %p2624 = scmp.lt.s32.totalorder %s2621, 7
          %s2625 = scalar_select %p2624, %s2621, 7
          %s2626 = smul.addr %s2623, 8
          %s2627 = sadd.s32 %s2625, %s2626
          %s2628 = smul.addr %s2627, 4
          %s2629 = scalar_lea.vmem %s7, %s2628
        $region154: #{mla_forward.10} parent=149 // pred_fallthru
          _
      $region150: #{mla_forward.10} parent=5 // pred_fallthru
        _
    $region6: #{mla_forward.10} parent=1 // loop_footer
      %s17 = sadd.s32 1, %s13
    $region7: #{mla_forward.10} parent=1 // loop_footer_branch
      %12 = sbr.rel target = $region3
    $region8: #{mla_forward.10} parent=1 // loop_exit
      _

</llo_original>
